<compile_context>
chip_gen: v7x
topology: tpu7x:2x2x1
jax: 0.10.0
libtpu: 0.0.40
codegen_flags: <defaults>
</compile_context>

<pallas_src>
import functools
import math

import jax
import jax.numpy as jnp
from jax.experimental import pallas as pl
from jax.experimental.pallas import tpu as pltpu


# ------------------------------------------------------------------
# Fused Pallas kernel: one full TransformerEncoderLayer per grid step
# ------------------------------------------------------------------

def _encoder_layer_kernel(
    x_ref,
    wq_ref, bq_ref, wk_ref, bk_ref, wv_ref, bv_ref, wo_ref, bo_ref,
    ln1g_ref, ln1b_ref,
    w1_ref, b1_ref, w2_ref, b2_ref,
    ln2g_ref, ln2b_ref,
    o_ref,
    q_s, k_s, v_s, att_s,
    *, head_num, inv_temp, eps):
  """x_ref: (1, N, D) f32.  Weights bf16, biases / LN params f32 (1, *)."""
  x = x_ref[0]                              # [N, D] f32 (residual kept in f32)
  xb = x.astype(jnp.bfloat16)

  def proj(w_ref, b_ref):
    # bf16 MXU matmul, f32 accumulation
    return jnp.dot(xb, w_ref[...], preferred_element_type=jnp.float32) + b_ref[...]

  # Full-width Q/K/V projections (one contraction each), staged in VMEM scratch
  q_s[...] = proj(wq_ref, bq_ref).astype(jnp.bfloat16)
  k_s[...] = proj(wk_ref, bk_ref).astype(jnp.bfloat16)
  v_s[...] = proj(wv_ref, bv_ref).astype(jnp.bfloat16)

  n, d = x.shape
  dh = d // head_num

  # Per-head scaled-dot-product attention (statically unrolled; everything in VMEM)
  for h in range(head_num):
    cols = slice(h * dh, (h + 1) * dh)
    qh = q_s[:, cols]                       # [N, dh] bf16 (VMEM load)
    kh = k_s[:, cols]
    vh = v_s[:, cols]
    s = jax.lax.dot_general(qh, kh, (((1,), (1,)), ((), ())),
                            preferred_element_type=jnp.float32) * inv_temp
    s_max = jnp.max(s, axis=-1, keepdims=True)
    e = jnp.exp(s - s_max)
    p = e * pl.reciprocal(jnp.sum(e, axis=-1, keepdims=True), approx=True)
    att_s[:, cols] = jnp.dot(p.astype(jnp.bfloat16), vh,
                             preferred_element_type=jnp.float32)

  # output projection (head merge happened via the att_s scratch writes)
  att = jnp.dot(att_s[...].astype(jnp.bfloat16), wo_ref[...],
                preferred_element_type=jnp.float32) + bo_ref[...]

  def layer_norm(y, g_ref, b_ref):          # f32 statistics
    mu = jnp.mean(y, axis=-1, keepdims=True)
    var = jnp.mean((y - mu) ** 2, axis=-1, keepdims=True)
    return (y - mu) * jax.lax.rsqrt(var + eps) * g_ref[...] + b_ref[...]

  out1 = layer_norm(att + x, ln1g_ref, ln1b_ref)          # attention_norm(att + input)

  # Feedforward: Linear -> ReLU -> Linear -> ReLU  (dropouts are identity)
  h1 = jnp.dot(out1.astype(jnp.bfloat16), w1_ref[...],
               preferred_element_type=jnp.float32) + b1_ref[...]
  h1 = jnp.maximum(h1, 0.0)
  h2 = jnp.dot(h1.astype(jnp.bfloat16), w2_ref[...],
               preferred_element_type=jnp.float32) + b2_ref[...]
  h2 = jnp.maximum(h2, 0.0)

  out2 = layer_norm(h2 + out1, ln2g_ref, ln2b_ref)        # feedforward_norm(ff + out)
  o_ref[0] = out2.astype(o_ref.dtype)


def encoder_layer(x, p, *, head_num, eps=1e-5):
  """x: [B, N, D] f32  ->  [B, N, D] f32. One pallas_call per layer."""
  B, N, D = x.shape
  assert D % head_num == 0
  inv_temp = 1.0 / math.sqrt(D)             # temperature = sqrt(head_num*head_dim)

  weights = [p["wq"], p["bq"], p["wk"], p["bk"], p["wv"], p["bv"],
             p["wo"], p["bo"], p["ln1_g"], p["ln1_b"],
             p["ff_w1"], p["ff_b1"], p["ff_w2"], p["ff_b2"],
             p["ln2_g"], p["ln2_b"]]

  def const_spec(arr):                      # weight stays VMEM-resident across grid steps
    nd = arr.ndim
    return pl.BlockSpec(arr.shape, lambda b, _nd=nd: (0,) * _nd)

  return pl.pallas_call(
      functools.partial(_encoder_layer_kernel, head_num=head_num,
                        inv_temp=inv_temp, eps=eps),
      out_shape=jax.ShapeDtypeStruct((B, N, D), jnp.float32),
      grid=(B,),
      in_specs=[pl.BlockSpec((1, N, D), lambda b: (b, 0, 0))]
               + [const_spec(w) for w in weights],
      out_specs=pl.BlockSpec((1, N, D), lambda b: (b, 0, 0)),
      scratch_shapes=[pltpu.VMEM((N, D), jnp.bfloat16),   # q
                      pltpu.VMEM((N, D), jnp.bfloat16),   # k
                      pltpu.VMEM((N, D), jnp.bfloat16),   # v
                      pltpu.VMEM((N, D), jnp.float32)],   # attention output (head-merged)
      compiler_params=pltpu.CompilerParams(
          dimension_semantics=("parallel",)),
  )(x, *weights)


# ------------------------------------------------------------------
# DeepCNN300 (DenseNet stem) — plain-JAX glue
# TODO(synk): the conv/BN/pool CNN stem stays in XLA (lax.conv) rather than
#             hand-written Pallas conv kernels.
# ------------------------------------------------------------------

def _conv2d(x, w, stride=1, padding=0):
  return jax.lax.conv_general_dilated(
      x, w, window_strides=(stride, stride),
      padding=[(padding, padding), (padding, padding)],
      dimension_numbers=("NCHW", "OIHW", "NCHW"))


def _bn_relu(x, bn, eps=1e-5):              # eval-mode BatchNorm2d + ReLU
  scale = bn["gamma"] * jax.lax.rsqrt(bn["var"] + eps)
  shift = bn["beta"] - bn["mean"] * scale
  return jnp.maximum(x * scale[None, :, None, None] + shift[None, :, None, None], 0.0)


def _max_pool2(x):
  return jax.lax.reduce_window(x, -jnp.inf, jax.lax.max,
                               (1, 1, 2, 2), (1, 1, 2, 2), "VALID")


def _avg_pool2(x):
  return jax.lax.reduce_window(x, 0.0, jax.lax.add,
                               (1, 1, 2, 2), (1, 1, 2, 2), "VALID") * 0.25


def _bottleneck_fwd(x, p):
  out = _conv2d(_bn_relu(x, p["bn1"]), p["conv1"])                 # 1x1
  out = _conv2d(_bn_relu(out, p["bn2"]), p["conv2"], padding=1)    # 3x3
  return jnp.concatenate([x, out], axis=1)                         # dropout = identity


def _transition_fwd(x, p):
  return _avg_pool2(_conv2d(_bn_relu(x, p["bn"]), p["conv"]))


def deep_cnn_forward(x, p):
  out = _conv2d(x, p["conv0"], stride=2, padding=3)
  out = _bn_relu(out, p["bn0"])
  out = _max_pool2(out)
  for bp in p["block1"]:
    out = _bottleneck_fwd(out, bp)
  out = _transition_fwd(out, p["trans1"])
  for bp in p["block2"]:
    out = _bottleneck_fwd(out, bp)
  out = _bn_relu(out, p["bn_trans2"])
  out = _conv2d(out, p["conv_trans2"])
  return out


# ------------------------------------------------------------------
# PositionalEncoding2D — plain-JAX glue (tiny; runs once per forward)
# ------------------------------------------------------------------

def positional_encoding_2d(feat, p):
  b, c, h, w = feat.shape
  half = c // 2
  h_pos = p["h_pe"][:h] @ p["h_w"] + p["h_b"]      # [h, c/2]
  w_pos = p["w_pe"][:w] @ p["w_w"] + p["w_b"]      # [w, c/2]
  h_full = jnp.broadcast_to(h_pos[:, None, :], (h, w, half))
  w_full = jnp.broadcast_to(w_pos[None, :, :], (h, w, half))
  pos = jnp.concatenate([h_full, w_full], axis=2)  # [h, w, c]
  pos = jnp.transpose(pos, (2, 0, 1))              # [c, h, w]
  return feat + pos[None]                          # dropout = identity


# ------------------------------------------------------------------
# Full forward
# ------------------------------------------------------------------

@functools.partial(jax.jit, static_argnames=("head_num",))
def transformer_encoder_2d_forward(x, params, *, head_num):
  feat = deep_cnn_forward(x, params["cnn"])            # [B, C, H', W']
  feat = positional_encoding_2d(feat, params["pos"])
  b, c, h, w = feat.shape
  out = feat.reshape(b, c, h * w).transpose(0, 2, 1)   # [B, H'*W', C]
  for lp in params["layers"]:
    out = encoder_layer(out, lp, head_num=head_num)    # fused Pallas kernel
  return out


# ------------------------------------------------------------------
# Deterministic parameter init (fresh-module, eval-mode semantics)
# ------------------------------------------------------------------

def _bn_init(c):
  return dict(gamma=jnp.ones((c,), jnp.float32), beta=jnp.zeros((c,), jnp.float32),
              mean=jnp.zeros((c,), jnp.float32), var=jnp.ones((c,), jnp.float32))


def _conv_init(key, out_c, in_c, k):
  fan_in = in_c * k * k
  return jax.random.normal(key, (out_c, in_c, k, k), jnp.float32) / math.sqrt(fan_in)


def _linear_init(key, din, dout):
  kw, kb = jax.random.split(key)
  bound = 1.0 / math.sqrt(din)
  w = jax.random.uniform(kw, (din, dout), jnp.float32, -bound, bound)
  b = jax.random.uniform(kb, (1, dout), jnp.float32, -bound, bound)
  return w, b


def _bottleneck_init(key, in_c, growth_rate, num_bn=3):
  inter = num_bn * growth_rate
  k1, k2 = jax.random.split(key)
  return dict(bn1=_bn_init(in_c), conv1=_conv_init(k1, inter, in_c, 1),
              bn2=_bn_init(inter), conv2=_conv_init(k2, growth_rate, inter, 3))


def init_deep_cnn(key, in_ch, num_in_features, growth_rate, depth):
  keys = jax.random.split(key, 5)
  p = dict(conv0=_conv_init(keys[0], num_in_features, in_ch, 7),
           bn0=_bn_init(num_in_features))
  nf = num_in_features
  bkeys = jax.random.split(keys[1], depth)
  p["block1"] = [_bottleneck_init(bkeys[i], nf + i * growth_rate, growth_rate)
                 for i in range(depth)]
  nf = nf + depth * growth_rate
  p["trans1"] = dict(bn=_bn_init(nf), conv=_conv_init(keys[2], nf // 2, nf, 1))
  nf = nf // 2
  bkeys = jax.random.split(keys[3], depth)
  p["block2"] = [_bottleneck_init(bkeys[i], nf + i * growth_rate, growth_rate)
                 for i in range(depth)]
  nf = nf + depth * growth_rate
  p["bn_trans2"] = _bn_init(nf)
  p["conv_trans2"] = _conv_init(keys[4], nf // 2, nf, 1)
  return p, nf // 2                                    # hidden_dim implied by the CNN


def _sinusoid_table(channels, max_len):
  pos = jnp.arange(max_len, dtype=jnp.float32)[:, None]
  i = jnp.arange(channels, dtype=jnp.float32)[None, :]
  angle_rates = 1.0 / jnp.power(10000.0, 2.0 * jnp.floor(i / 2.0) / channels)
  t = pos * angle_rates
  t = t.at[:, 0::2].set(jnp.sin(t[:, 0::2]))
  t = t.at[:, 1::2].set(jnp.cos(t[:, 1::2]))
  return t


def init_pos_enc_2d(key, hidden, max_h=64, max_w=128):
  half = hidden // 2
  k1, k2 = jax.random.split(key)
  hw, hb = _linear_init(k1, half, half)
  ww, wb = _linear_init(k2, half, half)
  return dict(h_pe=_sinusoid_table(half, max_h), w_pe=_sinusoid_table(half, max_w),
              h_w=hw, h_b=hb, w_w=ww, w_b=wb)


def init_encoder_layer(key, hidden, filter_size, head_num):
  ks = jax.random.split(key, 6)
  wq, bq = _linear_init(ks[0], hidden, hidden)
  wk, bk = _linear_init(ks[1], hidden, hidden)
  wv, bv = _linear_init(ks[2], hidden, hidden)
  wo, bo = _linear_init(ks[3], hidden, hidden)
  w1, b1 = _linear_init(ks[4], hidden, filter_size)
  w2, b2 = _linear_init(ks[5], filter_size, hidden)
  # matmul weights stored in bf16 (MXU path); biases / LN params stay f32
  return dict(
      wq=wq.astype(jnp.bfloat16), bq=bq,
      wk=wk.astype(jnp.bfloat16), bk=bk,
      wv=wv.astype(jnp.bfloat16), bv=bv,
      wo=wo.astype(jnp.bfloat16), bo=bo,
      ln1_g=jnp.ones((1, hidden), jnp.float32), ln1_b=jnp.zeros((1, hidden), jnp.float32),
      ff_w1=w1.astype(jnp.bfloat16), ff_b1=b1,
      ff_w2=w2.astype(jnp.bfloat16), ff_b2=b2,
      ln2_g=jnp.ones((1, hidden), jnp.float32), ln2_b=jnp.zeros((1, hidden), jnp.float32),
  )


def init_params(key, input_channel, num_in_features, growth_rate, depth,
                filter_size, head_num, layer_num):
  k_cnn, k_pos, k_layers = jax.random.split(key, 3)
  cnn, hidden_dim = init_deep_cnn(k_cnn, input_channel, num_in_features,
                                  growth_rate, depth)
  pos = init_pos_enc_2d(k_pos, hidden_dim)
  lkeys = jax.random.split(k_layers, layer_num)
  layers = [init_encoder_layer(k, hidden_dim, filter_size, head_num) for k in lkeys]
  return dict(cnn=cnn, pos=pos, layers=layers), hidden_dim


# ------------------------------------------------------------------
# Main
# ------------------------------------------------------------------

if __name__ == "__main__":
  # Small shapes consistent with the module (scaled-down DeepCNN300 so that the
  # CNN-implied hidden dim is 32: ((32 + 4*8)//2 + 4*8)//2 = 32).
  B, input_channel, H_img, W_img = 2, 1, 32, 32
  num_in_features, growth_rate, depth = 32, 8, 4
  filter_size, head_num, layer_num = 64, 4, 2

  key = jax.random.PRNGKey(0)
  k_params, k_x = jax.random.split(key)

  params, hidden_dim = init_params(k_params, input_channel, num_in_features,
                                   growth_rate, depth, filter_size,
                                   head_num, layer_num)
  x = jax.random.normal(k_x, (B, input_channel, H_img, W_img), jnp.float32)

  out = transformer_encoder_2d_forward(x, params, head_num=head_num)
  out = jax.block_until_ready(out)

  n_tokens = (H_img // 8) * (W_img // 8)   # conv0 /2, maxpool /2, trans1 pool /2
  assert out.shape == (B, n_tokens, hidden_dim), out.shape
  assert bool(jnp.all(jnp.isfinite(out)))
  print("KERNEL_OK")
</pallas_src>

<mosaic_0001>
module attributes {stable_mosaic.version = 11 : i64} {
  func.func @_encoder_layer_kernel(%arg0: i32, %arg1: memref<1x16x32xf32, #tpu.memory_space<vmem>>, %arg2: memref<32x32xbf16, #tpu.memory_space<vmem>>, %arg3: memref<1x32xf32, #tpu.memory_space<vmem>>, %arg4: memref<32x32xbf16, #tpu.memory_space<vmem>>, %arg5: memref<1x32xf32, #tpu.memory_space<vmem>>, %arg6: memref<32x32xbf16, #tpu.memory_space<vmem>>, %arg7: memref<1x32xf32, #tpu.memory_space<vmem>>, %arg8: memref<32x32xbf16, #tpu.memory_space<vmem>>, %arg9: memref<1x32xf32, #tpu.memory_space<vmem>>, %arg10: memref<1x32xf32, #tpu.memory_space<vmem>>, %arg11: memref<1x32xf32, #tpu.memory_space<vmem>>, %arg12: memref<32x64xbf16, #tpu.memory_space<vmem>>, %arg13: memref<1x64xf32, #tpu.memory_space<vmem>>, %arg14: memref<64x32xbf16, #tpu.memory_space<vmem>>, %arg15: memref<1x32xf32, #tpu.memory_space<vmem>>, %arg16: memref<1x32xf32, #tpu.memory_space<vmem>>, %arg17: memref<1x32xf32, #tpu.memory_space<vmem>>, %arg18: memref<1x16x32xf32, #tpu.memory_space<vmem>>, %arg19: memref<16x32xbf16, #tpu.memory_space<vmem>>, %arg20: memref<16x32xbf16, #tpu.memory_space<vmem>>, %arg21: memref<16x32xbf16, #tpu.memory_space<vmem>>, %arg22: memref<16x32xf32, #tpu.memory_space<vmem>>) attributes {dimension_semantics = [#tpu.dimension_semantics<parallel>], iteration_bounds = array<i64: 2>, scalar_prefetch = 0 : i64, scratch_operands = 4 : i64, tpu.core_type = #tpu.core_type<tc>, window_params = [{transform_indices = @transform_0, window_bounds = array<i64: 1, 16, 32>}, {pipeline_mode = #tpu.pipeline_mode<synchronous>, transform_indices = @transform_1, window_bounds = array<i64: 32, 32>}, {pipeline_mode = #tpu.pipeline_mode<synchronous>, transform_indices = @transform_2, window_bounds = array<i64: 1, 32>}, {pipeline_mode = #tpu.pipeline_mode<synchronous>, transform_indices = @transform_3, window_bounds = array<i64: 32, 32>}, {pipeline_mode = #tpu.pipeline_mode<synchronous>, transform_indices = @transform_4, window_bounds = array<i64: 1, 32>}, {pipeline_mode = #tpu.pipeline_mode<synchronous>, transform_indices = @transform_5, window_bounds = array<i64: 32, 32>}, {pipeline_mode = #tpu.pipeline_mode<synchronous>, transform_indices = @transform_6, window_bounds = array<i64: 1, 32>}, {pipeline_mode = #tpu.pipeline_mode<synchronous>, transform_indices = @transform_7, window_bounds = array<i64: 32, 32>}, {pipeline_mode = #tpu.pipeline_mode<synchronous>, transform_indices = @transform_8, window_bounds = array<i64: 1, 32>}, {pipeline_mode = #tpu.pipeline_mode<synchronous>, transform_indices = @transform_9, window_bounds = array<i64: 1, 32>}, {pipeline_mode = #tpu.pipeline_mode<synchronous>, transform_indices = @transform_10, window_bounds = array<i64: 1, 32>}, {pipeline_mode = #tpu.pipeline_mode<synchronous>, transform_indices = @transform_11, window_bounds = array<i64: 32, 64>}, {pipeline_mode = #tpu.pipeline_mode<synchronous>, transform_indices = @transform_12, window_bounds = array<i64: 1, 64>}, {pipeline_mode = #tpu.pipeline_mode<synchronous>, transform_indices = @transform_13, window_bounds = array<i64: 64, 32>}, {pipeline_mode = #tpu.pipeline_mode<synchronous>, transform_indices = @transform_14, window_bounds = array<i64: 1, 32>}, {pipeline_mode = #tpu.pipeline_mode<synchronous>, transform_indices = @transform_15, window_bounds = array<i64: 1, 32>}, {pipeline_mode = #tpu.pipeline_mode<synchronous>, transform_indices = @transform_16, window_bounds = array<i64: 1, 32>}, {transform_indices = @transform_17, window_bounds = array<i64: 1, 16, 32>}]} {
    %c0 = arith.constant 0 : index
    %c0_0 = arith.constant 0 : index
    %c0_1 = arith.constant 0 : index
    %0 = vector.load %arg1[%c0, %c0_0, %c0_1] : memref<1x16x32xf32, #tpu.memory_space<vmem>>, vector<1x16x32xf32>
    %1 = vector.shape_cast %0 : vector<1x16x32xf32> to vector<16x32xf32>
    %2 = arith.truncf %1 : vector<16x32xf32> to vector<16x32xbf16>
    %c0_2 = arith.constant 0 : index
    %c0_3 = arith.constant 0 : index
    %3 = vector.load %arg2[%c0_2, %c0_3] : memref<32x32xbf16, #tpu.memory_space<vmem>>, vector<32x32xbf16>
    %cst = arith.constant dense<0.000000e+00> : vector<16x32xf32>
    %4 = tpu.matmul %2, %3, %cst {dimension_numbers = #tpu.dot_dimension_numbers<[1], [0], [0], [1], [0, 0, 1, 1], [], []>} : vector<16x32xbf16>, vector<32x32xbf16>, vector<16x32xf32> -> vector<16x32xf32>
    %c0_4 = arith.constant 0 : index
    %c0_5 = arith.constant 0 : index
    %5 = vector.load %arg3[%c0_4, %c0_5] : memref<1x32xf32, #tpu.memory_space<vmem>>, vector<1x32xf32>
    %6 = vector.broadcast %5 : vector<1x32xf32> to vector<16x32xf32>
    %7 = arith.addf %4, %6 : vector<16x32xf32>
    %8 = arith.truncf %7 : vector<16x32xf32> to vector<16x32xbf16>
    %c0_6 = arith.constant 0 : index
    %c0_7 = arith.constant 0 : index
    %9 = vector.load %arg19[%c0_6, %c0_7] : memref<16x32xbf16, #tpu.memory_space<vmem>>, vector<16x32xbf16>
    tpu.vector_store %arg19[%c0_6, %c0_7], %8 {strides = array<i32>} : memref<16x32xbf16, #tpu.memory_space<vmem>>, vector<16x32xbf16>,
    %c0_8 = arith.constant 0 : index
    %c0_9 = arith.constant 0 : index
    %10 = vector.load %arg4[%c0_8, %c0_9] : memref<32x32xbf16, #tpu.memory_space<vmem>>, vector<32x32xbf16>
    %cst_10 = arith.constant dense<0.000000e+00> : vector<16x32xf32>
    %11 = tpu.matmul %2, %10, %cst_10 {dimension_numbers = #tpu.dot_dimension_numbers<[1], [0], [0], [1], [0, 0, 1, 1], [], []>} : vector<16x32xbf16>, vector<32x32xbf16>, vector<16x32xf32> -> vector<16x32xf32>
    %c0_11 = arith.constant 0 : index
    %c0_12 = arith.constant 0 : index
    %12 = vector.load %arg5[%c0_11, %c0_12] : memref<1x32xf32, #tpu.memory_space<vmem>>, vector<1x32xf32>
    %13 = vector.broadcast %12 : vector<1x32xf32> to vector<16x32xf32>
    %14 = arith.addf %11, %13 : vector<16x32xf32>
    %15 = arith.truncf %14 : vector<16x32xf32> to vector<16x32xbf16>
    %c0_13 = arith.constant 0 : index
    %c0_14 = arith.constant 0 : index
    %16 = vector.load %arg20[%c0_13, %c0_14] : memref<16x32xbf16, #tpu.memory_space<vmem>>, vector<16x32xbf16>
    tpu.vector_store %arg20[%c0_13, %c0_14], %15 {strides = array<i32>} : memref<16x32xbf16, #tpu.memory_space<vmem>>, vector<16x32xbf16>,
    %c0_15 = arith.constant 0 : index
    %c0_16 = arith.constant 0 : index
    %17 = vector.load %arg6[%c0_15, %c0_16] : memref<32x32xbf16, #tpu.memory_space<vmem>>, vector<32x32xbf16>
    %cst_17 = arith.constant dense<0.000000e+00> : vector<16x32xf32>
    %18 = tpu.matmul %2, %17, %cst_17 {dimension_numbers = #tpu.dot_dimension_numbers<[1], [0], [0], [1], [0, 0, 1, 1], [], []>} : vector<16x32xbf16>, vector<32x32xbf16>, vector<16x32xf32> -> vector<16x32xf32>
    %c0_18 = arith.constant 0 : index
    %c0_19 = arith.constant 0 : index
    %19 = vector.load %arg7[%c0_18, %c0_19] : memref<1x32xf32, #tpu.memory_space<vmem>>, vector<1x32xf32>
    %20 = vector.broadcast %19 : vector<1x32xf32> to vector<16x32xf32>
    %21 = arith.addf %18, %20 : vector<16x32xf32>
    %22 = arith.truncf %21 : vector<16x32xf32> to vector<16x32xbf16>
    %c0_20 = arith.constant 0 : index
    %c0_21 = arith.constant 0 : index
    %23 = vector.load %arg21[%c0_20, %c0_21] : memref<16x32xbf16, #tpu.memory_space<vmem>>, vector<16x32xbf16>
    tpu.vector_store %arg21[%c0_20, %c0_21], %22 {strides = array<i32>} : memref<16x32xbf16, #tpu.memory_space<vmem>>, vector<16x32xbf16>,
    %c0_22 = arith.constant 0 : index
    %c0_23 = arith.constant 0 : index
    %24 = vector.load %arg19[%c0_22, %c0_23] : memref<16x32xbf16, #tpu.memory_space<vmem>>, vector<16x8xbf16>
    %c0_24 = arith.constant 0 : index
    %c0_25 = arith.constant 0 : index
    %25 = vector.load %arg20[%c0_24, %c0_25] : memref<16x32xbf16, #tpu.memory_space<vmem>>, vector<16x8xbf16>
    %c0_26 = arith.constant 0 : index
    %c0_27 = arith.constant 0 : index
    %26 = vector.load %arg21[%c0_26, %c0_27] : memref<16x32xbf16, #tpu.memory_space<vmem>>, vector<16x8xbf16>
    %cst_28 = arith.constant dense<0.000000e+00> : vector<16x16xf32>
    %27 = tpu.matmul %24, %25, %cst_28 {dimension_numbers = #tpu.dot_dimension_numbers<[1], [1], [0], [0], [0, 0, 1, 0], [], []>} : vector<16x8xbf16>, vector<16x8xbf16>, vector<16x16xf32> -> vector<16x16xf32>
    %cst_29 = arith.constant 0.176776692 : f32
    %28 = vector.broadcast %cst_29 : f32 to vector<16x16xf32>
    %29 = arith.mulf %27, %28 : vector<16x16xf32>
    %cst_30 = arith.constant dense<0xFF800000> : vector<16xf32>
    %30 = vector.multi_reduction <maximumf>, %29, %cst_30 [1] : vector<16x16xf32> to vector<16xf32>
    %31 = vector.shape_cast %30 : vector<16xf32> to vector<16x1xf32>
    %32 = vector.broadcast %31 : vector<16x1xf32> to vector<16x16xf32>
    %33 = arith.subf %29, %32 : vector<16x16xf32>
    %34 = math.exp %33 : vector<16x16xf32>
    %cst_31 = arith.constant dense<0.000000e+00> : vector<16xf32>
    %35 = vector.multi_reduction <add>, %34, %cst_31 [1] : vector<16x16xf32> to vector<16xf32>
    %36 = vector.shape_cast %35 : vector<16xf32> to vector<16x1xf32>
    %37 = tpu.reciprocal %36 {approx = true} : vector<16x1xf32> -> vector<16x1xf32>
    %38 = vector.broadcast %37 : vector<16x1xf32> to vector<16x16xf32>
    %39 = arith.mulf %34, %38 : vector<16x16xf32>
    %40 = arith.truncf %39 : vector<16x16xf32> to vector<16x16xbf16>
    %cst_32 = arith.constant dense<0.000000e+00> : vector<16x8xf32>
    %41 = tpu.matmul %40, %26, %cst_32 {dimension_numbers = #tpu.dot_dimension_numbers<[1], [0], [0], [1], [0, 0, 1, 1], [], []>} : vector<16x16xbf16>, vector<16x8xbf16>, vector<16x8xf32> -> vector<16x8xf32>
    %c0_33 = arith.constant 0 : index
    %c0_34 = arith.constant 0 : index
    %42 = vector.load %arg22[%c0_33, %c0_34] : memref<16x32xf32, #tpu.memory_space<vmem>>, vector<16x8xf32>
    tpu.vector_store %arg22[%c0_33, %c0_34], %41 {strides = array<i32>} : memref<16x32xf32, #tpu.memory_space<vmem>>, vector<16x8xf32>,
    %c0_35 = arith.constant 0 : index
    %c8 = arith.constant 8 : index
    %43 = vector.load %arg19[%c0_35, %c8] : memref<16x32xbf16, #tpu.memory_space<vmem>>, vector<16x8xbf16>
    %c0_36 = arith.constant 0 : index
    %c8_37 = arith.constant 8 : index
    %44 = vector.load %arg20[%c0_36, %c8_37] : memref<16x32xbf16, #tpu.memory_space<vmem>>, vector<16x8xbf16>
    %c0_38 = arith.constant 0 : index
    %c8_39 = arith.constant 8 : index
    %45 = vector.load %arg21[%c0_38, %c8_39] : memref<16x32xbf16, #tpu.memory_space<vmem>>, vector<16x8xbf16>
    %cst_40 = arith.constant dense<0.000000e+00> : vector<16x16xf32>
    %46 = tpu.matmul %43, %44, %cst_40 {dimension_numbers = #tpu.dot_dimension_numbers<[1], [1], [0], [0], [0, 0, 1, 0], [], []>} : vector<16x8xbf16>, vector<16x8xbf16>, vector<16x16xf32> -> vector<16x16xf32>
    %cst_41 = arith.constant 0.176776692 : f32
    %47 = vector.broadcast %cst_41 : f32 to vector<16x16xf32>
    %48 = arith.mulf %46, %47 : vector<16x16xf32>
    %cst_42 = arith.constant dense<0xFF800000> : vector<16xf32>
    %49 = vector.multi_reduction <maximumf>, %48, %cst_42 [1] : vector<16x16xf32> to vector<16xf32>
    %50 = vector.shape_cast %49 : vector<16xf32> to vector<16x1xf32>
    %51 = vector.broadcast %50 : vector<16x1xf32> to vector<16x16xf32>
    %52 = arith.subf %48, %51 : vector<16x16xf32>
    %53 = math.exp %52 : vector<16x16xf32>
    %cst_43 = arith.constant dense<0.000000e+00> : vector<16xf32>
    %54 = vector.multi_reduction <add>, %53, %cst_43 [1] : vector<16x16xf32> to vector<16xf32>
    %55 = vector.shape_cast %54 : vector<16xf32> to vector<16x1xf32>
    %56 = tpu.reciprocal %55 {approx = true} : vector<16x1xf32> -> vector<16x1xf32>
    %57 = vector.broadcast %56 : vector<16x1xf32> to vector<16x16xf32>
    %58 = arith.mulf %53, %57 : vector<16x16xf32>
    %59 = arith.truncf %58 : vector<16x16xf32> to vector<16x16xbf16>
    %cst_44 = arith.constant dense<0.000000e+00> : vector<16x8xf32>
    %60 = tpu.matmul %59, %45, %cst_44 {dimension_numbers = #tpu.dot_dimension_numbers<[1], [0], [0], [1], [0, 0, 1, 1], [], []>} : vector<16x16xbf16>, vector<16x8xbf16>, vector<16x8xf32> -> vector<16x8xf32>
    %c0_45 = arith.constant 0 : index
    %c8_46 = arith.constant 8 : index
    %61 = vector.load %arg22[%c0_45, %c8_46] : memref<16x32xf32, #tpu.memory_space<vmem>>, vector<16x8xf32>
    tpu.vector_store %arg22[%c0_45, %c8_46], %60 {strides = array<i32>} : memref<16x32xf32, #tpu.memory_space<vmem>>, vector<16x8xf32>,
    %c0_47 = arith.constant 0 : index
    %c16 = arith.constant 16 : index
    %62 = vector.load %arg19[%c0_47, %c16] : memref<16x32xbf16, #tpu.memory_space<vmem>>, vector<16x8xbf16>
    %c0_48 = arith.constant 0 : index
    %c16_49 = arith.constant 16 : index
    %63 = vector.load %arg20[%c0_48, %c16_49] : memref<16x32xbf16, #tpu.memory_space<vmem>>, vector<16x8xbf16>
    %c0_50 = arith.constant 0 : index
    %c16_51 = arith.constant 16 : index
    %64 = vector.load %arg21[%c0_50, %c16_51] : memref<16x32xbf16, #tpu.memory_space<vmem>>, vector<16x8xbf16>
    %cst_52 = arith.constant dense<0.000000e+00> : vector<16x16xf32>
    %65 = tpu.matmul %62, %63, %cst_52 {dimension_numbers = #tpu.dot_dimension_numbers<[1], [1], [0], [0], [0, 0, 1, 0], [], []>} : vector<16x8xbf16>, vector<16x8xbf16>, vector<16x16xf32> -> vector<16x16xf32>
    %cst_53 = arith.constant 0.176776692 : f32
    %66 = vector.broadcast %cst_53 : f32 to vector<16x16xf32>
    %67 = arith.mulf %65, %66 : vector<16x16xf32>
    %cst_54 = arith.constant dense<0xFF800000> : vector<16xf32>
    %68 = vector.multi_reduction <maximumf>, %67, %cst_54 [1] : vector<16x16xf32> to vector<16xf32>
    %69 = vector.shape_cast %68 : vector<16xf32> to vector<16x1xf32>
    %70 = vector.broadcast %69 : vector<16x1xf32> to vector<16x16xf32>
    %71 = arith.subf %67, %70 : vector<16x16xf32>
    %72 = math.exp %71 : vector<16x16xf32>
    %cst_55 = arith.constant dense<0.000000e+00> : vector<16xf32>
    %73 = vector.multi_reduction <add>, %72, %cst_55 [1] : vector<16x16xf32> to vector<16xf32>
    %74 = vector.shape_cast %73 : vector<16xf32> to vector<16x1xf32>
    %75 = tpu.reciprocal %74 {approx = true} : vector<16x1xf32> -> vector<16x1xf32>
    %76 = vector.broadcast %75 : vector<16x1xf32> to vector<16x16xf32>
    %77 = arith.mulf %72, %76 : vector<16x16xf32>
    %78 = arith.truncf %77 : vector<16x16xf32> to vector<16x16xbf16>
    %cst_56 = arith.constant dense<0.000000e+00> : vector<16x8xf32>
    %79 = tpu.matmul %78, %64, %cst_56 {dimension_numbers = #tpu.dot_dimension_numbers<[1], [0], [0], [1], [0, 0, 1, 1], [], []>} : vector<16x16xbf16>, vector<16x8xbf16>, vector<16x8xf32> -> vector<16x8xf32>
    %c0_57 = arith.constant 0 : index
    %c16_58 = arith.constant 16 : index
    %80 = vector.load %arg22[%c0_57, %c16_58] : memref<16x32xf32, #tpu.memory_space<vmem>>, vector<16x8xf32>
    tpu.vector_store %arg22[%c0_57, %c16_58], %79 {strides = array<i32>} : memref<16x32xf32, #tpu.memory_space<vmem>>, vector<16x8xf32>,
    %c0_59 = arith.constant 0 : index
    %c24 = arith.constant 24 : index
    %81 = vector.load %arg19[%c0_59, %c24] : memref<16x32xbf16, #tpu.memory_space<vmem>>, vector<16x8xbf16>
    %c0_60 = arith.constant 0 : index
    %c24_61 = arith.constant 24 : index
    %82 = vector.load %arg20[%c0_60, %c24_61] : memref<16x32xbf16, #tpu.memory_space<vmem>>, vector<16x8xbf16>
    %c0_62 = arith.constant 0 : index
    %c24_63 = arith.constant 24 : index
    %83 = vector.load %arg21[%c0_62, %c24_63] : memref<16x32xbf16, #tpu.memory_space<vmem>>, vector<16x8xbf16>
    %cst_64 = arith.constant dense<0.000000e+00> : vector<16x16xf32>
    %84 = tpu.matmul %81, %82, %cst_64 {dimension_numbers = #tpu.dot_dimension_numbers<[1], [1], [0], [0], [0, 0, 1, 0], [], []>} : vector<16x8xbf16>, vector<16x8xbf16>, vector<16x16xf32> -> vector<16x16xf32>
    %cst_65 = arith.constant 0.176776692 : f32
    %85 = vector.broadcast %cst_65 : f32 to vector<16x16xf32>
    %86 = arith.mulf %84, %85 : vector<16x16xf32>
    %cst_66 = arith.constant dense<0xFF800000> : vector<16xf32>
    %87 = vector.multi_reduction <maximumf>, %86, %cst_66 [1] : vector<16x16xf32> to vector<16xf32>
    %88 = vector.shape_cast %87 : vector<16xf32> to vector<16x1xf32>
    %89 = vector.broadcast %88 : vector<16x1xf32> to vector<16x16xf32>
    %90 = arith.subf %86, %89 : vector<16x16xf32>
    %91 = math.exp %90 : vector<16x16xf32>
    %cst_67 = arith.constant dense<0.000000e+00> : vector<16xf32>
    %92 = vector.multi_reduction <add>, %91, %cst_67 [1] : vector<16x16xf32> to vector<16xf32>
    %93 = vector.shape_cast %92 : vector<16xf32> to vector<16x1xf32>
    %94 = tpu.reciprocal %93 {approx = true} : vector<16x1xf32> -> vector<16x1xf32>
    %95 = vector.broadcast %94 : vector<16x1xf32> to vector<16x16xf32>
    %96 = arith.mulf %91, %95 : vector<16x16xf32>
    %97 = arith.truncf %96 : vector<16x16xf32> to vector<16x16xbf16>
    %cst_68 = arith.constant dense<0.000000e+00> : vector<16x8xf32>
    %98 = tpu.matmul %97, %83, %cst_68 {dimension_numbers = #tpu.dot_dimension_numbers<[1], [0], [0], [1], [0, 0, 1, 1], [], []>} : vector<16x16xbf16>, vector<16x8xbf16>, vector<16x8xf32> -> vector<16x8xf32>
    %c0_69 = arith.constant 0 : index
    %c24_70 = arith.constant 24 : index
    %99 = vector.load %arg22[%c0_69, %c24_70] : memref<16x32xf32, #tpu.memory_space<vmem>>, vector<16x8xf32>
    tpu.vector_store %arg22[%c0_69, %c24_70], %98 {strides = array<i32>} : memref<16x32xf32, #tpu.memory_space<vmem>>, vector<16x8xf32>,
    %c0_71 = arith.constant 0 : index
    %c0_72 = arith.constant 0 : index
    %100 = vector.load %arg22[%c0_71, %c0_72] : memref<16x32xf32, #tpu.memory_space<vmem>>, vector<16x32xf32>
    %101 = arith.truncf %100 : vector<16x32xf32> to vector<16x32xbf16>
    %c0_73 = arith.constant 0 : index
    %c0_74 = arith.constant 0 : index
    %102 = vector.load %arg8[%c0_73, %c0_74] : memref<32x32xbf16, #tpu.memory_space<vmem>>, vector<32x32xbf16>
    %cst_75 = arith.constant dense<0.000000e+00> : vector<16x32xf32>
    %103 = tpu.matmul %101, %102, %cst_75 {dimension_numbers = #tpu.dot_dimension_numbers<[1], [0], [0], [1], [0, 0, 1, 1], [], []>} : vector<16x32xbf16>, vector<32x32xbf16>, vector<16x32xf32> -> vector<16x32xf32>
    %c0_76 = arith.constant 0 : index
    %c0_77 = arith.constant 0 : index
    %104 = vector.load %arg9[%c0_76, %c0_77] : memref<1x32xf32, #tpu.memory_space<vmem>>, vector<1x32xf32>
    %105 = vector.broadcast %104 : vector<1x32xf32> to vector<16x32xf32>
    %106 = arith.addf %103, %105 : vector<16x32xf32>
    %107 = arith.addf %106, %1 : vector<16x32xf32>
    %cst_78 = arith.constant dense<0.000000e+00> : vector<16xf32>
    %108 = vector.multi_reduction <add>, %107, %cst_78 [1] : vector<16x32xf32> to vector<16xf32>
    %109 = vector.shape_cast %108 : vector<16xf32> to vector<16x1xf32>
    %cst_79 = arith.constant 3.200000e+01 : f32
    %110 = vector.broadcast %cst_79 : f32 to vector<16x1xf32>
    %111 = arith.divf %109, %110 : vector<16x1xf32>
    %112 = vector.broadcast %111 : vector<16x1xf32> to vector<16x32xf32>
    %113 = arith.subf %107, %112 : vector<16x32xf32>
    %114 = arith.mulf %113, %113 : vector<16x32xf32>
    %cst_80 = arith.constant dense<0.000000e+00> : vector<16xf32>
    %115 = vector.multi_reduction <add>, %114, %cst_80 [1] : vector<16x32xf32> to vector<16xf32>
    %116 = vector.shape_cast %115 : vector<16xf32> to vector<16x1xf32>
    %cst_81 = arith.constant 3.200000e+01 : f32
    %117 = vector.broadcast %cst_81 : f32 to vector<16x1xf32>
    %118 = arith.divf %116, %117 : vector<16x1xf32>
    %119 = vector.broadcast %111 : vector<16x1xf32> to vector<16x32xf32>
    %120 = arith.subf %107, %119 : vector<16x32xf32>
    %cst_82 = arith.constant 9.99999974E-6 : f32
    %121 = vector.broadcast %cst_82 : f32 to vector<16x1xf32>
    %122 = arith.addf %118, %121 : vector<16x1xf32>
    %123 = math.rsqrt %122 : vector<16x1xf32>
    %124 = vector.broadcast %123 : vector<16x1xf32> to vector<16x32xf32>
    %125 = arith.mulf %120, %124 : vector<16x32xf32>
    %c0_83 = arith.constant 0 : index
    %c0_84 = arith.constant 0 : index
    %126 = vector.load %arg10[%c0_83, %c0_84] : memref<1x32xf32, #tpu.memory_space<vmem>>, vector<1x32xf32>
    %127 = vector.broadcast %126 : vector<1x32xf32> to vector<16x32xf32>
    %128 = arith.mulf %125, %127 : vector<16x32xf32>
    %c0_85 = arith.constant 0 : index
    %c0_86 = arith.constant 0 : index
    %129 = vector.load %arg11[%c0_85, %c0_86] : memref<1x32xf32, #tpu.memory_space<vmem>>, vector<1x32xf32>
    %130 = vector.broadcast %129 : vector<1x32xf32> to vector<16x32xf32>
    %131 = arith.addf %128, %130 : vector<16x32xf32>
    %132 = arith.truncf %131 : vector<16x32xf32> to vector<16x32xbf16>
    %c0_87 = arith.constant 0 : index
    %c0_88 = arith.constant 0 : index
    %133 = vector.load %arg12[%c0_87, %c0_88] : memref<32x64xbf16, #tpu.memory_space<vmem>>, vector<32x64xbf16>
    %cst_89 = arith.constant dense<0.000000e+00> : vector<16x64xf32>
    %134 = tpu.matmul %132, %133, %cst_89 {dimension_numbers = #tpu.dot_dimension_numbers<[1], [0], [0], [1], [0, 0, 1, 1], [], []>} : vector<16x32xbf16>, vector<32x64xbf16>, vector<16x64xf32> -> vector<16x64xf32>
    %c0_90 = arith.constant 0 : index
    %c0_91 = arith.constant 0 : index
    %135 = vector.load %arg13[%c0_90, %c0_91] : memref<1x64xf32, #tpu.memory_space<vmem>>, vector<1x64xf32>
    %136 = vector.broadcast %135 : vector<1x64xf32> to vector<16x64xf32>
    %137 = arith.addf %134, %136 : vector<16x64xf32>
    %cst_92 = arith.constant 0.000000e+00 : f32
    %138 = vector.broadcast %cst_92 : f32 to vector<16x64xf32>
    %139 = arith.maximumf %137, %138 : vector<16x64xf32>
    %140 = arith.truncf %139 : vector<16x64xf32> to vector<16x64xbf16>
    %c0_93 = arith.constant 0 : index
    %c0_94 = arith.constant 0 : index
    %141 = vector.load %arg14[%c0_93, %c0_94] : memref<64x32xbf16, #tpu.memory_space<vmem>>, vector<64x32xbf16>
    %cst_95 = arith.constant dense<0.000000e+00> : vector<16x32xf32>
    %142 = tpu.matmul %140, %141, %cst_95 {dimension_numbers = #tpu.dot_dimension_numbers<[1], [0], [0], [1], [0, 0, 1, 1], [], []>} : vector<16x64xbf16>, vector<64x32xbf16>, vector<16x32xf32> -> vector<16x32xf32>
    %c0_96 = arith.constant 0 : index
    %c0_97 = arith.constant 0 : index
    %143 = vector.load %arg15[%c0_96, %c0_97] : memref<1x32xf32, #tpu.memory_space<vmem>>, vector<1x32xf32>
    %144 = vector.broadcast %143 : vector<1x32xf32> to vector<16x32xf32>
    %145 = arith.addf %142, %144 : vector<16x32xf32>
    %cst_98 = arith.constant 0.000000e+00 : f32
    %146 = vector.broadcast %cst_98 : f32 to vector<16x32xf32>
    %147 = arith.maximumf %145, %146 : vector<16x32xf32>
    %148 = arith.addf %147, %131 : vector<16x32xf32>
    %cst_99 = arith.constant dense<0.000000e+00> : vector<16xf32>
    %149 = vector.multi_reduction <add>, %148, %cst_99 [1] : vector<16x32xf32> to vector<16xf32>
    %150 = vector.shape_cast %149 : vector<16xf32> to vector<16x1xf32>
    %cst_100 = arith.constant 3.200000e+01 : f32
    %151 = vector.broadcast %cst_100 : f32 to vector<16x1xf32>
    %152 = arith.divf %150, %151 : vector<16x1xf32>
    %153 = vector.broadcast %152 : vector<16x1xf32> to vector<16x32xf32>
    %154 = arith.subf %148, %153 : vector<16x32xf32>
    %155 = arith.mulf %154, %154 : vector<16x32xf32>
    %cst_101 = arith.constant dense<0.000000e+00> : vector<16xf32>
    %156 = vector.multi_reduction <add>, %155, %cst_101 [1] : vector<16x32xf32> to vector<16xf32>
    %157 = vector.shape_cast %156 : vector<16xf32> to vector<16x1xf32>
    %cst_102 = arith.constant 3.200000e+01 : f32
    %158 = vector.broadcast %cst_102 : f32 to vector<16x1xf32>
    %159 = arith.divf %157, %158 : vector<16x1xf32>
    %160 = vector.broadcast %152 : vector<16x1xf32> to vector<16x32xf32>
    %161 = arith.subf %148, %160 : vector<16x32xf32>
    %cst_103 = arith.constant 9.99999974E-6 : f32
    %162 = vector.broadcast %cst_103 : f32 to vector<16x1xf32>
    %163 = arith.addf %159, %162 : vector<16x1xf32>
    %164 = math.rsqrt %163 : vector<16x1xf32>
    %165 = vector.broadcast %164 : vector<16x1xf32> to vector<16x32xf32>
    %166 = arith.mulf %161, %165 : vector<16x32xf32>
    %c0_104 = arith.constant 0 : index
    %c0_105 = arith.constant 0 : index
    %167 = vector.load %arg16[%c0_104, %c0_105] : memref<1x32xf32, #tpu.memory_space<vmem>>, vector<1x32xf32>
    %168 = vector.broadcast %167 : vector<1x32xf32> to vector<16x32xf32>
    %169 = arith.mulf %166, %168 : vector<16x32xf32>
    %c0_106 = arith.constant 0 : index
    %c0_107 = arith.constant 0 : index
    %170 = vector.load %arg17[%c0_106, %c0_107] : memref<1x32xf32, #tpu.memory_space<vmem>>, vector<1x32xf32>
    %171 = vector.broadcast %170 : vector<1x32xf32> to vector<16x32xf32>
    %172 = arith.addf %169, %171 : vector<16x32xf32>
    %c0_108 = arith.constant 0 : index
    %c0_109 = arith.constant 0 : index
    %c0_110 = arith.constant 0 : index
    %173 = vector.load %arg18[%c0_108, %c0_109, %c0_110] : memref<1x16x32xf32, #tpu.memory_space<vmem>>, vector<1x16x32xf32>
    %174 = vector.shape_cast %173 : vector<1x16x32xf32> to vector<16x32xf32>
    %175 = vector.shape_cast %172 : vector<16x32xf32> to vector<1x16x32xf32>
    tpu.vector_store %arg18[%c0_108, %c0_109, %c0_110], %175 {strides = array<i32>} : memref<1x16x32xf32, #tpu.memory_space<vmem>>, vector<1x16x32xf32>,
    return
  }
  func.func @transform_0(%arg0: i32) -> (i32, i32, i32) {
    %c0_i32 = arith.constant 0 : i32
    %c0_i32_0 = arith.constant 0 : i32
    %c0_i32_1 = arith.constant 0 : i32
    return %arg0, %c0_i32, %c0_i32_0 : i32, i32, i32
  }
  func.func @transform_1(%arg0: i32) -> (i32, i32) {
    %c0_i32 = arith.constant 0 : i32
    %c0_i32_0 = arith.constant 0 : i32
    %c0_i32_1 = arith.constant 0 : i32
    return %c0_i32, %c0_i32_0 : i32, i32
  }
  func.func @transform_2(%arg0: i32) -> (i32, i32) {
    %c0_i32 = arith.constant 0 : i32
    %c0_i32_0 = arith.constant 0 : i32
    %c0_i32_1 = arith.constant 0 : i32
    return %c0_i32, %c0_i32_0 : i32, i32
  }
  func.func @transform_3(%arg0: i32) -> (i32, i32) {
    %c0_i32 = arith.constant 0 : i32
    %c0_i32_0 = arith.constant 0 : i32
    %c0_i32_1 = arith.constant 0 : i32
    return %c0_i32, %c0_i32_0 : i32, i32
  }
  func.func @transform_4(%arg0: i32) -> (i32, i32) {
    %c0_i32 = arith.constant 0 : i32
    %c0_i32_0 = arith.constant 0 : i32
    %c0_i32_1 = arith.constant 0 : i32
    return %c0_i32, %c0_i32_0 : i32, i32
  }
  func.func @transform_5(%arg0: i32) -> (i32, i32) {
    %c0_i32 = arith.constant 0 : i32
    %c0_i32_0 = arith.constant 0 : i32
    %c0_i32_1 = arith.constant 0 : i32
    return %c0_i32, %c0_i32_0 : i32, i32
  }
  func.func @transform_6(%arg0: i32) -> (i32, i32) {
    %c0_i32 = arith.constant 0 : i32
    %c0_i32_0 = arith.constant 0 : i32
    %c0_i32_1 = arith.constant 0 : i32
    return %c0_i32, %c0_i32_0 : i32, i32
  }
  func.func @transform_7(%arg0: i32) -> (i32, i32) {
    %c0_i32 = arith.constant 0 : i32
    %c0_i32_0 = arith.constant 0 : i32
    %c0_i32_1 = arith.constant 0 : i32
    return %c0_i32, %c0_i32_0 : i32, i32
  }
  func.func @transform_8(%arg0: i32) -> (i32, i32) {
    %c0_i32 = arith.constant 0 : i32
    %c0_i32_0 = arith.constant 0 : i32
    %c0_i32_1 = arith.constant 0 : i32
    return %c0_i32, %c0_i32_0 : i32, i32
  }
  func.func @transform_9(%arg0: i32) -> (i32, i32) {
    %c0_i32 = arith.constant 0 : i32
    %c0_i32_0 = arith.constant 0 : i32
    %c0_i32_1 = arith.constant 0 : i32
    return %c0_i32, %c0_i32_0 : i32, i32
  }
  func.func @transform_10(%arg0: i32) -> (i32, i32) {
    %c0_i32 = arith.constant 0 : i32
    %c0_i32_0 = arith.constant 0 : i32
    %c0_i32_1 = arith.constant 0 : i32
    return %c0_i32, %c0_i32_0 : i32, i32
  }
  func.func @transform_11(%arg0: i32) -> (i32, i32) {
    %c0_i32 = arith.constant 0 : i32
    %c0_i32_0 = arith.constant 0 : i32
    %c0_i32_1 = arith.constant 0 : i32
    return %c0_i32, %c0_i32_0 : i32, i32
  }
  func.func @transform_12(%arg0: i32) -> (i32, i32) {
    %c0_i32 = arith.constant 0 : i32
    %c0_i32_0 = arith.constant 0 : i32
    %c0_i32_1 = arith.constant 0 : i32
    return %c0_i32, %c0_i32_0 : i32, i32
  }
  func.func @transform_13(%arg0: i32) -> (i32, i32) {
    %c0_i32 = arith.constant 0 : i32
    %c0_i32_0 = arith.constant 0 : i32
    %c0_i32_1 = arith.constant 0 : i32
    return %c0_i32, %c0_i32_0 : i32, i32
  }
  func.func @transform_14(%arg0: i32) -> (i32, i32) {
    %c0_i32 = arith.constant 0 : i32
    %c0_i32_0 = arith.constant 0 : i32
    %c0_i32_1 = arith.constant 0 : i32
    return %c0_i32, %c0_i32_0 : i32, i32
  }
  func.func @transform_15(%arg0: i32) -> (i32, i32) {
    %c0_i32 = arith.constant 0 : i32
    %c0_i32_0 = arith.constant 0 : i32
    %c0_i32_1 = arith.constant 0 : i32
    return %c0_i32, %c0_i32_0 : i32, i32
  }
  func.func @transform_16(%arg0: i32) -> (i32, i32) {
    %c0_i32 = arith.constant 0 : i32
    %c0_i32_0 = arith.constant 0 : i32
    %c0_i32_1 = arith.constant 0 : i32
    return %c0_i32, %c0_i32_0 : i32, i32
  }
  func.func @transform_17(%arg0: i32) -> (i32, i32, i32) {
    %c0_i32 = arith.constant 0 : i32
    %c0_i32_0 = arith.constant 0 : i32
    %c0_i32_1 = arith.constant 0 : i32
    return %arg0, %c0_i32, %c0_i32_0 : i32, i32, i32
  }
}

module attributes {stable_mosaic.version = 11 : i64} {
  func.func @_encoder_layer_kernel(%arg0: i32, %arg1: memref<1x16x32xf32, #tpu.memory_space<vmem>>, %arg2: memref<32x32xbf16, #tpu.memory_space<vmem>>, %arg3: memref<1x32xf32, #tpu.memory_space<vmem>>, %arg4: memref<32x32xbf16, #tpu.memory_space<vmem>>, %arg5: memref<1x32xf32, #tpu.memory_space<vmem>>, %arg6: memref<32x32xbf16, #tpu.memory_space<vmem>>, %arg7: memref<1x32xf32, #tpu.memory_space<vmem>>, %arg8: memref<32x32xbf16, #tpu.memory_space<vmem>>, %arg9: memref<1x32xf32, #tpu.memory_space<vmem>>, %arg10: memref<1x32xf32, #tpu.memory_space<vmem>>, %arg11: memref<1x32xf32, #tpu.memory_space<vmem>>, %arg12: memref<32x64xbf16, #tpu.memory_space<vmem>>, %arg13: memref<1x64xf32, #tpu.memory_space<vmem>>, %arg14: memref<64x32xbf16, #tpu.memory_space<vmem>>, %arg15: memref<1x32xf32, #tpu.memory_space<vmem>>, %arg16: memref<1x32xf32, #tpu.memory_space<vmem>>, %arg17: memref<1x32xf32, #tpu.memory_space<vmem>>, %arg18: memref<1x16x32xf32, #tpu.memory_space<vmem>>, %arg19: memref<16x32xbf16, #tpu.memory_space<vmem>>, %arg20: memref<16x32xbf16, #tpu.memory_space<vmem>>, %arg21: memref<16x32xbf16, #tpu.memory_space<vmem>>, %arg22: memref<16x32xf32, #tpu.memory_space<vmem>>) attributes {dimension_semantics = [#tpu.dimension_semantics<parallel>], iteration_bounds = array<i64: 2>, scalar_prefetch = 0 : i64, scratch_operands = 4 : i64, tpu.core_type = #tpu.core_type<tc>, window_params = [{transform_indices = @transform_0, window_bounds = array<i64: 1, 16, 32>}, {pipeline_mode = #tpu.pipeline_mode<synchronous>, transform_indices = @transform_1, window_bounds = array<i64: 32, 32>}, {pipeline_mode = #tpu.pipeline_mode<synchronous>, transform_indices = @transform_2, window_bounds = array<i64: 1, 32>}, {pipeline_mode = #tpu.pipeline_mode<synchronous>, transform_indices = @transform_3, window_bounds = array<i64: 32, 32>}, {pipeline_mode = #tpu.pipeline_mode<synchronous>, transform_indices = @transform_4, window_bounds = array<i64: 1, 32>}, {pipeline_mode = #tpu.pipeline_mode<synchronous>, transform_indices = @transform_5, window_bounds = array<i64: 32, 32>}, {pipeline_mode = #tpu.pipeline_mode<synchronous>, transform_indices = @transform_6, window_bounds = array<i64: 1, 32>}, {pipeline_mode = #tpu.pipeline_mode<synchronous>, transform_indices = @transform_7, window_bounds = array<i64: 32, 32>}, {pipeline_mode = #tpu.pipeline_mode<synchronous>, transform_indices = @transform_8, window_bounds = array<i64: 1, 32>}, {pipeline_mode = #tpu.pipeline_mode<synchronous>, transform_indices = @transform_9, window_bounds = array<i64: 1, 32>}, {pipeline_mode = #tpu.pipeline_mode<synchronous>, transform_indices = @transform_10, window_bounds = array<i64: 1, 32>}, {pipeline_mode = #tpu.pipeline_mode<synchronous>, transform_indices = @transform_11, window_bounds = array<i64: 32, 64>}, {pipeline_mode = #tpu.pipeline_mode<synchronous>, transform_indices = @transform_12, window_bounds = array<i64: 1, 64>}, {pipeline_mode = #tpu.pipeline_mode<synchronous>, transform_indices = @transform_13, window_bounds = array<i64: 64, 32>}, {pipeline_mode = #tpu.pipeline_mode<synchronous>, transform_indices = @transform_14, window_bounds = array<i64: 1, 32>}, {pipeline_mode = #tpu.pipeline_mode<synchronous>, transform_indices = @transform_15, window_bounds = array<i64: 1, 32>}, {pipeline_mode = #tpu.pipeline_mode<synchronous>, transform_indices = @transform_16, window_bounds = array<i64: 1, 32>}, {transform_indices = @transform_17, window_bounds = array<i64: 1, 16, 32>}]} {
    %c0 = arith.constant 0 : index
    %c0_0 = arith.constant 0 : index
    %c0_1 = arith.constant 0 : index
    %0 = vector.load %arg1[%c0, %c0_0, %c0_1] : memref<1x16x32xf32, #tpu.memory_space<vmem>>, vector<1x16x32xf32>
    %1 = vector.shape_cast %0 : vector<1x16x32xf32> to vector<16x32xf32>
    %2 = arith.truncf %1 : vector<16x32xf32> to vector<16x32xbf16>
    %c0_2 = arith.constant 0 : index
    %c0_3 = arith.constant 0 : index
    %3 = vector.load %arg2[%c0_2, %c0_3] : memref<32x32xbf16, #tpu.memory_space<vmem>>, vector<32x32xbf16>
    %cst = arith.constant dense<0.000000e+00> : vector<16x32xf32>
    %4 = tpu.matmul %2, %3, %cst {dimension_numbers = #tpu.dot_dimension_numbers<[1], [0], [0], [1], [0, 0, 1, 1], [], []>} : vector<16x32xbf16>, vector<32x32xbf16>, vector<16x32xf32> -> vector<16x32xf32>
    %c0_4 = arith.constant 0 : index
    %c0_5 = arith.constant 0 : index
    %5 = vector.load %arg3[%c0_4, %c0_5] : memref<1x32xf32, #tpu.memory_space<vmem>>, vector<1x32xf32>
    %6 = vector.broadcast %5 : vector<1x32xf32> to vector<16x32xf32>
    %7 = arith.addf %4, %6 : vector<16x32xf32>
    %8 = arith.truncf %7 : vector<16x32xf32> to vector<16x32xbf16>
    %c0_6 = arith.constant 0 : index
    %c0_7 = arith.constant 0 : index
    %9 = vector.load %arg19[%c0_6, %c0_7] : memref<16x32xbf16, #tpu.memory_space<vmem>>, vector<16x32xbf16>
    tpu.vector_store %arg19[%c0_6, %c0_7], %8 {strides = array<i32>} : memref<16x32xbf16, #tpu.memory_space<vmem>>, vector<16x32xbf16>,
    %c0_8 = arith.constant 0 : index
    %c0_9 = arith.constant 0 : index
    %10 = vector.load %arg4[%c0_8, %c0_9] : memref<32x32xbf16, #tpu.memory_space<vmem>>, vector<32x32xbf16>
    %cst_10 = arith.constant dense<0.000000e+00> : vector<16x32xf32>
    %11 = tpu.matmul %2, %10, %cst_10 {dimension_numbers = #tpu.dot_dimension_numbers<[1], [0], [0], [1], [0, 0, 1, 1], [], []>} : vector<16x32xbf16>, vector<32x32xbf16>, vector<16x32xf32> -> vector<16x32xf32>
    %c0_11 = arith.constant 0 : index
    %c0_12 = arith.constant 0 : index
    %12 = vector.load %arg5[%c0_11, %c0_12] : memref<1x32xf32, #tpu.memory_space<vmem>>, vector<1x32xf32>
    %13 = vector.broadcast %12 : vector<1x32xf32> to vector<16x32xf32>
    %14 = arith.addf %11, %13 : vector<16x32xf32>
    %15 = arith.truncf %14 : vector<16x32xf32> to vector<16x32xbf16>
    %c0_13 = arith.constant 0 : index
    %c0_14 = arith.constant 0 : index
    %16 = vector.load %arg20[%c0_13, %c0_14] : memref<16x32xbf16, #tpu.memory_space<vmem>>, vector<16x32xbf16>
    tpu.vector_store %arg20[%c0_13, %c0_14], %15 {strides = array<i32>} : memref<16x32xbf16, #tpu.memory_space<vmem>>, vector<16x32xbf16>,
    %c0_15 = arith.constant 0 : index
    %c0_16 = arith.constant 0 : index
    %17 = vector.load %arg6[%c0_15, %c0_16] : memref<32x32xbf16, #tpu.memory_space<vmem>>, vector<32x32xbf16>
    %cst_17 = arith.constant dense<0.000000e+00> : vector<16x32xf32>
    %18 = tpu.matmul %2, %17, %cst_17 {dimension_numbers = #tpu.dot_dimension_numbers<[1], [0], [0], [1], [0, 0, 1, 1], [], []>} : vector<16x32xbf16>, vector<32x32xbf16>, vector<16x32xf32> -> vector<16x32xf32>
    %c0_18 = arith.constant 0 : index
    %c0_19 = arith.constant 0 : index
    %19 = vector.load %arg7[%c0_18, %c0_19] : memref<1x32xf32, #tpu.memory_space<vmem>>, vector<1x32xf32>
    %20 = vector.broadcast %19 : vector<1x32xf32> to vector<16x32xf32>
    %21 = arith.addf %18, %20 : vector<16x32xf32>
    %22 = arith.truncf %21 : vector<16x32xf32> to vector<16x32xbf16>
    %c0_20 = arith.constant 0 : index
    %c0_21 = arith.constant 0 : index
    %23 = vector.load %arg21[%c0_20, %c0_21] : memref<16x32xbf16, #tpu.memory_space<vmem>>, vector<16x32xbf16>
    tpu.vector_store %arg21[%c0_20, %c0_21], %22 {strides = array<i32>} : memref<16x32xbf16, #tpu.memory_space<vmem>>, vector<16x32xbf16>,
    %c0_22 = arith.constant 0 : index
    %c0_23 = arith.constant 0 : index
    %24 = vector.load %arg19[%c0_22, %c0_23] : memref<16x32xbf16, #tpu.memory_space<vmem>>, vector<16x8xbf16>
    %c0_24 = arith.constant 0 : index
    %c0_25 = arith.constant 0 : index
    %25 = vector.load %arg20[%c0_24, %c0_25] : memref<16x32xbf16, #tpu.memory_space<vmem>>, vector<16x8xbf16>
    %c0_26 = arith.constant 0 : index
    %c0_27 = arith.constant 0 : index
    %26 = vector.load %arg21[%c0_26, %c0_27] : memref<16x32xbf16, #tpu.memory_space<vmem>>, vector<16x8xbf16>
    %cst_28 = arith.constant dense<0.000000e+00> : vector<16x16xf32>
    %27 = tpu.matmul %24, %25, %cst_28 {dimension_numbers = #tpu.dot_dimension_numbers<[1], [1], [0], [0], [0, 0, 1, 0], [], []>} : vector<16x8xbf16>, vector<16x8xbf16>, vector<16x16xf32> -> vector<16x16xf32>
    %cst_29 = arith.constant 0.176776692 : f32
    %28 = vector.broadcast %cst_29 : f32 to vector<16x16xf32>
    %29 = arith.mulf %27, %28 : vector<16x16xf32>
    %cst_30 = arith.constant dense<0xFF800000> : vector<16xf32>
    %30 = vector.multi_reduction <maximumf>, %29, %cst_30 [1] : vector<16x16xf32> to vector<16xf32>
    %31 = vector.shape_cast %30 : vector<16xf32> to vector<16x1xf32>
    %32 = vector.broadcast %31 : vector<16x1xf32> to vector<16x16xf32>
    %33 = arith.subf %29, %32 : vector<16x16xf32>
    %34 = math.exp %33 : vector<16x16xf32>
    %cst_31 = arith.constant dense<0.000000e+00> : vector<16xf32>
    %35 = vector.multi_reduction <add>, %34, %cst_31 [1] : vector<16x16xf32> to vector<16xf32>
    %36 = vector.shape_cast %35 : vector<16xf32> to vector<16x1xf32>
    %37 = tpu.reciprocal %36 {approx = true} : vector<16x1xf32> -> vector<16x1xf32>
    %38 = vector.broadcast %37 : vector<16x1xf32> to vector<16x16xf32>
    %39 = arith.mulf %34, %38 : vector<16x16xf32>
    %40 = arith.truncf %39 : vector<16x16xf32> to vector<16x16xbf16>
    %cst_32 = arith.constant dense<0.000000e+00> : vector<16x8xf32>
    %41 = tpu.matmul %40, %26, %cst_32 {dimension_numbers = #tpu.dot_dimension_numbers<[1], [0], [0], [1], [0, 0, 1, 1], [], []>} : vector<16x16xbf16>, vector<16x8xbf16>, vector<16x8xf32> -> vector<16x8xf32>
    %c0_33 = arith.constant 0 : index
    %c0_34 = arith.constant 0 : index
    %42 = vector.load %arg22[%c0_33, %c0_34] : memref<16x32xf32, #tpu.memory_space<vmem>>, vector<16x8xf32>
    tpu.vector_store %arg22[%c0_33, %c0_34], %41 {strides = array<i32>} : memref<16x32xf32, #tpu.memory_space<vmem>>, vector<16x8xf32>,
    %c0_35 = arith.constant 0 : index
    %c8 = arith.constant 8 : index
    %43 = vector.load %arg19[%c0_35, %c8] : memref<16x32xbf16, #tpu.memory_space<vmem>>, vector<16x8xbf16>
    %c0_36 = arith.constant 0 : index
    %c8_37 = arith.constant 8 : index
    %44 = vector.load %arg20[%c0_36, %c8_37] : memref<16x32xbf16, #tpu.memory_space<vmem>>, vector<16x8xbf16>
    %c0_38 = arith.constant 0 : index
    %c8_39 = arith.constant 8 : index
    %45 = vector.load %arg21[%c0_38, %c8_39] : memref<16x32xbf16, #tpu.memory_space<vmem>>, vector<16x8xbf16>
    %cst_40 = arith.constant dense<0.000000e+00> : vector<16x16xf32>
    %46 = tpu.matmul %43, %44, %cst_40 {dimension_numbers = #tpu.dot_dimension_numbers<[1], [1], [0], [0], [0, 0, 1, 0], [], []>} : vector<16x8xbf16>, vector<16x8xbf16>, vector<16x16xf32> -> vector<16x16xf32>
    %cst_41 = arith.constant 0.176776692 : f32
    %47 = vector.broadcast %cst_41 : f32 to vector<16x16xf32>
    %48 = arith.mulf %46, %47 : vector<16x16xf32>
    %cst_42 = arith.constant dense<0xFF800000> : vector<16xf32>
    %49 = vector.multi_reduction <maximumf>, %48, %cst_42 [1] : vector<16x16xf32> to vector<16xf32>
    %50 = vector.shape_cast %49 : vector<16xf32> to vector<16x1xf32>
    %51 = vector.broadcast %50 : vector<16x1xf32> to vector<16x16xf32>
    %52 = arith.subf %48, %51 : vector<16x16xf32>
    %53 = math.exp %52 : vector<16x16xf32>
    %cst_43 = arith.constant dense<0.000000e+00> : vector<16xf32>
    %54 = vector.multi_reduction <add>, %53, %cst_43 [1] : vector<16x16xf32> to vector<16xf32>
    %55 = vector.shape_cast %54 : vector<16xf32> to vector<16x1xf32>
    %56 = tpu.reciprocal %55 {approx = true} : vector<16x1xf32> -> vector<16x1xf32>
    %57 = vector.broadcast %56 : vector<16x1xf32> to vector<16x16xf32>
    %58 = arith.mulf %53, %57 : vector<16x16xf32>
    %59 = arith.truncf %58 : vector<16x16xf32> to vector<16x16xbf16>
    %cst_44 = arith.constant dense<0.000000e+00> : vector<16x8xf32>
    %60 = tpu.matmul %59, %45, %cst_44 {dimension_numbers = #tpu.dot_dimension_numbers<[1], [0], [0], [1], [0, 0, 1, 1], [], []>} : vector<16x16xbf16>, vector<16x8xbf16>, vector<16x8xf32> -> vector<16x8xf32>
    %c0_45 = arith.constant 0 : index
    %c8_46 = arith.constant 8 : index
    %61 = vector.load %arg22[%c0_45, %c8_46] : memref<16x32xf32, #tpu.memory_space<vmem>>, vector<16x8xf32>
    tpu.vector_store %arg22[%c0_45, %c8_46], %60 {strides = array<i32>} : memref<16x32xf32, #tpu.memory_space<vmem>>, vector<16x8xf32>,
    %c0_47 = arith.constant 0 : index
    %c16 = arith.constant 16 : index
    %62 = vector.load %arg19[%c0_47, %c16] : memref<16x32xbf16, #tpu.memory_space<vmem>>, vector<16x8xbf16>
    %c0_48 = arith.constant 0 : index
    %c16_49 = arith.constant 16 : index
    %63 = vector.load %arg20[%c0_48, %c16_49] : memref<16x32xbf16, #tpu.memory_space<vmem>>, vector<16x8xbf16>
    %c0_50 = arith.constant 0 : index
    %c16_51 = arith.constant 16 : index
    %64 = vector.load %arg21[%c0_50, %c16_51] : memref<16x32xbf16, #tpu.memory_space<vmem>>, vector<16x8xbf16>
    %cst_52 = arith.constant dense<0.000000e+00> : vector<16x16xf32>
    %65 = tpu.matmul %62, %63, %cst_52 {dimension_numbers = #tpu.dot_dimension_numbers<[1], [1], [0], [0], [0, 0, 1, 0], [], []>} : vector<16x8xbf16>, vector<16x8xbf16>, vector<16x16xf32> -> vector<16x16xf32>
    %cst_53 = arith.constant 0.176776692 : f32
    %66 = vector.broadcast %cst_53 : f32 to vector<16x16xf32>
    %67 = arith.mulf %65, %66 : vector<16x16xf32>
    %cst_54 = arith.constant dense<0xFF800000> : vector<16xf32>
    %68 = vector.multi_reduction <maximumf>, %67, %cst_54 [1] : vector<16x16xf32> to vector<16xf32>
    %69 = vector.shape_cast %68 : vector<16xf32> to vector<16x1xf32>
    %70 = vector.broadcast %69 : vector<16x1xf32> to vector<16x16xf32>
    %71 = arith.subf %67, %70 : vector<16x16xf32>
    %72 = math.exp %71 : vector<16x16xf32>
    %cst_55 = arith.constant dense<0.000000e+00> : vector<16xf32>
    %73 = vector.multi_reduction <add>, %72, %cst_55 [1] : vector<16x16xf32> to vector<16xf32>
    %74 = vector.shape_cast %73 : vector<16xf32> to vector<16x1xf32>
    %75 = tpu.reciprocal %74 {approx = true} : vector<16x1xf32> -> vector<16x1xf32>
    %76 = vector.broadcast %75 : vector<16x1xf32> to vector<16x16xf32>
    %77 = arith.mulf %72, %76 : vector<16x16xf32>
    %78 = arith.truncf %77 : vector<16x16xf32> to vector<16x16xbf16>
    %cst_56 = arith.constant dense<0.000000e+00> : vector<16x8xf32>
    %79 = tpu.matmul %78, %64, %cst_56 {dimension_numbers = #tpu.dot_dimension_numbers<[1], [0], [0], [1], [0, 0, 1, 1], [], []>} : vector<16x16xbf16>, vector<16x8xbf16>, vector<16x8xf32> -> vector<16x8xf32>
    %c0_57 = arith.constant 0 : index
    %c16_58 = arith.constant 16 : index
    %80 = vector.load %arg22[%c0_57, %c16_58] : memref<16x32xf32, #tpu.memory_space<vmem>>, vector<16x8xf32>
    tpu.vector_store %arg22[%c0_57, %c16_58], %79 {strides = array<i32>} : memref<16x32xf32, #tpu.memory_space<vmem>>, vector<16x8xf32>,
    %c0_59 = arith.constant 0 : index
    %c24 = arith.constant 24 : index
    %81 = vector.load %arg19[%c0_59, %c24] : memref<16x32xbf16, #tpu.memory_space<vmem>>, vector<16x8xbf16>
    %c0_60 = arith.constant 0 : index
    %c24_61 = arith.constant 24 : index
    %82 = vector.load %arg20[%c0_60, %c24_61] : memref<16x32xbf16, #tpu.memory_space<vmem>>, vector<16x8xbf16>
    %c0_62 = arith.constant 0 : index
    %c24_63 = arith.constant 24 : index
    %83 = vector.load %arg21[%c0_62, %c24_63] : memref<16x32xbf16, #tpu.memory_space<vmem>>, vector<16x8xbf16>
    %cst_64 = arith.constant dense<0.000000e+00> : vector<16x16xf32>
    %84 = tpu.matmul %81, %82, %cst_64 {dimension_numbers = #tpu.dot_dimension_numbers<[1], [1], [0], [0], [0, 0, 1, 0], [], []>} : vector<16x8xbf16>, vector<16x8xbf16>, vector<16x16xf32> -> vector<16x16xf32>
    %cst_65 = arith.constant 0.176776692 : f32
    %85 = vector.broadcast %cst_65 : f32 to vector<16x16xf32>
    %86 = arith.mulf %84, %85 : vector<16x16xf32>
    %cst_66 = arith.constant dense<0xFF800000> : vector<16xf32>
    %87 = vector.multi_reduction <maximumf>, %86, %cst_66 [1] : vector<16x16xf32> to vector<16xf32>
    %88 = vector.shape_cast %87 : vector<16xf32> to vector<16x1xf32>
    %89 = vector.broadcast %88 : vector<16x1xf32> to vector<16x16xf32>
    %90 = arith.subf %86, %89 : vector<16x16xf32>
    %91 = math.exp %90 : vector<16x16xf32>
    %cst_67 = arith.constant dense<0.000000e+00> : vector<16xf32>
    %92 = vector.multi_reduction <add>, %91, %cst_67 [1] : vector<16x16xf32> to vector<16xf32>
    %93 = vector.shape_cast %92 : vector<16xf32> to vector<16x1xf32>
    %94 = tpu.reciprocal %93 {approx = true} : vector<16x1xf32> -> vector<16x1xf32>
    %95 = vector.broadcast %94 : vector<16x1xf32> to vector<16x16xf32>
    %96 = arith.mulf %91, %95 : vector<16x16xf32>
    %97 = arith.truncf %96 : vector<16x16xf32> to vector<16x16xbf16>
    %cst_68 = arith.constant dense<0.000000e+00> : vector<16x8xf32>
    %98 = tpu.matmul %97, %83, %cst_68 {dimension_numbers = #tpu.dot_dimension_numbers<[1], [0], [0], [1], [0, 0, 1, 1], [], []>} : vector<16x16xbf16>, vector<16x8xbf16>, vector<16x8xf32> -> vector<16x8xf32>
    %c0_69 = arith.constant 0 : index
    %c24_70 = arith.constant 24 : index
    %99 = vector.load %arg22[%c0_69, %c24_70] : memref<16x32xf32, #tpu.memory_space<vmem>>, vector<16x8xf32>
    tpu.vector_store %arg22[%c0_69, %c24_70], %98 {strides = array<i32>} : memref<16x32xf32, #tpu.memory_space<vmem>>, vector<16x8xf32>,
    %c0_71 = arith.constant 0 : index
    %c0_72 = arith.constant 0 : index
    %100 = vector.load %arg22[%c0_71, %c0_72] : memref<16x32xf32, #tpu.memory_space<vmem>>, vector<16x32xf32>
    %101 = arith.truncf %100 : vector<16x32xf32> to vector<16x32xbf16>
    %c0_73 = arith.constant 0 : index
    %c0_74 = arith.constant 0 : index
    %102 = vector.load %arg8[%c0_73, %c0_74] : memref<32x32xbf16, #tpu.memory_space<vmem>>, vector<32x32xbf16>
    %cst_75 = arith.constant dense<0.000000e+00> : vector<16x32xf32>
    %103 = tpu.matmul %101, %102, %cst_75 {dimension_numbers = #tpu.dot_dimension_numbers<[1], [0], [0], [1], [0, 0, 1, 1], [], []>} : vector<16x32xbf16>, vector<32x32xbf16>, vector<16x32xf32> -> vector<16x32xf32>
    %c0_76 = arith.constant 0 : index
    %c0_77 = arith.constant 0 : index
    %104 = vector.load %arg9[%c0_76, %c0_77] : memref<1x32xf32, #tpu.memory_space<vmem>>, vector<1x32xf32>
    %105 = vector.broadcast %104 : vector<1x32xf32> to vector<16x32xf32>
    %106 = arith.addf %103, %105 : vector<16x32xf32>
    %107 = arith.addf %106, %1 : vector<16x32xf32>
    %cst_78 = arith.constant dense<0.000000e+00> : vector<16xf32>
    %108 = vector.multi_reduction <add>, %107, %cst_78 [1] : vector<16x32xf32> to vector<16xf32>
    %109 = vector.shape_cast %108 : vector<16xf32> to vector<16x1xf32>
    %cst_79 = arith.constant 3.200000e+01 : f32
    %110 = vector.broadcast %cst_79 : f32 to vector<16x1xf32>
    %111 = arith.divf %109, %110 : vector<16x1xf32>
    %112 = vector.broadcast %111 : vector<16x1xf32> to vector<16x32xf32>
    %113 = arith.subf %107, %112 : vector<16x32xf32>
    %114 = arith.mulf %113, %113 : vector<16x32xf32>
    %cst_80 = arith.constant dense<0.000000e+00> : vector<16xf32>
    %115 = vector.multi_reduction <add>, %114, %cst_80 [1] : vector<16x32xf32> to vector<16xf32>
    %116 = vector.shape_cast %115 : vector<16xf32> to vector<16x1xf32>
    %cst_81 = arith.constant 3.200000e+01 : f32
    %117 = vector.broadcast %cst_81 : f32 to vector<16x1xf32>
    %118 = arith.divf %116, %117 : vector<16x1xf32>
    %119 = vector.broadcast %111 : vector<16x1xf32> to vector<16x32xf32>
    %120 = arith.subf %107, %119 : vector<16x32xf32>
    %cst_82 = arith.constant 9.99999974E-6 : f32
    %121 = vector.broadcast %cst_82 : f32 to vector<16x1xf32>
    %122 = arith.addf %118, %121 : vector<16x1xf32>
    %123 = math.rsqrt %122 : vector<16x1xf32>
    %124 = vector.broadcast %123 : vector<16x1xf32> to vector<16x32xf32>
    %125 = arith.mulf %120, %124 : vector<16x32xf32>
    %c0_83 = arith.constant 0 : index
    %c0_84 = arith.constant 0 : index
    %126 = vector.load %arg10[%c0_83, %c0_84] : memref<1x32xf32, #tpu.memory_space<vmem>>, vector<1x32xf32>
    %127 = vector.broadcast %126 : vector<1x32xf32> to vector<16x32xf32>
    %128 = arith.mulf %125, %127 : vector<16x32xf32>
    %c0_85 = arith.constant 0 : index
    %c0_86 = arith.constant 0 : index
    %129 = vector.load %arg11[%c0_85, %c0_86] : memref<1x32xf32, #tpu.memory_space<vmem>>, vector<1x32xf32>
    %130 = vector.broadcast %129 : vector<1x32xf32> to vector<16x32xf32>
    %131 = arith.addf %128, %130 : vector<16x32xf32>
    %132 = arith.truncf %131 : vector<16x32xf32> to vector<16x32xbf16>
    %c0_87 = arith.constant 0 : index
    %c0_88 = arith.constant 0 : index
    %133 = vector.load %arg12[%c0_87, %c0_88] : memref<32x64xbf16, #tpu.memory_space<vmem>>, vector<32x64xbf16>
    %cst_89 = arith.constant dense<0.000000e+00> : vector<16x64xf32>
    %134 = tpu.matmul %132, %133, %cst_89 {dimension_numbers = #tpu.dot_dimension_numbers<[1], [0], [0], [1], [0, 0, 1, 1], [], []>} : vector<16x32xbf16>, vector<32x64xbf16>, vector<16x64xf32> -> vector<16x64xf32>
    %c0_90 = arith.constant 0 : index
    %c0_91 = arith.constant 0 : index
    %135 = vector.load %arg13[%c0_90, %c0_91] : memref<1x64xf32, #tpu.memory_space<vmem>>, vector<1x64xf32>
    %136 = vector.broadcast %135 : vector<1x64xf32> to vector<16x64xf32>
    %137 = arith.addf %134, %136 : vector<16x64xf32>
    %cst_92 = arith.constant 0.000000e+00 : f32
    %138 = vector.broadcast %cst_92 : f32 to vector<16x64xf32>
    %139 = arith.maximumf %137, %138 : vector<16x64xf32>
    %140 = arith.truncf %139 : vector<16x64xf32> to vector<16x64xbf16>
    %c0_93 = arith.constant 0 : index
    %c0_94 = arith.constant 0 : index
    %141 = vector.load %arg14[%c0_93, %c0_94] : memref<64x32xbf16, #tpu.memory_space<vmem>>, vector<64x32xbf16>
    %cst_95 = arith.constant dense<0.000000e+00> : vector<16x32xf32>
    %142 = tpu.matmul %140, %141, %cst_95 {dimension_numbers = #tpu.dot_dimension_numbers<[1], [0], [0], [1], [0, 0, 1, 1], [], []>} : vector<16x64xbf16>, vector<64x32xbf16>, vector<16x32xf32> -> vector<16x32xf32>
    %c0_96 = arith.constant 0 : index
    %c0_97 = arith.constant 0 : index
    %143 = vector.load %arg15[%c0_96, %c0_97] : memref<1x32xf32, #tpu.memory_space<vmem>>, vector<1x32xf32>
    %144 = vector.broadcast %143 : vector<1x32xf32> to vector<16x32xf32>
    %145 = arith.addf %142, %144 : vector<16x32xf32>
    %cst_98 = arith.constant 0.000000e+00 : f32
    %146 = vector.broadcast %cst_98 : f32 to vector<16x32xf32>
    %147 = arith.maximumf %145, %146 : vector<16x32xf32>
    %148 = arith.addf %147, %131 : vector<16x32xf32>
    %cst_99 = arith.constant dense<0.000000e+00> : vector<16xf32>
    %149 = vector.multi_reduction <add>, %148, %cst_99 [1] : vector<16x32xf32> to vector<16xf32>
    %150 = vector.shape_cast %149 : vector<16xf32> to vector<16x1xf32>
    %cst_100 = arith.constant 3.200000e+01 : f32
    %151 = vector.broadcast %cst_100 : f32 to vector<16x1xf32>
    %152 = arith.divf %150, %151 : vector<16x1xf32>
    %153 = vector.broadcast %152 : vector<16x1xf32> to vector<16x32xf32>
    %154 = arith.subf %148, %153 : vector<16x32xf32>
    %155 = arith.mulf %154, %154 : vector<16x32xf32>
    %cst_101 = arith.constant dense<0.000000e+00> : vector<16xf32>
    %156 = vector.multi_reduction <add>, %155, %cst_101 [1] : vector<16x32xf32> to vector<16xf32>
    %157 = vector.shape_cast %156 : vector<16xf32> to vector<16x1xf32>
    %cst_102 = arith.constant 3.200000e+01 : f32
    %158 = vector.broadcast %cst_102 : f32 to vector<16x1xf32>
    %159 = arith.divf %157, %158 : vector<16x1xf32>
    %160 = vector.broadcast %152 : vector<16x1xf32> to vector<16x32xf32>
    %161 = arith.subf %148, %160 : vector<16x32xf32>
    %cst_103 = arith.constant 9.99999974E-6 : f32
    %162 = vector.broadcast %cst_103 : f32 to vector<16x1xf32>
    %163 = arith.addf %159, %162 : vector<16x1xf32>
    %164 = math.rsqrt %163 : vector<16x1xf32>
    %165 = vector.broadcast %164 : vector<16x1xf32> to vector<16x32xf32>
    %166 = arith.mulf %161, %165 : vector<16x32xf32>
    %c0_104 = arith.constant 0 : index
    %c0_105 = arith.constant 0 : index
    %167 = vector.load %arg16[%c0_104, %c0_105] : memref<1x32xf32, #tpu.memory_space<vmem>>, vector<1x32xf32>
    %168 = vector.broadcast %167 : vector<1x32xf32> to vector<16x32xf32>
    %169 = arith.mulf %166, %168 : vector<16x32xf32>
    %c0_106 = arith.constant 0 : index
    %c0_107 = arith.constant 0 : index
    %170 = vector.load %arg17[%c0_106, %c0_107] : memref<1x32xf32, #tpu.memory_space<vmem>>, vector<1x32xf32>
    %171 = vector.broadcast %170 : vector<1x32xf32> to vector<16x32xf32>
    %172 = arith.addf %169, %171 : vector<16x32xf32>
    %c0_108 = arith.constant 0 : index
    %c0_109 = arith.constant 0 : index
    %c0_110 = arith.constant 0 : index
    %173 = vector.load %arg18[%c0_108, %c0_109, %c0_110] : memref<1x16x32xf32, #tpu.memory_space<vmem>>, vector<1x16x32xf32>
    %174 = vector.shape_cast %173 : vector<1x16x32xf32> to vector<16x32xf32>
    %175 = vector.shape_cast %172 : vector<16x32xf32> to vector<1x16x32xf32>
    tpu.vector_store %arg18[%c0_108, %c0_109, %c0_110], %175 {strides = array<i32>} : memref<1x16x32xf32, #tpu.memory_space<vmem>>, vector<1x16x32xf32>,
    return
  }
  func.func @transform_0(%arg0: i32) -> (i32, i32, i32) {
    %c0_i32 = arith.constant 0 : i32
    %c0_i32_0 = arith.constant 0 : i32
    %c0_i32_1 = arith.constant 0 : i32
    return %arg0, %c0_i32, %c0_i32_0 : i32, i32, i32
  }
  func.func @transform_1(%arg0: i32) -> (i32, i32) {
    %c0_i32 = arith.constant 0 : i32
    %c0_i32_0 = arith.constant 0 : i32
    %c0_i32_1 = arith.constant 0 : i32
    return %c0_i32, %c0_i32_0 : i32, i32
  }
  func.func @transform_2(%arg0: i32) -> (i32, i32) {
    %c0_i32 = arith.constant 0 : i32
    %c0_i32_0 = arith.constant 0 : i32
    %c0_i32_1 = arith.constant 0 : i32
    return %c0_i32, %c0_i32_0 : i32, i32
  }
  func.func @transform_3(%arg0: i32) -> (i32, i32) {
    %c0_i32 = arith.constant 0 : i32
    %c0_i32_0 = arith.constant 0 : i32
    %c0_i32_1 = arith.constant 0 : i32
    return %c0_i32, %c0_i32_0 : i32, i32
  }
  func.func @transform_4(%arg0: i32) -> (i32, i32) {
    %c0_i32 = arith.constant 0 : i32
    %c0_i32_0 = arith.constant 0 : i32
    %c0_i32_1 = arith.constant 0 : i32
    return %c0_i32, %c0_i32_0 : i32, i32
  }
  func.func @transform_5(%arg0: i32) -> (i32, i32) {
    %c0_i32 = arith.constant 0 : i32
    %c0_i32_0 = arith.constant 0 : i32
    %c0_i32_1 = arith.constant 0 : i32
    return %c0_i32, %c0_i32_0 : i32, i32
  }
  func.func @transform_6(%arg0: i32) -> (i32, i32) {
    %c0_i32 = arith.constant 0 : i32
    %c0_i32_0 = arith.constant 0 : i32
    %c0_i32_1 = arith.constant 0 : i32
    return %c0_i32, %c0_i32_0 : i32, i32
  }
  func.func @transform_7(%arg0: i32) -> (i32, i32) {
    %c0_i32 = arith.constant 0 : i32
    %c0_i32_0 = arith.constant 0 : i32
    %c0_i32_1 = arith.constant 0 : i32
    return %c0_i32, %c0_i32_0 : i32, i32
  }
  func.func @transform_8(%arg0: i32) -> (i32, i32) {
    %c0_i32 = arith.constant 0 : i32
    %c0_i32_0 = arith.constant 0 : i32
    %c0_i32_1 = arith.constant 0 : i32
    return %c0_i32, %c0_i32_0 : i32, i32
  }
  func.func @transform_9(%arg0: i32) -> (i32, i32) {
    %c0_i32 = arith.constant 0 : i32
    %c0_i32_0 = arith.constant 0 : i32
    %c0_i32_1 = arith.constant 0 : i32
    return %c0_i32, %c0_i32_0 : i32, i32
  }
  func.func @transform_10(%arg0: i32) -> (i32, i32) {
    %c0_i32 = arith.constant 0 : i32
    %c0_i32_0 = arith.constant 0 : i32
    %c0_i32_1 = arith.constant 0 : i32
    return %c0_i32, %c0_i32_0 : i32, i32
  }
  func.func @transform_11(%arg0: i32) -> (i32, i32) {
    %c0_i32 = arith.constant 0 : i32
    %c0_i32_0 = arith.constant 0 : i32
    %c0_i32_1 = arith.constant 0 : i32
    return %c0_i32, %c0_i32_0 : i32, i32
  }
  func.func @transform_12(%arg0: i32) -> (i32, i32) {
    %c0_i32 = arith.constant 0 : i32
    %c0_i32_0 = arith.constant 0 : i32
    %c0_i32_1 = arith.constant 0 : i32
    return %c0_i32, %c0_i32_0 : i32, i32
  }
  func.func @transform_13(%arg0: i32) -> (i32, i32) {
    %c0_i32 = arith.constant 0 : i32
    %c0_i32_0 = arith.constant 0 : i32
    %c0_i32_1 = arith.constant 0 : i32
    return %c0_i32, %c0_i32_0 : i32, i32
  }
  func.func @transform_14(%arg0: i32) -> (i32, i32) {
    %c0_i32 = arith.constant 0 : i32
    %c0_i32_0 = arith.constant 0 : i32
    %c0_i32_1 = arith.constant 0 : i32
    return %c0_i32, %c0_i32_0 : i32, i32
  }
  func.func @transform_15(%arg0: i32) -> (i32, i32) {
    %c0_i32 = arith.constant 0 : i32
    %c0_i32_0 = arith.constant 0 : i32
    %c0_i32_1 = arith.constant 0 : i32
    return %c0_i32, %c0_i32_0 : i32, i32
  }
  func.func @transform_16(%arg0: i32) -> (i32, i32) {
    %c0_i32 = arith.constant 0 : i32
    %c0_i32_0 = arith.constant 0 : i32
    %c0_i32_1 = arith.constant 0 : i32
    return %c0_i32, %c0_i32_0 : i32, i32
  }
  func.func @transform_17(%arg0: i32) -> (i32, i32, i32) {
    %c0_i32 = arith.constant 0 : i32
    %c0_i32_0 = arith.constant 0 : i32
    %c0_i32_1 = arith.constant 0 : i32
    return %arg0, %c0_i32, %c0_i32_0 : i32, i32, i32
  }
}

</mosaic_0001>

<llo_original>
// kernel: transformer_encoder_2d_forward.2
$region0: #{transformer_encoder_2d_forward.2}
  #allocation0 [shape = 'u32[]', space=smem, size = 0x4, offset = 0x4, fixed_abs, tag = 'smem constant byte address 0x4 - core index']
  #allocation1 [shape = 'u32[144,128]{1,0:T(1,128)}', space=vmem, size = 0x12000, scoped, tag = 'internal scratch']
  #allocation2 [shape = 'bf16[16,32]{1,0:T(16,128)(2,1)}', space=vmem, size = 0x1000, scoped, tag = 'scratch operand']
  #allocation3 [shape = 'bf16[16,32]{1,0:T(16,128)(2,1)}', space=vmem, size = 0x1000, scoped, tag = 'scratch operand']
  #allocation4 [shape = 'bf16[16,32]{1,0:T(16,128)(2,1)}', space=vmem, size = 0x1000, scoped, tag = 'scratch operand']
  #allocation5 [shape = 'f32[16,32]{1,0:T(8,128)}', space=vmem, size = 0x2000, scoped, tag = 'scratch operand']
  %s0 = inlined_call_operand.vmem [shape: f32[2,16,32], index: 0, kind: input, shape index: {}]
  %s1 = inlined_call_operand.vmem [shape: bf16[32,32], index: 1, kind: input, shape index: {}]
  %s2 = inlined_call_operand.vmem [shape: f32[1,32], index: 2, kind: input, shape index: {}]
  %s3 = inlined_call_operand.vmem [shape: bf16[32,32], index: 3, kind: input, shape index: {}]
  %s4 = inlined_call_operand.vmem [shape: f32[1,32], index: 4, kind: input, shape index: {}]
  %s5 = inlined_call_operand.vmem [shape: bf16[32,32], index: 5, kind: input, shape index: {}]
  %s6 = inlined_call_operand.vmem [shape: f32[1,32], index: 6, kind: input, shape index: {}]
  %s7 = inlined_call_operand.vmem [shape: bf16[32,32], index: 7, kind: input, shape index: {}]
  %s8 = inlined_call_operand.vmem [shape: f32[1,32], index: 8, kind: input, shape index: {}]
  %s9 = inlined_call_operand.vmem [shape: f32[1,32], index: 9, kind: input, shape index: {}]
  %s10 = inlined_call_operand.vmem [shape: f32[1,32], index: 10, kind: input, shape index: {}]
  %s11 = inlined_call_operand.vmem [shape: bf16[32,64], index: 11, kind: input, shape index: {}]
  %s12 = inlined_call_operand.vmem [shape: f32[1,64], index: 12, kind: input, shape index: {}]
  %s13 = inlined_call_operand.vmem [shape: bf16[64,32], index: 13, kind: input, shape index: {}]
  %s14 = inlined_call_operand.vmem [shape: f32[1,32], index: 14, kind: input, shape index: {}]
  %s15 = inlined_call_operand.vmem [shape: f32[1,32], index: 15, kind: input, shape index: {}]
  %s16 = inlined_call_operand.vmem [shape: f32[1,32], index: 16, kind: input, shape index: {}]
  %s17 = inlined_call_operand.vmem [shape: f32[2,16,32], index: 17, kind: output, shape index: {}]
  %s18 = sld [smem:[#allocation0]]
  $region101: #{transformer_encoder_2d_forward.2} parent=0
    _
  %s20 = ssub.s32 1, %s18
  %s21 = scalar_select 0, %s20, %s18
  loop: start=0, step=1, limit=4
  $region2: #{transformer_encoder_2d_forward.2} parent=0 // loop_pre_header
    _
  $region3: #{transformer_encoder_2d_forward.2} parent=0 // loop_header
    %s23 = sphi 0, %s27
    %p24 = scmp.ge.s32.totalorder %s23, 4
    %s33 = sphi 0, %s35
    %s36 = sphi 0, %s33
    %s37 = sphi 0, %s36
    %s53 = sphi 0, %s37
    %s57 = sphi 0, %s57
    %s59 = sphi 0, %s57
    %s60 = sphi 0, %s59
    %s74 = sphi 0, %s60
    %s78 = sphi 0, %s78
    %s80 = sphi 0, %s78
    %s81 = sphi 0, %s80
    %s95 = sphi 0, %s81
    %s99 = sphi 0, %s99
    %s101 = sphi 0, %s99
    %s102 = sphi 0, %s101
    %s116 = sphi 0, %s102
    %s120 = sphi 0, %s120
    %s122 = sphi 0, %s120
    %s123 = sphi 0, %s122
    %s137 = sphi 0, %s123
    %s141 = sphi 0, %s141
    %s143 = sphi 0, %s141
    %s144 = sphi 0, %s143
    %s158 = sphi 0, %s144
    %s162 = sphi 0, %s162
    %s164 = sphi 0, %s162
    %s165 = sphi 0, %s164
    %s179 = sphi 0, %s165
    %s183 = sphi 0, %s183
    %s185 = sphi 0, %s183
    %s186 = sphi 0, %s185
    %s200 = sphi 0, %s186
    %s204 = sphi 0, %s204
    %s206 = sphi 0, %s204
    %s207 = sphi 0, %s206
    %s221 = sphi 0, %s207
    %s225 = sphi 0, %s225
    %s227 = sphi 0, %s225
    %s228 = sphi 0, %s227
    %s242 = sphi 0, %s228
    %s246 = sphi 0, %s246
    %s248 = sphi 0, %s246
    %s249 = sphi 0, %s248
    %s263 = sphi 0, %s249
    %s267 = sphi 0, %s267
    %s269 = sphi 0, %s267
    %s270 = sphi 0, %s269
    %s284 = sphi 0, %s270
    %s288 = sphi 0, %s288
    %s290 = sphi 0, %s288
    %s291 = sphi 0, %s290
    %s305 = sphi 0, %s291
    %s309 = sphi 0, %s309
    %s311 = sphi 0, %s309
    %s312 = sphi 0, %s311
    %s326 = sphi 0, %s312
    %s330 = sphi 0, %s330
    %s332 = sphi 0, %s330
    %s333 = sphi 0, %s332
    %s347 = sphi 0, %s333
    %s351 = sphi 0, %s351
    %s353 = sphi 0, %s351
    %s354 = sphi 0, %s353
    %s368 = sphi 0, %s354
    %s372 = sphi 0, %s372
    %s374 = sphi 0, %s372
    %s375 = sphi 0, %s374
    %s389 = sphi 0, %s375
    %s395 = sphi 0, %s397
    %s398 = sphi 0, %s395
    %s399 = sphi 0, %s398
    %s415 = sphi 0, %s399
  $region4: #{transformer_encoder_2d_forward.2} parent=0 // loop_header_branch
    %26 = sbr.rel (%p24) target = $region8
  $region5: #{transformer_encoder_2d_forward.2} parent=0 // loop_body
    %s28 = ssub.s32 %s23, 1
    %s29 = ssub.s32 %s23, 2
    %s30 = sadd.s32 %s23, 1
    %s31 = ssub.s32 %s23, %s30
    %p32 = scmp.eq.s32.totalorder %s31, 0
    %s34 = sadd.s32 %s33, 1
    %s35 = scalar_select %p32, %s33, %s34
    %p38 = pneg %p32
    %p39 = scmp.eq.s32.totalorder %s23, 1
    %p40 = por %p38, %p39
    %p41 = scmp.ne.s32.totalorder %s33, %s36
    %p42 = scmp.eq.s32.totalorder %s23, 0
    %p43 = por %p41, %p42
    %p44 = scmp.ne.s32.totalorder %s33, %s36
    %p45 = scmp.eq.s32.totalorder %s28, 1
    %p46 = por %p44, %p45
    %p47 = scmp.ne.s32.totalorder %s36, %s37
    %p48 = scmp.eq.s32.totalorder %s28, 0
    %p49 = por %p47, %p48
    %p50 = scmp.ne.s32.totalorder %s36, %s37
    %p51 = scmp.eq.s32.totalorder %s29, 1
    %p52 = por %p50, %p51
    %p54 = scmp.ne.s32.totalorder %s37, %s53
    %p55 = scmp.eq.s32.totalorder %s29, 0
    %p56 = por %p54, %p55
    %s58 = sadd.s32 %s57, 1
    %p61 = scmp.eq.s32.totalorder %s23, 1
    %p62 = scmp.ne.s32.totalorder %s57, %s59
    %p63 = scmp.eq.s32.totalorder %s23, 0
    %p64 = por %p62, %p63
    %p65 = scmp.ne.s32.totalorder %s57, %s59
    %p66 = scmp.eq.s32.totalorder %s28, 1
    %p67 = por %p65, %p66
    %p68 = scmp.ne.s32.totalorder %s59, %s60
    %p69 = scmp.eq.s32.totalorder %s28, 0
    %p70 = por %p68, %p69
    %p71 = scmp.ne.s32.totalorder %s59, %s60
    %p72 = scmp.eq.s32.totalorder %s29, 1
    %p73 = por %p71, %p72
    %p75 = scmp.ne.s32.totalorder %s60, %s74
    %p76 = scmp.eq.s32.totalorder %s29, 0
    %p77 = por %p75, %p76
    %s79 = sadd.s32 %s78, 1
    %p82 = scmp.eq.s32.totalorder %s23, 1
    %p83 = scmp.ne.s32.totalorder %s78, %s80
    %p84 = scmp.eq.s32.totalorder %s23, 0
    %p85 = por %p83, %p84
    %p86 = scmp.ne.s32.totalorder %s78, %s80
    %p87 = scmp.eq.s32.totalorder %s28, 1
    %p88 = por %p86, %p87
    %p89 = scmp.ne.s32.totalorder %s80, %s81
    %p90 = scmp.eq.s32.totalorder %s28, 0
    %p91 = por %p89, %p90
    %p92 = scmp.ne.s32.totalorder %s80, %s81
    %p93 = scmp.eq.s32.totalorder %s29, 1
    %p94 = por %p92, %p93
    %p96 = scmp.ne.s32.totalorder %s81, %s95
    %p97 = scmp.eq.s32.totalorder %s29, 0
    %p98 = por %p96, %p97
    %s100 = sadd.s32 %s99, 1
    %p103 = scmp.eq.s32.totalorder %s23, 1
    %p104 = scmp.ne.s32.totalorder %s99, %s101
    %p105 = scmp.eq.s32.totalorder %s23, 0
    %p106 = por %p104, %p105
    %p107 = scmp.ne.s32.totalorder %s99, %s101
    %p108 = scmp.eq.s32.totalorder %s28, 1
    %p109 = por %p107, %p108
    %p110 = scmp.ne.s32.totalorder %s101, %s102
    %p111 = scmp.eq.s32.totalorder %s28, 0
    %p112 = por %p110, %p111
    %p113 = scmp.ne.s32.totalorder %s101, %s102
    %p114 = scmp.eq.s32.totalorder %s29, 1
    %p115 = por %p113, %p114
    %p117 = scmp.ne.s32.totalorder %s102, %s116
    %p118 = scmp.eq.s32.totalorder %s29, 0
    %p119 = por %p117, %p118
    %s121 = sadd.s32 %s120, 1
    %p124 = scmp.eq.s32.totalorder %s23, 1
    %p125 = scmp.ne.s32.totalorder %s120, %s122
    %p126 = scmp.eq.s32.totalorder %s23, 0
    %p127 = por %p125, %p126
    %p128 = scmp.ne.s32.totalorder %s120, %s122
    %p129 = scmp.eq.s32.totalorder %s28, 1
    %p130 = por %p128, %p129
    %p131 = scmp.ne.s32.totalorder %s122, %s123
    %p132 = scmp.eq.s32.totalorder %s28, 0
    %p133 = por %p131, %p132
    %p134 = scmp.ne.s32.totalorder %s122, %s123
    %p135 = scmp.eq.s32.totalorder %s29, 1
    %p136 = por %p134, %p135
    %p138 = scmp.ne.s32.totalorder %s123, %s137
    %p139 = scmp.eq.s32.totalorder %s29, 0
    %p140 = por %p138, %p139
    %s142 = sadd.s32 %s141, 1
    %p145 = scmp.eq.s32.totalorder %s23, 1
    %p146 = scmp.ne.s32.totalorder %s141, %s143
    %p147 = scmp.eq.s32.totalorder %s23, 0
    %p148 = por %p146, %p147
    %p149 = scmp.ne.s32.totalorder %s141, %s143
    %p150 = scmp.eq.s32.totalorder %s28, 1
    %p151 = por %p149, %p150
    %p152 = scmp.ne.s32.totalorder %s143, %s144
    %p153 = scmp.eq.s32.totalorder %s28, 0
    %p154 = por %p152, %p153
    %p155 = scmp.ne.s32.totalorder %s143, %s144
    %p156 = scmp.eq.s32.totalorder %s29, 1
    %p157 = por %p155, %p156
    %p159 = scmp.ne.s32.totalorder %s144, %s158
    %p160 = scmp.eq.s32.totalorder %s29, 0
    %p161 = por %p159, %p160
    %s163 = sadd.s32 %s162, 1
    %p166 = scmp.eq.s32.totalorder %s23, 1
    %p167 = scmp.ne.s32.totalorder %s162, %s164
    %p168 = scmp.eq.s32.totalorder %s23, 0
    %p169 = por %p167, %p168
    %p170 = scmp.ne.s32.totalorder %s162, %s164
    %p171 = scmp.eq.s32.totalorder %s28, 1
    %p172 = por %p170, %p171
    %p173 = scmp.ne.s32.totalorder %s164, %s165
    %p174 = scmp.eq.s32.totalorder %s28, 0
    %p175 = por %p173, %p174
    %p176 = scmp.ne.s32.totalorder %s164, %s165
    %p177 = scmp.eq.s32.totalorder %s29, 1
    %p178 = por %p176, %p177
    %p180 = scmp.ne.s32.totalorder %s165, %s179
    %p181 = scmp.eq.s32.totalorder %s29, 0
    %p182 = por %p180, %p181
    %s184 = sadd.s32 %s183, 1
    %p187 = scmp.eq.s32.totalorder %s23, 1
    %p188 = scmp.ne.s32.totalorder %s183, %s185
    %p189 = scmp.eq.s32.totalorder %s23, 0
    %p190 = por %p188, %p189
    %p191 = scmp.ne.s32.totalorder %s183, %s185
    %p192 = scmp.eq.s32.totalorder %s28, 1
    %p193 = por %p191, %p192
    %p194 = scmp.ne.s32.totalorder %s185, %s186
    %p195 = scmp.eq.s32.totalorder %s28, 0
    %p196 = por %p194, %p195
    %p197 = scmp.ne.s32.totalorder %s185, %s186
    %p198 = scmp.eq.s32.totalorder %s29, 1
    %p199 = por %p197, %p198
    %p201 = scmp.ne.s32.totalorder %s186, %s200
    %p202 = scmp.eq.s32.totalorder %s29, 0
    %p203 = por %p201, %p202
    %s205 = sadd.s32 %s204, 1
    %p208 = scmp.eq.s32.totalorder %s23, 1
    %p209 = scmp.ne.s32.totalorder %s204, %s206
    %p210 = scmp.eq.s32.totalorder %s23, 0
    %p211 = por %p209, %p210
    %p212 = scmp.ne.s32.totalorder %s204, %s206
    %p213 = scmp.eq.s32.totalorder %s28, 1
    %p214 = por %p212, %p213
    %p215 = scmp.ne.s32.totalorder %s206, %s207
    %p216 = scmp.eq.s32.totalorder %s28, 0
    %p217 = por %p215, %p216
    %p218 = scmp.ne.s32.totalorder %s206, %s207
    %p219 = scmp.eq.s32.totalorder %s29, 1
    %p220 = por %p218, %p219
    %p222 = scmp.ne.s32.totalorder %s207, %s221
    %p223 = scmp.eq.s32.totalorder %s29, 0
    %p224 = por %p222, %p223
    %s226 = sadd.s32 %s225, 1
    %p229 = scmp.eq.s32.totalorder %s23, 1
    %p230 = scmp.ne.s32.totalorder %s225, %s227
    %p231 = scmp.eq.s32.totalorder %s23, 0
    %p232 = por %p230, %p231
    %p233 = scmp.ne.s32.totalorder %s225, %s227
    %p234 = scmp.eq.s32.totalorder %s28, 1
    %p235 = por %p233, %p234
    %p236 = scmp.ne.s32.totalorder %s227, %s228
    %p237 = scmp.eq.s32.totalorder %s28, 0
    %p238 = por %p236, %p237
    %p239 = scmp.ne.s32.totalorder %s227, %s228
    %p240 = scmp.eq.s32.totalorder %s29, 1
    %p241 = por %p239, %p240
    %p243 = scmp.ne.s32.totalorder %s228, %s242
    %p244 = scmp.eq.s32.totalorder %s29, 0
    %p245 = por %p243, %p244
    %s247 = sadd.s32 %s246, 1
    %p250 = scmp.eq.s32.totalorder %s23, 1
    %p251 = scmp.ne.s32.totalorder %s246, %s248
    %p252 = scmp.eq.s32.totalorder %s23, 0
    %p253 = por %p251, %p252
    %p254 = scmp.ne.s32.totalorder %s246, %s248
    %p255 = scmp.eq.s32.totalorder %s28, 1
    %p256 = por %p254, %p255
    %p257 = scmp.ne.s32.totalorder %s248, %s249
    %p258 = scmp.eq.s32.totalorder %s28, 0
    %p259 = por %p257, %p258
    %p260 = scmp.ne.s32.totalorder %s248, %s249
    %p261 = scmp.eq.s32.totalorder %s29, 1
    %p262 = por %p260, %p261
    %p264 = scmp.ne.s32.totalorder %s249, %s263
    %p265 = scmp.eq.s32.totalorder %s29, 0
    %p266 = por %p264, %p265
    %s268 = sadd.s32 %s267, 1
    %p271 = scmp.eq.s32.totalorder %s23, 1
    %p272 = scmp.ne.s32.totalorder %s267, %s269
    %p273 = scmp.eq.s32.totalorder %s23, 0
    %p274 = por %p272, %p273
    %p275 = scmp.ne.s32.totalorder %s267, %s269
    %p276 = scmp.eq.s32.totalorder %s28, 1
    %p277 = por %p275, %p276
    %p278 = scmp.ne.s32.totalorder %s269, %s270
    %p279 = scmp.eq.s32.totalorder %s28, 0
    %p280 = por %p278, %p279
    %p281 = scmp.ne.s32.totalorder %s269, %s270
    %p282 = scmp.eq.s32.totalorder %s29, 1
    %p283 = por %p281, %p282
    %p285 = scmp.ne.s32.totalorder %s270, %s284
    %p286 = scmp.eq.s32.totalorder %s29, 0
    %p287 = por %p285, %p286
    %s289 = sadd.s32 %s288, 1
    %p292 = scmp.eq.s32.totalorder %s23, 1
    %p293 = scmp.ne.s32.totalorder %s288, %s290
    %p294 = scmp.eq.s32.totalorder %s23, 0
    %p295 = por %p293, %p294
    %p296 = scmp.ne.s32.totalorder %s288, %s290
    %p297 = scmp.eq.s32.totalorder %s28, 1
    %p298 = por %p296, %p297
    %p299 = scmp.ne.s32.totalorder %s290, %s291
    %p300 = scmp.eq.s32.totalorder %s28, 0
    %p301 = por %p299, %p300
    %p302 = scmp.ne.s32.totalorder %s290, %s291
    %p303 = scmp.eq.s32.totalorder %s29, 1
    %p304 = por %p302, %p303
    %p306 = scmp.ne.s32.totalorder %s291, %s305
    %p307 = scmp.eq.s32.totalorder %s29, 0
    %p308 = por %p306, %p307
    %s310 = sadd.s32 %s309, 1
    %p313 = scmp.eq.s32.totalorder %s23, 1
    %p314 = scmp.ne.s32.totalorder %s309, %s311
    %p315 = scmp.eq.s32.totalorder %s23, 0
    %p316 = por %p314, %p315
    %p317 = scmp.ne.s32.totalorder %s309, %s311
    %p318 = scmp.eq.s32.totalorder %s28, 1
    %p319 = por %p317, %p318
    %p320 = scmp.ne.s32.totalorder %s311, %s312
    %p321 = scmp.eq.s32.totalorder %s28, 0
    %p322 = por %p320, %p321
    %p323 = scmp.ne.s32.totalorder %s311, %s312
    %p324 = scmp.eq.s32.totalorder %s29, 1
    %p325 = por %p323, %p324
    %p327 = scmp.ne.s32.totalorder %s312, %s326
    %p328 = scmp.eq.s32.totalorder %s29, 0
    %p329 = por %p327, %p328
    %s331 = sadd.s32 %s330, 1
    %p334 = scmp.eq.s32.totalorder %s23, 1
    %p335 = scmp.ne.s32.totalorder %s330, %s332
    %p336 = scmp.eq.s32.totalorder %s23, 0
    %p337 = por %p335, %p336
    %p338 = scmp.ne.s32.totalorder %s330, %s332
    %p339 = scmp.eq.s32.totalorder %s28, 1
    %p340 = por %p338, %p339
    %p341 = scmp.ne.s32.totalorder %s332, %s333
    %p342 = scmp.eq.s32.totalorder %s28, 0
    %p343 = por %p341, %p342
    %p344 = scmp.ne.s32.totalorder %s332, %s333
    %p345 = scmp.eq.s32.totalorder %s29, 1
    %p346 = por %p344, %p345
    %p348 = scmp.ne.s32.totalorder %s333, %s347
    %p349 = scmp.eq.s32.totalorder %s29, 0
    %p350 = por %p348, %p349
    %s352 = sadd.s32 %s351, 1
    %p355 = scmp.eq.s32.totalorder %s23, 1
    %p356 = scmp.ne.s32.totalorder %s351, %s353
    %p357 = scmp.eq.s32.totalorder %s23, 0
    %p358 = por %p356, %p357
    %p359 = scmp.ne.s32.totalorder %s351, %s353
    %p360 = scmp.eq.s32.totalorder %s28, 1
    %p361 = por %p359, %p360
    %p362 = scmp.ne.s32.totalorder %s353, %s354
    %p363 = scmp.eq.s32.totalorder %s28, 0
    %p364 = por %p362, %p363
    %p365 = scmp.ne.s32.totalorder %s353, %s354
    %p366 = scmp.eq.s32.totalorder %s29, 1
    %p367 = por %p365, %p366
    %p369 = scmp.ne.s32.totalorder %s354, %s368
    %p370 = scmp.eq.s32.totalorder %s29, 0
    %p371 = por %p369, %p370
    %s373 = sadd.s32 %s372, 1
    %p376 = scmp.eq.s32.totalorder %s23, 1
    %p377 = scmp.ne.s32.totalorder %s372, %s374
    %p378 = scmp.eq.s32.totalorder %s23, 0
    %p379 = por %p377, %p378
    %p380 = scmp.ne.s32.totalorder %s372, %s374
    %p381 = scmp.eq.s32.totalorder %s28, 1
    %p382 = por %p380, %p381
    %p383 = scmp.ne.s32.totalorder %s374, %s375
    %p384 = scmp.eq.s32.totalorder %s28, 0
    %p385 = por %p383, %p384
    %p386 = scmp.ne.s32.totalorder %s374, %s375
    %p387 = scmp.eq.s32.totalorder %s29, 1
    %p388 = por %p386, %p387
    %p390 = scmp.ne.s32.totalorder %s375, %s389
    %p391 = scmp.eq.s32.totalorder %s29, 0
    %p392 = por %p390, %p391
    %s393 = ssub.s32 %s23, %s30
    %p394 = scmp.eq.s32.totalorder %s393, 0
    %s396 = sadd.s32 %s395, 1
    %s397 = scalar_select %p394, %s395, %s396
    %p400 = pneg %p394
    %p401 = scmp.eq.s32.totalorder %s23, 1
    %p402 = por %p400, %p401
    %p403 = scmp.ne.s32.totalorder %s395, %s398
    %p404 = scmp.eq.s32.totalorder %s23, 0
    %p405 = por %p403, %p404
    %p406 = scmp.ne.s32.totalorder %s395, %s398
    %p407 = scmp.eq.s32.totalorder %s28, 1
    %p408 = por %p406, %p407
    %p409 = scmp.ne.s32.totalorder %s398, %s399
    %p410 = scmp.eq.s32.totalorder %s28, 0
    %p411 = por %p409, %p410
    %p412 = scmp.ne.s32.totalorder %s398, %s399
    %p413 = scmp.eq.s32.totalorder %s29, 1
    %p414 = por %p412, %p413
    %p416 = scmp.ne.s32.totalorder %s399, %s415
    %p417 = scmp.eq.s32.totalorder %s29, 0
    %p418 = por %p416, %p417
    %p419 = scmp.le.s32.totalorder 1, %s23
    %p420 = scmp.lt.s32.totalorder %s23, 3
    %p421 = pnand %p419, %p420
    %p422 = pneg %p421
    // Predicated region
    $region9: #{transformer_encoder_2d_forward.2} parent=5 // pred_check
      _
    $region10: #{transformer_encoder_2d_forward.2} parent=5 // pred_check_branch
      %424 = sbr.rel (%p421) target = $region12
    $region11: #{transformer_encoder_2d_forward.2} parent=5 // pred_region
      %s425 = ssub.s32 %s23, 1
      // Predicated region
      $region13: #{transformer_encoder_2d_forward.2} parent=11 // pred_check
        %p426 = pneg %p70
      $region14: #{transformer_encoder_2d_forward.2} parent=11 // pred_check_branch
        %428 = sbr.rel (%p426) target = $region16
      $region15: #{transformer_encoder_2d_forward.2} parent=11 // pred_region
        _
      $region16: #{transformer_encoder_2d_forward.2} parent=11 // pred_fallthru
        _
      // Predicated region
      $region17: #{transformer_encoder_2d_forward.2} parent=11 // pred_check
        %p429 = pneg %p91
      $region18: #{transformer_encoder_2d_forward.2} parent=11 // pred_check_branch
        %431 = sbr.rel (%p429) target = $region20
      $region19: #{transformer_encoder_2d_forward.2} parent=11 // pred_region
        _
      $region20: #{transformer_encoder_2d_forward.2} parent=11 // pred_fallthru
        _
      // Predicated region
      $region21: #{transformer_encoder_2d_forward.2} parent=11 // pred_check
        %p432 = pneg %p112
      $region22: #{transformer_encoder_2d_forward.2} parent=11 // pred_check_branch
        %434 = sbr.rel (%p432) target = $region24
      $region23: #{transformer_encoder_2d_forward.2} parent=11 // pred_region
        _
      $region24: #{transformer_encoder_2d_forward.2} parent=11 // pred_fallthru
        _
      // Predicated region
      $region25: #{transformer_encoder_2d_forward.2} parent=11 // pred_check
        %p435 = pneg %p133
      $region26: #{transformer_encoder_2d_forward.2} parent=11 // pred_check_branch
        %437 = sbr.rel (%p435) target = $region28
      $region27: #{transformer_encoder_2d_forward.2} parent=11 // pred_region
        _
      $region28: #{transformer_encoder_2d_forward.2} parent=11 // pred_fallthru
        _
      // Predicated region
      $region29: #{transformer_encoder_2d_forward.2} parent=11 // pred_check
        %p438 = pneg %p154
      $region30: #{transformer_encoder_2d_forward.2} parent=11 // pred_check_branch
        %440 = sbr.rel (%p438) target = $region32
      $region31: #{transformer_encoder_2d_forward.2} parent=11 // pred_region
        _
      $region32: #{transformer_encoder_2d_forward.2} parent=11 // pred_fallthru
        _
      // Predicated region
      $region33: #{transformer_encoder_2d_forward.2} parent=11 // pred_check
        %p441 = pneg %p175
      $region34: #{transformer_encoder_2d_forward.2} parent=11 // pred_check_branch
        %443 = sbr.rel (%p441) target = $region36
      $region35: #{transformer_encoder_2d_forward.2} parent=11 // pred_region
        _
      $region36: #{transformer_encoder_2d_forward.2} parent=11 // pred_fallthru
        _
      // Predicated region
      $region37: #{transformer_encoder_2d_forward.2} parent=11 // pred_check
        %p444 = pneg %p196
      $region38: #{transformer_encoder_2d_forward.2} parent=11 // pred_check_branch
        %446 = sbr.rel (%p444) target = $region40
      $region39: #{transformer_encoder_2d_forward.2} parent=11 // pred_region
        _
      $region40: #{transformer_encoder_2d_forward.2} parent=11 // pred_fallthru
        _
      // Predicated region
      $region41: #{transformer_encoder_2d_forward.2} parent=11 // pred_check
        %p447 = pneg %p217
      $region42: #{transformer_encoder_2d_forward.2} parent=11 // pred_check_branch
        %449 = sbr.rel (%p447) target = $region44
      $region43: #{transformer_encoder_2d_forward.2} parent=11 // pred_region
        _
      $region44: #{transformer_encoder_2d_forward.2} parent=11 // pred_fallthru
        _
      // Predicated region
      $region45: #{transformer_encoder_2d_forward.2} parent=11 // pred_check
        %p450 = pneg %p238
      $region46: #{transformer_encoder_2d_forward.2} parent=11 // pred_check_branch
        %452 = sbr.rel (%p450) target = $region48
      $region47: #{transformer_encoder_2d_forward.2} parent=11 // pred_region
        _
      $region48: #{transformer_encoder_2d_forward.2} parent=11 // pred_fallthru
        _
      // Predicated region
      $region49: #{transformer_encoder_2d_forward.2} parent=11 // pred_check
        %p453 = pneg %p259
      $region50: #{transformer_encoder_2d_forward.2} parent=11 // pred_check_branch
        %455 = sbr.rel (%p453) target = $region52
      $region51: #{transformer_encoder_2d_forward.2} parent=11 // pred_region
        _
      $region52: #{transformer_encoder_2d_forward.2} parent=11 // pred_fallthru
        _
      // Predicated region
      $region53: #{transformer_encoder_2d_forward.2} parent=11 // pred_check
        %p456 = pneg %p280
      $region54: #{transformer_encoder_2d_forward.2} parent=11 // pred_check_branch
        %458 = sbr.rel (%p456) target = $region56
      $region55: #{transformer_encoder_2d_forward.2} parent=11 // pred_region
        _
      $region56: #{transformer_encoder_2d_forward.2} parent=11 // pred_fallthru
        _
      // Predicated region
      $region57: #{transformer_encoder_2d_forward.2} parent=11 // pred_check
        %p459 = pneg %p301
      $region58: #{transformer_encoder_2d_forward.2} parent=11 // pred_check_branch
        %461 = sbr.rel (%p459) target = $region60
      $region59: #{transformer_encoder_2d_forward.2} parent=11 // pred_region
        _
      $region60: #{transformer_encoder_2d_forward.2} parent=11 // pred_fallthru
        _
      // Predicated region
      $region61: #{transformer_encoder_2d_forward.2} parent=11 // pred_check
        %p462 = pneg %p322
      $region62: #{transformer_encoder_2d_forward.2} parent=11 // pred_check_branch
        %464 = sbr.rel (%p462) target = $region64
      $region63: #{transformer_encoder_2d_forward.2} parent=11 // pred_region
        _
      $region64: #{transformer_encoder_2d_forward.2} parent=11 // pred_fallthru
        _
      // Predicated region
      $region65: #{transformer_encoder_2d_forward.2} parent=11 // pred_check
        %p465 = pneg %p343
      $region66: #{transformer_encoder_2d_forward.2} parent=11 // pred_check_branch
        %467 = sbr.rel (%p465) target = $region68
      $region67: #{transformer_encoder_2d_forward.2} parent=11 // pred_region
        _
      $region68: #{transformer_encoder_2d_forward.2} parent=11 // pred_fallthru
        _
      // Predicated region
      $region69: #{transformer_encoder_2d_forward.2} parent=11 // pred_check
        %p468 = pneg %p364
      $region70: #{transformer_encoder_2d_forward.2} parent=11 // pred_check_branch
        %470 = sbr.rel (%p468) target = $region72
      $region71: #{transformer_encoder_2d_forward.2} parent=11 // pred_region
        _
      $region72: #{transformer_encoder_2d_forward.2} parent=11 // pred_fallthru
        _
      // Predicated region
      $region73: #{transformer_encoder_2d_forward.2} parent=11 // pred_check
        %p471 = pneg %p385
      $region74: #{transformer_encoder_2d_forward.2} parent=11 // pred_check_branch
        %473 = sbr.rel (%p471) target = $region76
      $region75: #{transformer_encoder_2d_forward.2} parent=11 // pred_region
        _
      $region76: #{transformer_encoder_2d_forward.2} parent=11 // pred_fallthru
        _
    $region12: #{transformer_encoder_2d_forward.2} parent=5 // pred_fallthru
      _
    %p474 = scmp.lt.s32.totalorder %s23, 2
    // Predicated region
    $region77: #{transformer_encoder_2d_forward.2} parent=5 // pred_check
      %p475 = pneg %p474
    $region78: #{transformer_encoder_2d_forward.2} parent=5 // pred_check_branch
      %477 = sbr.rel (%p475) target = $region80
    $region79: #{transformer_encoder_2d_forward.2} parent=5 // pred_region
      // Predicated region
      $region81: #{transformer_encoder_2d_forward.2} parent=79 // pred_check
        %p478 = pneg %p43
      $region82: #{transformer_encoder_2d_forward.2} parent=79 // pred_check_branch
        %480 = sbr.rel (%p478) target = $region84
      $region83: #{transformer_encoder_2d_forward.2} parent=79 // pred_region
        %p481 = scmp.lt.s32.totalorder %s23, 1
        %s482 = scalar_select %p481, %s23, 1
        %s483 = smul.addr %s482, 2
        %s484 = smul.addr %s483, 8
        %s485 = scalar_lea.vmem %s0, %s484
      $region84: #{transformer_encoder_2d_forward.2} parent=79 // pred_fallthru
        _
    $region80: #{transformer_encoder_2d_forward.2} parent=5 // pred_fallthru
      _
    %p486 = scmp.le.s32.totalorder 1, %s23
    %p487 = scmp.lt.s32.totalorder %s23, 3
    %p488 = pnand %p486, %p487
    %p489 = pneg %p488
    // Predicated region
    $region85: #{transformer_encoder_2d_forward.2} parent=5 // pred_check
      _
    $region86: #{transformer_encoder_2d_forward.2} parent=5 // pred_check_branch
      %491 = sbr.rel (%p488) target = $region88
    $region87: #{transformer_encoder_2d_forward.2} parent=5 // pred_region
      %s492 = ssub.s32 %s23, 1
      %p493 = scmp.lt.s32.totalorder %s28, 1
      %s494 = scalar_select %p493, %s28, 1
      %s495 = smul.addr %s494, 2
      %s496 = smul.addr %s495, 8
      %s497 = scalar_lea.vmem %s0, %s496
      %p498 = pneg %p49
      %p499 = pneg %p46
      %p500 = pneg %p70
      %p501 = pneg %p67
      %p502 = pneg %p91
      %p503 = pneg %p88
      %p504 = pneg %p112
      %p505 = pneg %p109
      %p506 = pneg %p133
      %p507 = pneg %p130
      %p508 = pneg %p154
      %p509 = pneg %p151
      %p510 = pneg %p175
      %p511 = pneg %p172
      %p512 = pneg %p196
      %p513 = pneg %p193
      %p514 = pneg %p217
      %p515 = pneg %p214
      %p516 = pneg %p238
      %p517 = pneg %p235
      %p518 = pneg %p259
      %p519 = pneg %p256
      %p520 = pneg %p280
      %p521 = pneg %p277
      %p522 = pneg %p301
      %p523 = pneg %p298
      %p524 = pneg %p322
      %p525 = pneg %p319
      %p526 = pneg %p343
      %p527 = pneg %p340
      %p528 = pneg %p364
      %p529 = pneg %p361
      %p530 = pneg %p385
      %p531 = pneg %p382
      %p532 = pneg %p411
      %p533 = pneg %p408
      %p534 = scmp.lt.s32.totalorder %s28, 1
      %s535 = scalar_select %p534, %s28, 1
      %s536 = smul.addr %s535, 2
      %s537 = smul.addr %s536, 8
      %s538 = scalar_lea.vmem %s17, %s537
      %p539 = scmp.lt.s32.totalorder %s28, 1
      %s540 = scalar_select %p539, %s28, 1
      %s541 = smul.addr %s540, 2
      %s542 = smul.addr %s541, 8
      %s543 = scalar_lea.vmem %s0, %s542
      %p544 = scmp.lt.s32.totalorder %s28, 1
      %s545 = scalar_select %p544, %s28, 1
      %s546 = smul.addr %s545, 2
      %s547 = smul.addr %s546, 8
      %s548 = scalar_lea.vmem %s17, %s547
      %v550 = vld [vmem:[%s543] sm:$0xff]
      %v551 = vld [vmem:[%s543 + $0x8] sm:$0xff]
      %v552 = vpack.c.bf16 %v551, %v550
      %v553 = vld [vmem:[%s1] sm:$0xf]
      %v554 = vld [vmem:[%s1 + $0x4] sm:$0xf]
      %v555 = vld [vmem:[%s1 + $0x8] sm:$0xf]
      %v556 = vld [vmem:[%s1 + $0xc] sm:$0xf]
      %v557 = vld [vmem:[%s2] sm:$0x1]
      %v559 = vlaneseq
      %v560 = vshrl.u32 %v559, 7
      %v561 = vsub.s32 0, %v560
      %v562 = vrot.slane %v557, %v561
      %v568 = vunpack.c.l.b16 %v553
      %v569 = vunpack.c.l.b16 %v554
      %v570 = vunpack.c.l.b16 %v555
      %v571 = vunpack.c.l.b16 %v556
      %v572 = vpack.c.b16 %v569, %v568
      %v573 = vpack.c.b16 %v571, %v570
      %vm576 = vcmask 261120
      %v578 = vsel %vm576, %v552, 0
      %580 = vmatprep.subr.bf16.mxu0 0
      %581 = vmatpush1.bf16.msra.mxu0 %v572
      %582 = vmatprep.subr.bf16.mxu0 0
      %583 = vmatpush1.bf16.msra.mxu0 %v573
      %584 = vmatprep.subr.bf16.mxu0 0
      %585 = vmatpush1.bf16.msra.mxu0 0
      %586 = vmatprep.subr.bf16.mxu0 0
      %587 = vmatpush1.bf16.msra.mxu0 0
      %588 = vmatprep.subr.bf16.mxu0 0
      %589 = vmatpush1.bf16.msra.mxu0 0
      %590 = vmatprep.subr.bf16.mxu0 0
      %591 = vmatpush1.bf16.msra.mxu0 0
      %592 = vmatprep.subr.bf16.mxu0 0
      %593 = vmatpush1.bf16.msra.mxu0 0
      %594 = vmatprep.subr.bf16.mxu0 0
      %595 = vmatpush1.bf16.msra.mxu0 0
      %596 = vmatprep.subr.bf16.mxu0 0
      %597 = vmatpush1.bf16.msra.mxu0 0
      %598 = vmatprep.subr.bf16.mxu0 0
      %599 = vmatpush1.bf16.msra.mxu0 0
      %600 = vmatprep.subr.bf16.mxu0 0
      %601 = vmatpush1.bf16.msra.mxu0 0
      %602 = vmatprep.subr.bf16.mxu0 0
      %603 = vmatpush1.bf16.msra.mxu0 0
      %604 = vmatprep.subr.bf16.mxu0 0
      %605 = vmatpush1.bf16.msra.mxu0 0
      %606 = vmatprep.subr.bf16.mxu0 0
      %607 = vmatpush1.bf16.msra.mxu0 0
      %608 = vmatprep.subr.bf16.mxu0 0
      %609 = vmatpush1.bf16.msra.mxu0 0
      %610 = vmatprep.subr.bf16.mxu0 0
      %611 = vmatpush1.bf16.msra.mxu0 0
      %612 = vmatprep.mubr.bf16.mxu0 0
      %613 = vmatmul.mubr.bf16.gmra.mrb[0].mxu0 %v578
      %v614 = vpop.f32.mrb[0].mxu0
      %v615 = vadd.f32 %v562, %v614
      %v616 = vpop.f32.mrb[0].mxu0
      %v617 = vpop.f32.mrb[0].mxu0
      %v618 = vadd.f32 %v562, %v617
      %v619 = vpop.f32.mrb[0].mxu0
      %620 = vdwg.mxu0
      %v621 = vpack.c.bf16 %v618, %v615
      %622 = vst.msk [vmem:[#allocation2] sm:$0xff] %vm576, %v621
      %v623 = vld [vmem:[%s3] sm:$0xf]
      %v624 = vld [vmem:[%s3 + $0x4] sm:$0xf]
      %v625 = vld [vmem:[%s3 + $0x8] sm:$0xf]
      %v626 = vld [vmem:[%s3 + $0xc] sm:$0xf]
      %v627 = vld [vmem:[%s4] sm:$0x1]
      %v629 = vlaneseq
      %v630 = vshrl.u32 %v629, 7
      %v631 = vsub.s32 0, %v630
      %v632 = vrot.slane %v627, %v631
      %v638 = vunpack.c.l.b16 %v623
      %v639 = vunpack.c.l.b16 %v624
      %v640 = vunpack.c.l.b16 %v625
      %v641 = vunpack.c.l.b16 %v626
      %v642 = vpack.c.b16 %v639, %v638
      %v643 = vpack.c.b16 %v641, %v640
      %646 = vmatprep.subr.bf16.mxu0 0
      %647 = vmatpush1.bf16.msra.mxu0 %v642
      %648 = vmatprep.subr.bf16.mxu0 0
      %649 = vmatpush1.bf16.msra.mxu0 %v643
      %650 = vmatprep.subr.bf16.mxu0 0
      %651 = vmatpush1.bf16.msra.mxu0 0
      %652 = vmatprep.subr.bf16.mxu0 0
      %653 = vmatpush1.bf16.msra.mxu0 0
      %654 = vmatprep.subr.bf16.mxu0 0
      %655 = vmatpush1.bf16.msra.mxu0 0
      %656 = vmatprep.subr.bf16.mxu0 0
      %657 = vmatpush1.bf16.msra.mxu0 0
      %658 = vmatprep.subr.bf16.mxu0 0
      %659 = vmatpush1.bf16.msra.mxu0 0
      %660 = vmatprep.subr.bf16.mxu0 0
      %661 = vmatpush1.bf16.msra.mxu0 0
      %662 = vmatprep.subr.bf16.mxu0 0
      %663 = vmatpush1.bf16.msra.mxu0 0
      %664 = vmatprep.subr.bf16.mxu0 0
      %665 = vmatpush1.bf16.msra.mxu0 0
      %666 = vmatprep.subr.bf16.mxu0 0
      %667 = vmatpush1.bf16.msra.mxu0 0
      %668 = vmatprep.subr.bf16.mxu0 0
      %669 = vmatpush1.bf16.msra.mxu0 0
      %670 = vmatprep.subr.bf16.mxu0 0
      %671 = vmatpush1.bf16.msra.mxu0 0
      %672 = vmatprep.subr.bf16.mxu0 0
      %673 = vmatpush1.bf16.msra.mxu0 0
      %674 = vmatprep.subr.bf16.mxu0 0
      %675 = vmatpush1.bf16.msra.mxu0 0
      %676 = vmatprep.subr.bf16.mxu0 0
      %677 = vmatpush1.bf16.msra.mxu0 0
      %678 = vmatprep.mubr.bf16.mxu0 0
      %679 = vmatmul.mubr.bf16.gmra.mrb[0].mxu0 %v578
      %v680 = vpop.f32.mrb[0].mxu0
      %v681 = vadd.f32 %v632, %v680
      %v682 = vpop.f32.mrb[0].mxu0
      %v683 = vpop.f32.mrb[0].mxu0
      %v684 = vadd.f32 %v632, %v683
      %v685 = vpop.f32.mrb[0].mxu0
      %686 = vdwg.mxu0
      %v687 = vpack.c.bf16 %v684, %v681
      %688 = vst.msk [vmem:[#allocation3] sm:$0xff] %vm576, %v687
      %v689 = vld [vmem:[%s5] sm:$0xf]
      %v690 = vld [vmem:[%s5 + $0x4] sm:$0xf]
      %v691 = vld [vmem:[%s5 + $0x8] sm:$0xf]
      %v692 = vld [vmem:[%s5 + $0xc] sm:$0xf]
      %v693 = vld [vmem:[%s6] sm:$0x1]
      %v695 = vlaneseq
      %v696 = vshrl.u32 %v695, 7
      %v697 = vsub.s32 0, %v696
      %v698 = vrot.slane %v693, %v697
      %v704 = vunpack.c.l.b16 %v689
      %v705 = vunpack.c.l.b16 %v690
      %v706 = vunpack.c.l.b16 %v691
      %v707 = vunpack.c.l.b16 %v692
      %v708 = vpack.c.b16 %v705, %v704
      %v709 = vpack.c.b16 %v707, %v706
      %712 = vmatprep.subr.bf16.mxu0 0
      %713 = vmatpush1.bf16.msra.mxu0 %v708
      %714 = vmatprep.subr.bf16.mxu0 0
      %715 = vmatpush1.bf16.msra.mxu0 %v709
      %716 = vmatprep.subr.bf16.mxu0 0
      %717 = vmatpush1.bf16.msra.mxu0 0
      %718 = vmatprep.subr.bf16.mxu0 0
      %719 = vmatpush1.bf16.msra.mxu0 0
      %720 = vmatprep.subr.bf16.mxu0 0
      %721 = vmatpush1.bf16.msra.mxu0 0
      %722 = vmatprep.subr.bf16.mxu0 0
      %723 = vmatpush1.bf16.msra.mxu0 0
      %724 = vmatprep.subr.bf16.mxu0 0
      %725 = vmatpush1.bf16.msra.mxu0 0
      %726 = vmatprep.subr.bf16.mxu0 0
      %727 = vmatpush1.bf16.msra.mxu0 0
      %728 = vmatprep.subr.bf16.mxu0 0
      %729 = vmatpush1.bf16.msra.mxu0 0
      %730 = vmatprep.subr.bf16.mxu0 0
      %731 = vmatpush1.bf16.msra.mxu0 0
      %732 = vmatprep.subr.bf16.mxu0 0
      %733 = vmatpush1.bf16.msra.mxu0 0
      %734 = vmatprep.subr.bf16.mxu0 0
      %735 = vmatpush1.bf16.msra.mxu0 0
      %736 = vmatprep.subr.bf16.mxu0 0
      %737 = vmatpush1.bf16.msra.mxu0 0
      %738 = vmatprep.subr.bf16.mxu0 0
      %739 = vmatpush1.bf16.msra.mxu0 0
      %740 = vmatprep.subr.bf16.mxu0 0
      %741 = vmatpush1.bf16.msra.mxu0 0
      %742 = vmatprep.subr.bf16.mxu0 0
      %743 = vmatpush1.bf16.msra.mxu0 0
      %744 = vmatprep.mubr.bf16.mxu0 0
      %745 = vmatmul.mubr.bf16.gmra.mrb[0].mxu0 %v578
      %v746 = vpop.f32.mrb[0].mxu0
      %v747 = vadd.f32 %v698, %v746
      %v748 = vpop.f32.mrb[0].mxu0
      %v749 = vpop.f32.mrb[0].mxu0
      %v750 = vadd.f32 %v698, %v749
      %v751 = vpop.f32.mrb[0].mxu0
      %752 = vdwg.mxu0
      %v753 = vpack.c.bf16 %v750, %v747
      %754 = vst.msk [vmem:[#allocation4] sm:$0xff] %vm576, %v753
      %v755 = vld [vmem:[#allocation2] sm:$0xff]
      %v756 = vld [vmem:[#allocation3] sm:$0xff]
      %v757 = vld [vmem:[#allocation4] sm:$0xff]
      %vm758 = vcmask 64512
      %v760 = vsel %vm758, %v755, 0
      %v763 = vsel %vm758, %v756, 0
      %765 = vmatprep.subr.bf16.mxu0 0
      %766 = vmatpush1.bf16.xpose.msra.mxu0 %v763
      %767 = vmatprep.subr.bf16.mxu0 0
      %768 = vmatpush1.bf16.xpose.msra.mxu0 0
      %769 = vmatprep.subr.bf16.mxu0 0
      %770 = vmatpush1.bf16.xpose.msra.mxu0 0
      %771 = vmatprep.subr.bf16.mxu0 0
      %772 = vmatpush1.bf16.xpose.msra.mxu0 0
      %773 = vmatprep.subr.bf16.mxu0 0
      %774 = vmatpush1.bf16.xpose.msra.mxu0 0
      %775 = vmatprep.subr.bf16.mxu0 0
      %776 = vmatpush1.bf16.xpose.msra.mxu0 0
      %777 = vmatprep.subr.bf16.mxu0 0
      %778 = vmatpush1.bf16.xpose.msra.mxu0 0
      %779 = vmatprep.subr.bf16.mxu0 0
      %780 = vmatpush1.bf16.xpose.msra.mxu0 0
      %781 = vmatprep.subr.bf16.mxu0 0
      %782 = vmatpush1.bf16.xpose.msra.mxu0 0
      %783 = vmatprep.subr.bf16.mxu0 0
      %784 = vmatpush1.bf16.xpose.msra.mxu0 0
      %785 = vmatprep.subr.bf16.mxu0 0
      %786 = vmatpush1.bf16.xpose.msra.mxu0 0
      %787 = vmatprep.subr.bf16.mxu0 0
      %788 = vmatpush1.bf16.xpose.msra.mxu0 0
      %789 = vmatprep.subr.bf16.mxu0 0
      %790 = vmatpush1.bf16.xpose.msra.mxu0 0
      %791 = vmatprep.subr.bf16.mxu0 0
      %792 = vmatpush1.bf16.xpose.msra.mxu0 0
      %793 = vmatprep.subr.bf16.mxu0 0
      %794 = vmatpush1.bf16.xpose.msra.mxu0 0
      %795 = vmatprep.subr.bf16.mxu0 0
      %796 = vmatpush1.bf16.xpose.msra.mxu0 0
      %797 = vmatprep.mubr.bf16.mxu0 0
      %798 = vmatmul.mubr.bf16.gmra.mrb[0].mxu0 %v760
      %v799 = vpop.f32.mrb[0].mxu0
      %v800 = vadd.f32 0.0, %v799
      %v801 = vpop.f32.mrb[0].mxu0
      %v802 = vpop.f32.mrb[0].mxu0
      %v803 = vadd.f32 0.0, %v802
      %v804 = vpop.f32.mrb[0].mxu0
      %805 = vdwg.mxu0
      %v806 = vmul.f32 %v800, 0.17677669
      %v807 = vmul.f32 %v803, 0.17677669
      %vm808 = vcmask 130048
      %v809 = vsel %vm808, %v806, -inf
      %810 = vmax.xlane.f32.xlu0 %v809
      %v811 = vpop.xlane.xlu0 %810
      %v812 = vsel %vm808, %v807, -inf
      %813 = vmax.xlane.f32.xlu0 %v812
      %v814 = vpop.xlane.xlu0 %813
      %v815 = vsub.f32 %v806, %v811
      %v816 = vsub.f32 %v807, %v814
      %v817 = vmul.f32 %v815, 1.442695
      %v818 = vpow.pop %v817
      %v819 = vmul.f32 %v816, 1.442695
      %v820 = vpow.pop %v819
      %v821 = vsel %vm808, %v818, 0.0
      %822 = vadd.xlane.f32.xlu0 %v821
      %v823 = vpop.xlane.xlu0 %822
      %v824 = vsel %vm808, %v820, 0.0
      %825 = vadd.xlane.f32.xlu0 %v824
      %v826 = vpop.xlane.xlu0 %825
      %v827 = vrcp.pop %v823
      %v828 = vrcp.pop %v826
      %v829 = vmul.f32 %v818, %v827
      %v830 = vmul.f32 %v820, %v828
      %v831 = vpack.c.bf16 %v830, %v829
      %v833 = vsel %vm808, %v831, 0
      %835 = vmatprep.subr.bf16.mxu0 0
      %836 = vmatpush1.bf16.msra.mxu0 %v757
      %837 = vmatprep.subr.bf16.mxu0 0
      %838 = vmatpush1.bf16.msra.mxu0 0
      %839 = vmatprep.subr.bf16.mxu0 0
      %840 = vmatpush1.bf16.msra.mxu0 0
      %841 = vmatprep.subr.bf16.mxu0 0
      %842 = vmatpush1.bf16.msra.mxu0 0
      %843 = vmatprep.subr.bf16.mxu0 0
      %844 = vmatpush1.bf16.msra.mxu0 0
      %845 = vmatprep.subr.bf16.mxu0 0
      %846 = vmatpush1.bf16.msra.mxu0 0
      %847 = vmatprep.subr.bf16.mxu0 0
      %848 = vmatpush1.bf16.msra.mxu0 0
      %849 = vmatprep.subr.bf16.mxu0 0
      %850 = vmatpush1.bf16.msra.mxu0 0
      %851 = vmatprep.subr.bf16.mxu0 0
      %852 = vmatpush1.bf16.msra.mxu0 0
      %853 = vmatprep.subr.bf16.mxu0 0
      %854 = vmatpush1.bf16.msra.mxu0 0
      %855 = vmatprep.subr.bf16.mxu0 0
      %856 = vmatpush1.bf16.msra.mxu0 0
      %857 = vmatprep.subr.bf16.mxu0 0
      %858 = vmatpush1.bf16.msra.mxu0 0
      %859 = vmatprep.subr.bf16.mxu0 0
      %860 = vmatpush1.bf16.msra.mxu0 0
      %861 = vmatprep.subr.bf16.mxu0 0
      %862 = vmatpush1.bf16.msra.mxu0 0
      %863 = vmatprep.subr.bf16.mxu0 0
      %864 = vmatpush1.bf16.msra.mxu0 0
      %865 = vmatprep.subr.bf16.mxu0 0
      %866 = vmatpush1.bf16.msra.mxu0 0
      %867 = vmatprep.mubr.bf16.mxu0 0
      %868 = vmatmul.mubr.bf16.gmra.mrb[0].mxu0 %v833
      %v869 = vpop.f32.mrb[0].mxu0
      %v870 = vadd.f32 0.0, %v869
      %v871 = vpop.f32.mrb[0].mxu0
      %v872 = vpop.f32.mrb[0].mxu0
      %v873 = vadd.f32 0.0, %v872
      %v874 = vpop.f32.mrb[0].mxu0
      %875 = vdwg.mxu0
      %876 = vst.msk [vmem:[#allocation5] sm:$0xff] %vm758, %v870
      %877 = vst.msk [vmem:[#allocation5 + $0x8] sm:$0xff] %vm758, %v873
      %v878 = vld [vmem:[#allocation2] sm:$0xff]
      %v879 = vld [vmem:[#allocation3] sm:$0xff]
      %v880 = vld [vmem:[#allocation4] sm:$0xff]
      %882 = vrot.lane.b32.xlu0 %v878, 120
      %v883 = vpop.permute.xlu0 %882
      %885 = vrot.lane.b32.xlu0 %v879, 120
      %v886 = vpop.permute.xlu0 %885
      %v888 = vsel %vm758, %v883, 0
      %v891 = vsel %vm758, %v886, 0
      %893 = vmatprep.subr.bf16.mxu0 0
      %894 = vmatpush1.bf16.xpose.msra.mxu0 %v891
      %895 = vmatprep.subr.bf16.mxu0 0
      %896 = vmatpush1.bf16.xpose.msra.mxu0 0
      %897 = vmatprep.subr.bf16.mxu0 0
      %898 = vmatpush1.bf16.xpose.msra.mxu0 0
      %899 = vmatprep.subr.bf16.mxu0 0
      %900 = vmatpush1.bf16.xpose.msra.mxu0 0
      %901 = vmatprep.subr.bf16.mxu0 0
      %902 = vmatpush1.bf16.xpose.msra.mxu0 0
      %903 = vmatprep.subr.bf16.mxu0 0
      %904 = vmatpush1.bf16.xpose.msra.mxu0 0
      %905 = vmatprep.subr.bf16.mxu0 0
      %906 = vmatpush1.bf16.xpose.msra.mxu0 0
      %907 = vmatprep.subr.bf16.mxu0 0
      %908 = vmatpush1.bf16.xpose.msra.mxu0 0
      %909 = vmatprep.subr.bf16.mxu0 0
      %910 = vmatpush1.bf16.xpose.msra.mxu0 0
      %911 = vmatprep.subr.bf16.mxu0 0
      %912 = vmatpush1.bf16.xpose.msra.mxu0 0
      %913 = vmatprep.subr.bf16.mxu0 0
      %914 = vmatpush1.bf16.xpose.msra.mxu0 0
      %915 = vmatprep.subr.bf16.mxu0 0
      %916 = vmatpush1.bf16.xpose.msra.mxu0 0
      %917 = vmatprep.subr.bf16.mxu0 0
      %918 = vmatpush1.bf16.xpose.msra.mxu0 0
      %919 = vmatprep.subr.bf16.mxu0 0
      %920 = vmatpush1.bf16.xpose.msra.mxu0 0
      %921 = vmatprep.subr.bf16.mxu0 0
      %922 = vmatpush1.bf16.xpose.msra.mxu0 0
      %923 = vmatprep.subr.bf16.mxu0 0
      %924 = vmatpush1.bf16.xpose.msra.mxu0 0
      %925 = vmatprep.mubr.bf16.mxu0 0
      %926 = vmatmul.mubr.bf16.gmra.mrb[0].mxu0 %v888
      %v927 = vpop.f32.mrb[0].mxu0
      %v928 = vadd.f32 0.0, %v927
      %v929 = vpop.f32.mrb[0].mxu0
      %v930 = vpop.f32.mrb[0].mxu0
      %v931 = vadd.f32 0.0, %v930
      %v932 = vpop.f32.mrb[0].mxu0
      %933 = vdwg.mxu0
      %v934 = vmul.f32 %v928, 0.17677669
      %v935 = vmul.f32 %v931, 0.17677669
      %v936 = vsel %vm808, %v934, -inf
      %937 = vmax.xlane.f32.xlu0 %v936
      %v938 = vpop.xlane.xlu0 %937
      %v939 = vsel %vm808, %v935, -inf
      %940 = vmax.xlane.f32.xlu0 %v939
      %v941 = vpop.xlane.xlu0 %940
      %v942 = vsub.f32 %v934, %v938
      %v943 = vsub.f32 %v935, %v941
      %v944 = vmul.f32 %v942, 1.442695
      %v945 = vpow.pop %v944
      %v946 = vmul.f32 %v943, 1.442695
      %v947 = vpow.pop %v946
      %v948 = vsel %vm808, %v945, 0.0
      %949 = vadd.xlane.f32.xlu0 %v948
      %v950 = vpop.xlane.xlu0 %949
      %v951 = vsel %vm808, %v947, 0.0
      %952 = vadd.xlane.f32.xlu0 %v951
      %v953 = vpop.xlane.xlu0 %952
      %v954 = vrcp.pop %v950
      %v955 = vrcp.pop %v953
      %v956 = vmul.f32 %v945, %v954
      %v957 = vmul.f32 %v947, %v955
      %v958 = vpack.c.bf16 %v957, %v956
      %960 = vrot.lane.b32.xlu0 %v880, 120
      %v961 = vpop.permute.xlu0 %960
      %v964 = vsel %vm808, %v958, 0
      %966 = vmatprep.subr.bf16.mxu0 0
      %967 = vmatpush1.bf16.msra.mxu0 %v961
      %968 = vmatprep.subr.bf16.mxu0 0
      %969 = vmatpush1.bf16.msra.mxu0 0
      %970 = vmatprep.subr.bf16.mxu0 0
      %971 = vmatpush1.bf16.msra.mxu0 0
      %972 = vmatprep.subr.bf16.mxu0 0
      %973 = vmatpush1.bf16.msra.mxu0 0
      %974 = vmatprep.subr.bf16.mxu0 0
      %975 = vmatpush1.bf16.msra.mxu0 0
      %976 = vmatprep.subr.bf16.mxu0 0
      %977 = vmatpush1.bf16.msra.mxu0 0
      %978 = vmatprep.subr.bf16.mxu0 0
      %979 = vmatpush1.bf16.msra.mxu0 0
      %980 = vmatprep.subr.bf16.mxu0 0
      %981 = vmatpush1.bf16.msra.mxu0 0
      %982 = vmatprep.subr.bf16.mxu0 0
      %983 = vmatpush1.bf16.msra.mxu0 0
      %984 = vmatprep.subr.bf16.mxu0 0
      %985 = vmatpush1.bf16.msra.mxu0 0
      %986 = vmatprep.subr.bf16.mxu0 0
      %987 = vmatpush1.bf16.msra.mxu0 0
      %988 = vmatprep.subr.bf16.mxu0 0
      %989 = vmatpush1.bf16.msra.mxu0 0
      %990 = vmatprep.subr.bf16.mxu0 0
      %991 = vmatpush1.bf16.msra.mxu0 0
      %992 = vmatprep.subr.bf16.mxu0 0
      %993 = vmatpush1.bf16.msra.mxu0 0
      %994 = vmatprep.subr.bf16.mxu0 0
      %995 = vmatpush1.bf16.msra.mxu0 0
      %996 = vmatprep.subr.bf16.mxu0 0
      %997 = vmatpush1.bf16.msra.mxu0 0
      %998 = vmatprep.mubr.bf16.mxu0 0
      %999 = vmatmul.mubr.bf16.gmra.mrb[0].mxu0 %v964
      %v1000 = vpop.f32.mrb[0].mxu0
      %v1001 = vadd.f32 0.0, %v1000
      %v1002 = vpop.f32.mrb[0].mxu0
      %v1003 = vpop.f32.mrb[0].mxu0
      %v1004 = vadd.f32 0.0, %v1003
      %v1005 = vpop.f32.mrb[0].mxu0
      %1006 = vdwg.mxu0
      %1009 = vrot.lane.b32.xlu0 %v1001, 8
      %v1010 = vpop.permute.xlu0 %1009
      %1011 = vrot.lane.b32.xlu0 %v1004, 8
      %v1012 = vpop.permute.xlu0 %1011
      %vm1015 = vcmask 130112
      %1016 = vst.msk [vmem:[#allocation5] sm:$0xff] %vm1015, %v1010
      %1017 = vst.msk [vmem:[#allocation5 + $0x8] sm:$0xff] %vm1015, %v1012
      %v1018 = vld [vmem:[#allocation2] sm:$0xff]
      %v1019 = vld [vmem:[#allocation3] sm:$0xff]
      %v1020 = vld [vmem:[#allocation4] sm:$0xff]
      %1022 = vrot.lane.b32.xlu0 %v1018, 112
      %v1023 = vpop.permute.xlu0 %1022
      %1025 = vrot.lane.b32.xlu0 %v1019, 112
      %v1026 = vpop.permute.xlu0 %1025
      %v1028 = vsel %vm758, %v1023, 0
      %v1031 = vsel %vm758, %v1026, 0
      %1033 = vmatprep.subr.bf16.mxu0 0
      %1034 = vmatpush1.bf16.xpose.msra.mxu0 %v1031
      %1035 = vmatprep.subr.bf16.mxu0 0
      %1036 = vmatpush1.bf16.xpose.msra.mxu0 0
      %1037 = vmatprep.subr.bf16.mxu0 0
      %1038 = vmatpush1.bf16.xpose.msra.mxu0 0
      %1039 = vmatprep.subr.bf16.mxu0 0
      %1040 = vmatpush1.bf16.xpose.msra.mxu0 0
      %1041 = vmatprep.subr.bf16.mxu0 0
      %1042 = vmatpush1.bf16.xpose.msra.mxu0 0
      %1043 = vmatprep.subr.bf16.mxu0 0
      %1044 = vmatpush1.bf16.xpose.msra.mxu0 0
      %1045 = vmatprep.subr.bf16.mxu0 0
      %1046 = vmatpush1.bf16.xpose.msra.mxu0 0
      %1047 = vmatprep.subr.bf16.mxu0 0
      %1048 = vmatpush1.bf16.xpose.msra.mxu0 0
      %1049 = vmatprep.subr.bf16.mxu0 0
      %1050 = vmatpush1.bf16.xpose.msra.mxu0 0
      %1051 = vmatprep.subr.bf16.mxu0 0
      %1052 = vmatpush1.bf16.xpose.msra.mxu0 0
      %1053 = vmatprep.subr.bf16.mxu0 0
      %1054 = vmatpush1.bf16.xpose.msra.mxu0 0
      %1055 = vmatprep.subr.bf16.mxu0 0
      %1056 = vmatpush1.bf16.xpose.msra.mxu0 0
      %1057 = vmatprep.subr.bf16.mxu0 0
      %1058 = vmatpush1.bf16.xpose.msra.mxu0 0
      %1059 = vmatprep.subr.bf16.mxu0 0
      %1060 = vmatpush1.bf16.xpose.msra.mxu0 0
      %1061 = vmatprep.subr.bf16.mxu0 0
      %1062 = vmatpush1.bf16.xpose.msra.mxu0 0
      %1063 = vmatprep.subr.bf16.mxu0 0
      %1064 = vmatpush1.bf16.xpose.msra.mxu0 0
      %1065 = vmatprep.mubr.bf16.mxu0 0
      %1066 = vmatmul.mubr.bf16.gmra.mrb[0].mxu0 %v1028
      %v1067 = vpop.f32.mrb[0].mxu0
      %v1068 = vadd.f32 0.0, %v1067
      %v1069 = vpop.f32.mrb[0].mxu0
      %v1070 = vpop.f32.mrb[0].mxu0
      %v1071 = vadd.f32 0.0, %v1070
      %v1072 = vpop.f32.mrb[0].mxu0
      %1073 = vdwg.mxu0
      %v1074 = vmul.f32 %v1068, 0.17677669
      %v1075 = vmul.f32 %v1071, 0.17677669
      %v1076 = vsel %vm808, %v1074, -inf
      %1077 = vmax.xlane.f32.xlu0 %v1076
      %v1078 = vpop.xlane.xlu0 %1077
      %v1079 = vsel %vm808, %v1075, -inf
      %1080 = vmax.xlane.f32.xlu0 %v1079
      %v1081 = vpop.xlane.xlu0 %1080
      %v1082 = vsub.f32 %v1074, %v1078
      %v1083 = vsub.f32 %v1075, %v1081
      %v1084 = vmul.f32 %v1082, 1.442695
      %v1085 = vpow.pop %v1084
      %v1086 = vmul.f32 %v1083, 1.442695
      %v1087 = vpow.pop %v1086
      %v1088 = vsel %vm808, %v1085, 0.0
      %1089 = vadd.xlane.f32.xlu0 %v1088
      %v1090 = vpop.xlane.xlu0 %1089
      %v1091 = vsel %vm808, %v1087, 0.0
      %1092 = vadd.xlane.f32.xlu0 %v1091
      %v1093 = vpop.xlane.xlu0 %1092
      %v1094 = vrcp.pop %v1090
      %v1095 = vrcp.pop %v1093
      %v1096 = vmul.f32 %v1085, %v1094
      %v1097 = vmul.f32 %v1087, %v1095
      %v1098 = vpack.c.bf16 %v1097, %v1096
      %1100 = vrot.lane.b32.xlu0 %v1020, 112
      %v1101 = vpop.permute.xlu0 %1100
      %v1104 = vsel %vm808, %v1098, 0
      %1106 = vmatprep.subr.bf16.mxu0 0
      %1107 = vmatpush1.bf16.msra.mxu0 %v1101
      %1108 = vmatprep.subr.bf16.mxu0 0
      %1109 = vmatpush1.bf16.msra.mxu0 0
      %1110 = vmatprep.subr.bf16.mxu0 0
      %1111 = vmatpush1.bf16.msra.mxu0 0
      %1112 = vmatprep.subr.bf16.mxu0 0
      %1113 = vmatpush1.bf16.msra.mxu0 0
      %1114 = vmatprep.subr.bf16.mxu0 0
      %1115 = vmatpush1.bf16.msra.mxu0 0
      %1116 = vmatprep.subr.bf16.mxu0 0
      %1117 = vmatpush1.bf16.msra.mxu0 0
      %1118 = vmatprep.subr.bf16.mxu0 0
      %1119 = vmatpush1.bf16.msra.mxu0 0
      %1120 = vmatprep.subr.bf16.mxu0 0
      %1121 = vmatpush1.bf16.msra.mxu0 0
      %1122 = vmatprep.subr.bf16.mxu0 0
      %1123 = vmatpush1.bf16.msra.mxu0 0
      %1124 = vmatprep.subr.bf16.mxu0 0
      %1125 = vmatpush1.bf16.msra.mxu0 0
      %1126 = vmatprep.subr.bf16.mxu0 0
      %1127 = vmatpush1.bf16.msra.mxu0 0
      %1128 = vmatprep.subr.bf16.mxu0 0
      %1129 = vmatpush1.bf16.msra.mxu0 0
      %1130 = vmatprep.subr.bf16.mxu0 0
      %1131 = vmatpush1.bf16.msra.mxu0 0
      %1132 = vmatprep.subr.bf16.mxu0 0
      %1133 = vmatpush1.bf16.msra.mxu0 0
      %1134 = vmatprep.subr.bf16.mxu0 0
      %1135 = vmatpush1.bf16.msra.mxu0 0
      %1136 = vmatprep.subr.bf16.mxu0 0
      %1137 = vmatpush1.bf16.msra.mxu0 0
      %1138 = vmatprep.mubr.bf16.mxu0 0
      %1139 = vmatmul.mubr.bf16.gmra.mrb[0].mxu0 %v1104
      %v1140 = vpop.f32.mrb[0].mxu0
      %v1141 = vadd.f32 0.0, %v1140
      %v1142 = vpop.f32.mrb[0].mxu0
      %v1143 = vpop.f32.mrb[0].mxu0
      %v1144 = vadd.f32 0.0, %v1143
      %v1145 = vpop.f32.mrb[0].mxu0
      %1146 = vdwg.mxu0
      %1149 = vrot.lane.b32.xlu0 %v1141, 16
      %v1150 = vpop.permute.xlu0 %1149
      %1151 = vrot.lane.b32.xlu0 %v1144, 16
      %v1152 = vpop.permute.xlu0 %1151
      %vm1155 = vcmask 195712
      %1156 = vst.msk [vmem:[#allocation5] sm:$0xff] %vm1155, %v1150
      %1157 = vst.msk [vmem:[#allocation5 + $0x8] sm:$0xff] %vm1155, %v1152
      %v1158 = vld [vmem:[#allocation2] sm:$0xff]
      %v1159 = vld [vmem:[#allocation3] sm:$0xff]
      %v1160 = vld [vmem:[#allocation4] sm:$0xff]
      %1162 = vrot.lane.b32.xlu0 %v1158, 104
      %v1163 = vpop.permute.xlu0 %1162
      %1165 = vrot.lane.b32.xlu0 %v1159, 104
      %v1166 = vpop.permute.xlu0 %1165
      %v1168 = vsel %vm758, %v1163, 0
      %v1171 = vsel %vm758, %v1166, 0
      %1173 = vmatprep.subr.bf16.mxu0 0
      %1174 = vmatpush1.bf16.xpose.msra.mxu0 %v1171
      %1175 = vmatprep.subr.bf16.mxu0 0
      %1176 = vmatpush1.bf16.xpose.msra.mxu0 0
      %1177 = vmatprep.subr.bf16.mxu0 0
      %1178 = vmatpush1.bf16.xpose.msra.mxu0 0
      %1179 = vmatprep.subr.bf16.mxu0 0
      %1180 = vmatpush1.bf16.xpose.msra.mxu0 0
      %1181 = vmatprep.subr.bf16.mxu0 0
      %1182 = vmatpush1.bf16.xpose.msra.mxu0 0
      %1183 = vmatprep.subr.bf16.mxu0 0
      %1184 = vmatpush1.bf16.xpose.msra.mxu0 0
      %1185 = vmatprep.subr.bf16.mxu0 0
      %1186 = vmatpush1.bf16.xpose.msra.mxu0 0
      %1187 = vmatprep.subr.bf16.mxu0 0
      %1188 = vmatpush1.bf16.xpose.msra.mxu0 0
      %1189 = vmatprep.subr.bf16.mxu0 0
      %1190 = vmatpush1.bf16.xpose.msra.mxu0 0
      %1191 = vmatprep.subr.bf16.mxu0 0
      %1192 = vmatpush1.bf16.xpose.msra.mxu0 0
      %1193 = vmatprep.subr.bf16.mxu0 0
      %1194 = vmatpush1.bf16.xpose.msra.mxu0 0
      %1195 = vmatprep.subr.bf16.mxu0 0
      %1196 = vmatpush1.bf16.xpose.msra.mxu0 0
      %1197 = vmatprep.subr.bf16.mxu0 0
      %1198 = vmatpush1.bf16.xpose.msra.mxu0 0
      %1199 = vmatprep.subr.bf16.mxu0 0
      %1200 = vmatpush1.bf16.xpose.msra.mxu0 0
      %1201 = vmatprep.subr.bf16.mxu0 0
      %1202 = vmatpush1.bf16.xpose.msra.mxu0 0
      %1203 = vmatprep.subr.bf16.mxu0 0
      %1204 = vmatpush1.bf16.xpose.msra.mxu0 0
      %1205 = vmatprep.mubr.bf16.mxu0 0
      %1206 = vmatmul.mubr.bf16.gmra.mrb[0].mxu0 %v1168
      %v1207 = vpop.f32.mrb[0].mxu0
      %v1208 = vadd.f32 0.0, %v1207
      %v1209 = vpop.f32.mrb[0].mxu0
      %v1210 = vpop.f32.mrb[0].mxu0
      %v1211 = vadd.f32 0.0, %v1210
      %v1212 = vpop.f32.mrb[0].mxu0
      %1213 = vdwg.mxu0
      %v1214 = vmul.f32 %v1208, 0.17677669
      %v1215 = vmul.f32 %v1211, 0.17677669
      %v1216 = vsel %vm808, %v1214, -inf
      %1217 = vmax.xlane.f32.xlu0 %v1216
      %v1218 = vpop.xlane.xlu0 %1217
      %v1219 = vsel %vm808, %v1215, -inf
      %1220 = vmax.xlane.f32.xlu0 %v1219
      %v1221 = vpop.xlane.xlu0 %1220
      %v1222 = vsub.f32 %v1214, %v1218
      %v1223 = vsub.f32 %v1215, %v1221
      %v1224 = vmul.f32 %v1222, 1.442695
      %v1225 = vpow.pop %v1224
      %v1226 = vmul.f32 %v1223, 1.442695
      %v1227 = vpow.pop %v1226
      %v1228 = vsel %vm808, %v1225, 0.0
      %1229 = vadd.xlane.f32.xlu0 %v1228
      %v1230 = vpop.xlane.xlu0 %1229
      %v1231 = vsel %vm808, %v1227, 0.0
      %1232 = vadd.xlane.f32.xlu0 %v1231
      %v1233 = vpop.xlane.xlu0 %1232
      %v1234 = vrcp.pop %v1230
      %v1235 = vrcp.pop %v1233
      %v1236 = vmul.f32 %v1225, %v1234
      %v1237 = vmul.f32 %v1227, %v1235
      %v1238 = vpack.c.bf16 %v1237, %v1236
      %1240 = vrot.lane.b32.xlu0 %v1160, 104
      %v1241 = vpop.permute.xlu0 %1240
      %v1244 = vsel %vm808, %v1238, 0
      %1246 = vmatprep.subr.bf16.mxu0 0
      %1247 = vmatpush1.bf16.msra.mxu0 %v1241
      %1248 = vmatprep.subr.bf16.mxu0 0
      %1249 = vmatpush1.bf16.msra.mxu0 0
      %1250 = vmatprep.subr.bf16.mxu0 0
      %1251 = vmatpush1.bf16.msra.mxu0 0
      %1252 = vmatprep.subr.bf16.mxu0 0
      %1253 = vmatpush1.bf16.msra.mxu0 0
      %1254 = vmatprep.subr.bf16.mxu0 0
      %1255 = vmatpush1.bf16.msra.mxu0 0
      %1256 = vmatprep.subr.bf16.mxu0 0
      %1257 = vmatpush1.bf16.msra.mxu0 0
      %1258 = vmatprep.subr.bf16.mxu0 0
      %1259 = vmatpush1.bf16.msra.mxu0 0
      %1260 = vmatprep.subr.bf16.mxu0 0
      %1261 = vmatpush1.bf16.msra.mxu0 0
      %1262 = vmatprep.subr.bf16.mxu0 0
      %1263 = vmatpush1.bf16.msra.mxu0 0
      %1264 = vmatprep.subr.bf16.mxu0 0
      %1265 = vmatpush1.bf16.msra.mxu0 0
      %1266 = vmatprep.subr.bf16.mxu0 0
      %1267 = vmatpush1.bf16.msra.mxu0 0
      %1268 = vmatprep.subr.bf16.mxu0 0
      %1269 = vmatpush1.bf16.msra.mxu0 0
      %1270 = vmatprep.subr.bf16.mxu0 0
      %1271 = vmatpush1.bf16.msra.mxu0 0
      %1272 = vmatprep.subr.bf16.mxu0 0
      %1273 = vmatpush1.bf16.msra.mxu0 0
      %1274 = vmatprep.subr.bf16.mxu0 0
      %1275 = vmatpush1.bf16.msra.mxu0 0
      %1276 = vmatprep.subr.bf16.mxu0 0
      %1277 = vmatpush1.bf16.msra.mxu0 0
      %1278 = vmatprep.mubr.bf16.mxu0 0
      %1279 = vmatmul.mubr.bf16.gmra.mrb[0].mxu0 %v1244
      %v1280 = vpop.f32.mrb[0].mxu0
      %v1281 = vadd.f32 0.0, %v1280
      %v1282 = vpop.f32.mrb[0].mxu0
      %v1283 = vpop.f32.mrb[0].mxu0
      %v1284 = vadd.f32 0.0, %v1283
      %v1285 = vpop.f32.mrb[0].mxu0
      %1286 = vdwg.mxu0
      %1289 = vrot.lane.b32.xlu0 %v1281, 24
      %v1290 = vpop.permute.xlu0 %1289
      %1291 = vrot.lane.b32.xlu0 %v1284, 24
      %v1292 = vpop.permute.xlu0 %1291
      %vm1295 = vcmask 261312
      %1296 = vst.msk [vmem:[#allocation5] sm:$0xff] %vm1295, %v1290
      %1297 = vst.msk [vmem:[#allocation5 + $0x8] sm:$0xff] %vm1295, %v1292
      %v1298 = vld [vmem:[#allocation5] sm:$0xff]
      %v1299 = vld [vmem:[#allocation5 + $0x8] sm:$0xff]
      %v1300 = vpack.c.bf16 %v1299, %v1298
      %v1301 = vld [vmem:[%s7] sm:$0xf]
      %v1302 = vld [vmem:[%s7 + $0x4] sm:$0xf]
      %v1303 = vld [vmem:[%s7 + $0x8] sm:$0xf]
      %v1304 = vld [vmem:[%s7 + $0xc] sm:$0xf]
      %v1305 = vld [vmem:[%s8] sm:$0x1]
      %v1307 = vlaneseq
      %v1308 = vshrl.u32 %v1307, 7
      %v1309 = vsub.s32 0, %v1308
      %v1310 = vrot.slane %v1305, %v1309
      %v1316 = vunpack.c.l.b16 %v1301
      %v1317 = vunpack.c.l.b16 %v1302
      %v1318 = vunpack.c.l.b16 %v1303
      %v1319 = vunpack.c.l.b16 %v1304
      %v1320 = vpack.c.b16 %v1317, %v1316
      %v1321 = vpack.c.b16 %v1319, %v1318
      %v1325 = vsel %vm576, %v1300, 0
      %1327 = vmatprep.subr.bf16.mxu0 0
      %1328 = vmatpush1.bf16.msra.mxu0 %v1320
      %1329 = vmatprep.subr.bf16.mxu0 0
      %1330 = vmatpush1.bf16.msra.mxu0 %v1321
      %1331 = vmatprep.subr.bf16.mxu0 0
      %1332 = vmatpush1.bf16.msra.mxu0 0
      %1333 = vmatprep.subr.bf16.mxu0 0
      %1334 = vmatpush1.bf16.msra.mxu0 0
      %1335 = vmatprep.subr.bf16.mxu0 0
      %1336 = vmatpush1.bf16.msra.mxu0 0
      %1337 = vmatprep.subr.bf16.mxu0 0
      %1338 = vmatpush1.bf16.msra.mxu0 0
      %1339 = vmatprep.subr.bf16.mxu0 0
      %1340 = vmatpush1.bf16.msra.mxu0 0
      %1341 = vmatprep.subr.bf16.mxu0 0
      %1342 = vmatpush1.bf16.msra.mxu0 0
      %1343 = vmatprep.subr.bf16.mxu0 0
      %1344 = vmatpush1.bf16.msra.mxu0 0
      %1345 = vmatprep.subr.bf16.mxu0 0
      %1346 = vmatpush1.bf16.msra.mxu0 0
      %1347 = vmatprep.subr.bf16.mxu0 0
      %1348 = vmatpush1.bf16.msra.mxu0 0
      %1349 = vmatprep.subr.bf16.mxu0 0
      %1350 = vmatpush1.bf16.msra.mxu0 0
      %1351 = vmatprep.subr.bf16.mxu0 0
      %1352 = vmatpush1.bf16.msra.mxu0 0
      %1353 = vmatprep.subr.bf16.mxu0 0
      %1354 = vmatpush1.bf16.msra.mxu0 0
      %1355 = vmatprep.subr.bf16.mxu0 0
      %1356 = vmatpush1.bf16.msra.mxu0 0
      %1357 = vmatprep.subr.bf16.mxu0 0
      %1358 = vmatpush1.bf16.msra.mxu0 0
      %1359 = vmatprep.mubr.bf16.mxu0 0
      %1360 = vmatmul.mubr.bf16.gmra.mrb[0].mxu0 %v1325
      %v1361 = vpop.f32.mrb[0].mxu0
      %v1362 = vadd.f32 %v1310, %v1361
      %v1363 = vpop.f32.mrb[0].mxu0
      %v1364 = vpop.f32.mrb[0].mxu0
      %v1365 = vadd.f32 %v1310, %v1364
      %v1366 = vpop.f32.mrb[0].mxu0
      %1367 = vdwg.mxu0
      %v1368 = vadd.f32 %v1362, %v550
      %v1369 = vadd.f32 %v1365, %v551
      %v1370 = vsel %vm576, %v1368, 0.0
      %1371 = vadd.xlane.f32.xlu0 %v1370
      %v1372 = vpop.xlane.xlu0 %1371
      %v1373 = vsel %vm576, %v1369, 0.0
      %1374 = vadd.xlane.f32.xlu0 %v1373
      %v1375 = vpop.xlane.xlu0 %1374
      %v1376 = vrcp.pop 32.0
      %v1377 = vmul.f32 %v1372, %v1376
      %v1378 = vmul.f32 %v1375, %v1376
      %v1379 = vsub.f32 %v1368, %v1377
      %v1380 = vsub.f32 %v1369, %v1378
      %v1381 = vmul.f32 %v1379, %v1379
      %v1382 = vmul.f32 %v1380, %v1380
      %v1383 = vsel %vm576, %v1381, 0.0
      %1384 = vadd.xlane.f32.xlu0 %v1383
      %v1385 = vpop.xlane.xlu0 %1384
      %v1386 = vsel %vm576, %v1382, 0.0
      %1387 = vadd.xlane.f32.xlu0 %v1386
      %v1388 = vpop.xlane.xlu0 %1387
      %v1389 = vmul.f32 %v1385, %v1376
      %v1390 = vmul.f32 %v1388, %v1376
      %v1391 = vadd.f32 %v1389, 1e-05
      %v1392 = vadd.f32 %v1390, 1e-05
      %v1393 = vrsqrt.pop %v1391
      %v1394 = vrsqrt.pop %v1392
      %v1395 = vmul.f32 %v1379, %v1393
      %v1396 = vmul.f32 %v1380, %v1394
      %v1397 = vld [vmem:[%s9] sm:$0x1]
      %v1399 = vlaneseq
      %v1400 = vshrl.u32 %v1399, 7
      %v1401 = vsub.s32 0, %v1400
      %v1402 = vrot.slane %v1397, %v1401
      %v1404 = vmul.f32 %v1395, %v1402
      %v1405 = vmul.f32 %v1396, %v1402
      %v1406 = vld [vmem:[%s10] sm:$0x1]
      %v1408 = vlaneseq
      %v1409 = vshrl.u32 %v1408, 7
      %v1410 = vsub.s32 0, %v1409
      %v1411 = vrot.slane %v1406, %v1410
      %v1413 = vadd.f32 %v1404, %v1411
      %v1414 = vadd.f32 %v1405, %v1411
      %v1415 = vpack.c.bf16 %v1414, %v1413
      %v1416 = vld [vmem:[%s11] sm:$0xf]
      %v1417 = vld [vmem:[%s11 + $0x4] sm:$0xf]
      %v1418 = vld [vmem:[%s11 + $0x8] sm:$0xf]
      %v1419 = vld [vmem:[%s11 + $0xc] sm:$0xf]
      %v1420 = vld [vmem:[%s12] sm:$0x1]
      %v1422 = vlaneseq
      %v1423 = vshrl.u32 %v1422, 7
      %v1424 = vsub.s32 0, %v1423
      %v1425 = vrot.slane %v1420, %v1424
      %v1431 = vunpack.c.l.b16 %v1416
      %v1432 = vunpack.c.l.b16 %v1417
      %v1433 = vunpack.c.l.b16 %v1418
      %v1434 = vunpack.c.l.b16 %v1419
      %v1435 = vpack.c.b16 %v1432, %v1431
      %v1436 = vpack.c.b16 %v1434, %v1433
      %v1440 = vsel %vm576, %v1415, 0
      %1442 = vmatprep.subr.bf16.mxu0 0
      %1443 = vmatpush1.bf16.msra.mxu0 %v1435
      %1444 = vmatprep.subr.bf16.mxu0 0
      %1445 = vmatpush1.bf16.msra.mxu0 %v1436
      %1446 = vmatprep.subr.bf16.mxu0 0
      %1447 = vmatpush1.bf16.msra.mxu0 0
      %1448 = vmatprep.subr.bf16.mxu0 0
      %1449 = vmatpush1.bf16.msra.mxu0 0
      %1450 = vmatprep.subr.bf16.mxu0 0
      %1451 = vmatpush1.bf16.msra.mxu0 0
      %1452 = vmatprep.subr.bf16.mxu0 0
      %1453 = vmatpush1.bf16.msra.mxu0 0
      %1454 = vmatprep.subr.bf16.mxu0 0
      %1455 = vmatpush1.bf16.msra.mxu0 0
      %1456 = vmatprep.subr.bf16.mxu0 0
      %1457 = vmatpush1.bf16.msra.mxu0 0
      %1458 = vmatprep.subr.bf16.mxu0 0
      %1459 = vmatpush1.bf16.msra.mxu0 0
      %1460 = vmatprep.subr.bf16.mxu0 0
      %1461 = vmatpush1.bf16.msra.mxu0 0
      %1462 = vmatprep.subr.bf16.mxu0 0
      %1463 = vmatpush1.bf16.msra.mxu0 0
      %1464 = vmatprep.subr.bf16.mxu0 0
      %1465 = vmatpush1.bf16.msra.mxu0 0
      %1466 = vmatprep.subr.bf16.mxu0 0
      %1467 = vmatpush1.bf16.msra.mxu0 0
      %1468 = vmatprep.subr.bf16.mxu0 0
      %1469 = vmatpush1.bf16.msra.mxu0 0
      %1470 = vmatprep.subr.bf16.mxu0 0
      %1471 = vmatpush1.bf16.msra.mxu0 0
      %1472 = vmatprep.subr.bf16.mxu0 0
      %1473 = vmatpush1.bf16.msra.mxu0 0
      %1474 = vmatprep.mubr.bf16.mxu0 0
      %1475 = vmatmul.mubr.bf16.gmra.mrb[0].mxu0 %v1440
      %v1476 = vpop.f32.mrb[0].mxu0
      %v1477 = vadd.f32 %v1425, %v1476
      %v1478 = vpop.f32.mrb[0].mxu0
      %v1479 = vpop.f32.mrb[0].mxu0
      %v1480 = vadd.f32 %v1425, %v1479
      %v1481 = vpop.f32.mrb[0].mxu0
      %1482 = vdwg.mxu0
      %v1483 = vmax.f32 %v1477, 0.0
      %v1484 = vmax.f32 %v1480, 0.0
      %v1485 = vpack.c.bf16 %v1484, %v1483
      %v1486 = vld [vmem:[%s13] sm:$0xf]
      %v1487 = vld [vmem:[%s13 + $0x4] sm:$0xf]
      %v1488 = vld [vmem:[%s13 + $0x8] sm:$0xf]
      %v1489 = vld [vmem:[%s13 + $0xc] sm:$0xf]
      %v1490 = vld [vmem:[%s13 + $0x10] sm:$0xf]
      %v1491 = vld [vmem:[%s13 + $0x14] sm:$0xf]
      %v1492 = vld [vmem:[%s13 + $0x18] sm:$0xf]
      %v1493 = vld [vmem:[%s13 + $0x1c] sm:$0xf]
      %v1494 = vld [vmem:[%s14] sm:$0x1]
      %v1496 = vlaneseq
      %v1497 = vshrl.u32 %v1496, 7
      %v1498 = vsub.s32 0, %v1497
      %v1499 = vrot.slane %v1494, %v1498
      %v1509 = vunpack.c.l.b16 %v1486
      %v1510 = vunpack.c.l.b16 %v1487
      %v1511 = vunpack.c.l.b16 %v1488
      %v1512 = vunpack.c.l.b16 %v1489
      %v1513 = vunpack.c.l.b16 %v1490
      %v1514 = vunpack.c.l.b16 %v1491
      %v1515 = vunpack.c.l.b16 %v1492
      %v1516 = vunpack.c.l.b16 %v1493
      %v1517 = vpack.c.b16 %v1510, %v1509
      %v1518 = vpack.c.b16 %v1512, %v1511
      %v1519 = vpack.c.b16 %v1514, %v1513
      %v1520 = vpack.c.b16 %v1516, %v1515
      %vm1525 = vcmask 523264
      %v1527 = vsel %vm1525, %v1485, 0
      %1529 = vmatprep.subr.bf16.mxu0 0
      %1530 = vmatpush1.bf16.msra.mxu0 %v1517
      %1531 = vmatprep.subr.bf16.mxu0 0
      %1532 = vmatpush1.bf16.msra.mxu0 %v1518
      %1533 = vmatprep.subr.bf16.mxu0 0
      %1534 = vmatpush1.bf16.msra.mxu0 %v1519
      %1535 = vmatprep.subr.bf16.mxu0 0
      %1536 = vmatpush1.bf16.msra.mxu0 %v1520
      %1537 = vmatprep.subr.bf16.mxu0 0
      %1538 = vmatpush1.bf16.msra.mxu0 0
      %1539 = vmatprep.subr.bf16.mxu0 0
      %1540 = vmatpush1.bf16.msra.mxu0 0
      %1541 = vmatprep.subr.bf16.mxu0 0
      %1542 = vmatpush1.bf16.msra.mxu0 0
      %1543 = vmatprep.subr.bf16.mxu0 0
      %1544 = vmatpush1.bf16.msra.mxu0 0
      %1545 = vmatprep.subr.bf16.mxu0 0
      %1546 = vmatpush1.bf16.msra.mxu0 0
      %1547 = vmatprep.subr.bf16.mxu0 0
      %1548 = vmatpush1.bf16.msra.mxu0 0
      %1549 = vmatprep.subr.bf16.mxu0 0
      %1550 = vmatpush1.bf16.msra.mxu0 0
      %1551 = vmatprep.subr.bf16.mxu0 0
      %1552 = vmatpush1.bf16.msra.mxu0 0
      %1553 = vmatprep.subr.bf16.mxu0 0
      %1554 = vmatpush1.bf16.msra.mxu0 0
      %1555 = vmatprep.subr.bf16.mxu0 0
      %1556 = vmatpush1.bf16.msra.mxu0 0
      %1557 = vmatprep.subr.bf16.mxu0 0
      %1558 = vmatpush1.bf16.msra.mxu0 0
      %1559 = vmatprep.subr.bf16.mxu0 0
      %1560 = vmatpush1.bf16.msra.mxu0 0
      %1561 = vmatprep.mubr.bf16.mxu0 0
      %1562 = vmatmul.mubr.bf16.gmra.mrb[0].mxu0 %v1527
      %v1563 = vpop.f32.mrb[0].mxu0
      %v1564 = vadd.f32 %v1499, %v1563
      %v1565 = vpop.f32.mrb[0].mxu0
      %v1566 = vpop.f32.mrb[0].mxu0
      %v1567 = vadd.f32 %v1499, %v1566
      %v1568 = vpop.f32.mrb[0].mxu0
      %1569 = vdwg.mxu0
      %v1570 = vmax.f32 %v1564, 0.0
      %v1571 = vmax.f32 %v1567, 0.0
      %v1572 = vadd.f32 %v1570, %v1413
      %v1573 = vadd.f32 %v1571, %v1414
      %v1574 = vsel %vm576, %v1572, 0.0
      %1575 = vadd.xlane.f32.xlu0 %v1574
      %v1576 = vpop.xlane.xlu0 %1575
      %v1577 = vsel %vm576, %v1573, 0.0
      %1578 = vadd.xlane.f32.xlu0 %v1577
      %v1579 = vpop.xlane.xlu0 %1578
      %v1580 = vmul.f32 %v1576, %v1376
      %v1581 = vmul.f32 %v1579, %v1376
      %v1582 = vsub.f32 %v1572, %v1580
      %v1583 = vsub.f32 %v1573, %v1581
      %v1584 = vmul.f32 %v1582, %v1582
      %v1585 = vmul.f32 %v1583, %v1583
      %v1586 = vsel %vm576, %v1584, 0.0
      %1587 = vadd.xlane.f32.xlu0 %v1586
      %v1588 = vpop.xlane.xlu0 %1587
      %v1589 = vsel %vm576, %v1585, 0.0
      %1590 = vadd.xlane.f32.xlu0 %v1589
      %v1591 = vpop.xlane.xlu0 %1590
      %v1592 = vmul.f32 %v1588, %v1376
      %v1593 = vmul.f32 %v1591, %v1376
      %v1594 = vadd.f32 %v1592, 1e-05
      %v1595 = vadd.f32 %v1593, 1e-05
      %v1596 = vrsqrt.pop %v1594
      %v1597 = vrsqrt.pop %v1595
      %v1598 = vmul.f32 %v1582, %v1596
      %v1599 = vmul.f32 %v1583, %v1597
      %v1600 = vld [vmem:[%s15] sm:$0x1]
      %v1602 = vlaneseq
      %v1603 = vshrl.u32 %v1602, 7
      %v1604 = vsub.s32 0, %v1603
      %v1605 = vrot.slane %v1600, %v1604
      %v1607 = vmul.f32 %v1598, %v1605
      %v1608 = vmul.f32 %v1599, %v1605
      %v1609 = vld [vmem:[%s16] sm:$0x1]
      %v1611 = vlaneseq
      %v1612 = vshrl.u32 %v1611, 7
      %v1613 = vsub.s32 0, %v1612
      %v1614 = vrot.slane %v1609, %v1613
      %v1616 = vadd.f32 %v1607, %v1614
      %v1617 = vadd.f32 %v1608, %v1614
      %1618 = vst.msk [vmem:[%s548] sm:$0xff] %vm576, %v1616
      %1619 = vst.msk [vmem:[%s548 + $0x8] sm:$0xff] %vm576, %v1617
      %p1620 = scmp.lt.s32.totalorder %s28, 1
      %s1621 = scalar_select %p1620, %s28, 1
      %s1622 = smul.addr %s1621, 2
      %s1623 = smul.addr %s1622, 8
      %s1624 = scalar_lea.vmem %s17, %s1623
      // Predicated region
      $region89: #{transformer_encoder_2d_forward.2} parent=87 // pred_check
        %p1625 = pneg %p408
      $region90: #{transformer_encoder_2d_forward.2} parent=87 // pred_check_branch
        %1627 = sbr.rel (%p1625) target = $region92
      $region91: #{transformer_encoder_2d_forward.2} parent=87 // pred_region
        _
      $region92: #{transformer_encoder_2d_forward.2} parent=87 // pred_fallthru
        _
    $region88: #{transformer_encoder_2d_forward.2} parent=5 // pred_fallthru
      _
    %p1628 = scmp.le.s32.totalorder 2, %s23
    // Predicated region
    $region93: #{transformer_encoder_2d_forward.2} parent=5 // pred_check
      %p1629 = pneg %p1628
    $region94: #{transformer_encoder_2d_forward.2} parent=5 // pred_check_branch
      %1631 = sbr.rel (%p1629) target = $region96
    $region95: #{transformer_encoder_2d_forward.2} parent=5 // pred_region
      %s1632 = ssub.s32 %s23, 2
      // Predicated region
      $region97: #{transformer_encoder_2d_forward.2} parent=95 // pred_check
        %p1633 = pneg %p414
      $region98: #{transformer_encoder_2d_forward.2} parent=95 // pred_check_branch
        %1635 = sbr.rel (%p1633) target = $region100
      $region99: #{transformer_encoder_2d_forward.2} parent=95 // pred_region
        %p1636 = scmp.lt.s32.totalorder %s29, 1
        %s1637 = scalar_select %p1636, %s29, 1
        %s1638 = smul.addr %s1637, 2
        %s1639 = smul.addr %s1638, 8
        %s1640 = scalar_lea.vmem %s17, %s1639
      $region100: #{transformer_encoder_2d_forward.2} parent=95 // pred_fallthru
        _
    $region96: #{transformer_encoder_2d_forward.2} parent=5 // pred_fallthru
      _
  $region6: #{transformer_encoder_2d_forward.2} parent=0 // loop_footer
    %s27 = sadd.s32 1, %s23
  $region7: #{transformer_encoder_2d_forward.2} parent=0 // loop_footer_branch
    %22 = sbr.rel target = $region3
  $region8: #{transformer_encoder_2d_forward.2} parent=0 // loop_exit
    _

// kernel: transformer_encoder_2d_forward.3
$region0: #{transformer_encoder_2d_forward.3}
  #allocation0 [shape = 'u32[]', space=smem, size = 0x4, offset = 0x4, fixed_abs, tag = 'smem constant byte address 0x4 - core index']
  #allocation1 [shape = 'u32[144,128]{1,0:T(1,128)}', space=vmem, size = 0x12000, scoped, tag = 'internal scratch']
  #allocation2 [shape = 'bf16[16,32]{1,0:T(16,128)(2,1)}', space=vmem, size = 0x1000, scoped, tag = 'scratch operand']
  #allocation3 [shape = 'bf16[16,32]{1,0:T(16,128)(2,1)}', space=vmem, size = 0x1000, scoped, tag = 'scratch operand']
  #allocation4 [shape = 'bf16[16,32]{1,0:T(16,128)(2,1)}', space=vmem, size = 0x1000, scoped, tag = 'scratch operand']
  #allocation5 [shape = 'f32[16,32]{1,0:T(8,128)}', space=vmem, size = 0x2000, scoped, tag = 'scratch operand']
  %s0 = inlined_call_operand.vmem [shape: f32[2,16,32], index: 0, kind: input, shape index: {}]
  %s1 = inlined_call_operand.vmem [shape: bf16[32,32], index: 1, kind: input, shape index: {}]
  %s2 = inlined_call_operand.vmem [shape: f32[1,32], index: 2, kind: input, shape index: {}]
  %s3 = inlined_call_operand.vmem [shape: bf16[32,32], index: 3, kind: input, shape index: {}]
  %s4 = inlined_call_operand.vmem [shape: f32[1,32], index: 4, kind: input, shape index: {}]
  %s5 = inlined_call_operand.vmem [shape: bf16[32,32], index: 5, kind: input, shape index: {}]
  %s6 = inlined_call_operand.vmem [shape: f32[1,32], index: 6, kind: input, shape index: {}]
  %s7 = inlined_call_operand.vmem [shape: bf16[32,32], index: 7, kind: input, shape index: {}]
  %s8 = inlined_call_operand.vmem [shape: f32[1,32], index: 8, kind: input, shape index: {}]
  %s9 = inlined_call_operand.vmem [shape: f32[1,32], index: 9, kind: input, shape index: {}]
  %s10 = inlined_call_operand.vmem [shape: f32[1,32], index: 10, kind: input, shape index: {}]
  %s11 = inlined_call_operand.vmem [shape: bf16[32,64], index: 11, kind: input, shape index: {}]
  %s12 = inlined_call_operand.vmem [shape: f32[1,64], index: 12, kind: input, shape index: {}]
  %s13 = inlined_call_operand.vmem [shape: bf16[64,32], index: 13, kind: input, shape index: {}]
  %s14 = inlined_call_operand.vmem [shape: f32[1,32], index: 14, kind: input, shape index: {}]
  %s15 = inlined_call_operand.vmem [shape: f32[1,32], index: 15, kind: input, shape index: {}]
  %s16 = inlined_call_operand.vmem [shape: f32[1,32], index: 16, kind: input, shape index: {}]
  %s17 = inlined_call_operand.hbm [shape: f32[2,16,32], index: 17, kind: output, shape index: {}]
  %s18 = sld [smem:[#allocation0]]
  $region101: #{transformer_encoder_2d_forward.3} parent=0
    _
  %s20 = ssub.s32 1, %s18
  %s21 = scalar_select 0, %s20, %s18
  $region1: #{transformer_encoder_2d_forward.3} parent=0
    #allocation6 [shape = 'u8[16384]{0}', space=vmem, size = 0x4000, scoped, tag = 'output window, operand 0']
    #allocation7 [shape = 's32[2]{0}', space=sflag, size = 0x8, scoped, tag = 'scoped memory for transformer_encoder_2d_forward.3']
    %22 = vsyncpa [#allocation7], 0
    %s23 = scalar_lea.sflag [#allocation7], 1
    %24 = vsyncpa %s23, 0
    loop: start=0, step=1, limit=4
    $region2: #{transformer_encoder_2d_forward.3} parent=1 // loop_pre_header
      _
    $region3: #{transformer_encoder_2d_forward.3} parent=1 // loop_header
      %s26 = sphi 0, %s30
      %p27 = scmp.ge.s32.totalorder %s26, 4
      %s36 = sphi 0, %s38
      %s39 = sphi 0, %s36
      %s40 = sphi 0, %s39
      %s56 = sphi 0, %s40
      %s60 = sphi 0, %s60
      %s62 = sphi 0, %s60
      %s63 = sphi 0, %s62
      %s77 = sphi 0, %s63
      %s81 = sphi 0, %s81
      %s83 = sphi 0, %s81
      %s84 = sphi 0, %s83
      %s98 = sphi 0, %s84
      %s102 = sphi 0, %s102
      %s104 = sphi 0, %s102
      %s105 = sphi 0, %s104
      %s119 = sphi 0, %s105
      %s123 = sphi 0, %s123
      %s125 = sphi 0, %s123
      %s126 = sphi 0, %s125
      %s140 = sphi 0, %s126
      %s144 = sphi 0, %s144
      %s146 = sphi 0, %s144
      %s147 = sphi 0, %s146
      %s161 = sphi 0, %s147
      %s165 = sphi 0, %s165
      %s167 = sphi 0, %s165
      %s168 = sphi 0, %s167
      %s182 = sphi 0, %s168
      %s186 = sphi 0, %s186
      %s188 = sphi 0, %s186
      %s189 = sphi 0, %s188
      %s203 = sphi 0, %s189
      %s207 = sphi 0, %s207
      %s209 = sphi 0, %s207
      %s210 = sphi 0, %s209
      %s224 = sphi 0, %s210
      %s228 = sphi 0, %s228
      %s230 = sphi 0, %s228
      %s231 = sphi 0, %s230
      %s245 = sphi 0, %s231
      %s249 = sphi 0, %s249
      %s251 = sphi 0, %s249
      %s252 = sphi 0, %s251
      %s266 = sphi 0, %s252
      %s270 = sphi 0, %s270
      %s272 = sphi 0, %s270
      %s273 = sphi 0, %s272
      %s287 = sphi 0, %s273
      %s291 = sphi 0, %s291
      %s293 = sphi 0, %s291
      %s294 = sphi 0, %s293
      %s308 = sphi 0, %s294
      %s312 = sphi 0, %s312
      %s314 = sphi 0, %s312
      %s315 = sphi 0, %s314
      %s329 = sphi 0, %s315
      %s333 = sphi 0, %s333
      %s335 = sphi 0, %s333
      %s336 = sphi 0, %s335
      %s350 = sphi 0, %s336
      %s354 = sphi 0, %s354
      %s356 = sphi 0, %s354
      %s357 = sphi 0, %s356
      %s371 = sphi 0, %s357
      %s375 = sphi 0, %s375
      %s377 = sphi 0, %s375
      %s378 = sphi 0, %s377
      %s392 = sphi 0, %s378
      %s398 = sphi 0, %s400
      %s401 = sphi 0, %s398
      %s402 = sphi 0, %s401
      %s418 = sphi 0, %s402
    $region4: #{transformer_encoder_2d_forward.3} parent=1 // loop_header_branch
      %29 = sbr.rel (%p27) target = $region8
    $region5: #{transformer_encoder_2d_forward.3} parent=1 // loop_body
      %s31 = ssub.s32 %s26, 1
      %s32 = ssub.s32 %s26, 2
      %s33 = sadd.s32 %s26, 1
      %s34 = ssub.s32 %s26, %s33
      %p35 = scmp.eq.s32.totalorder %s34, 0
      %s37 = sadd.s32 %s36, 1
      %s38 = scalar_select %p35, %s36, %s37
      %p41 = pneg %p35
      %p42 = scmp.eq.s32.totalorder %s26, 1
      %p43 = por %p41, %p42
      %p44 = scmp.ne.s32.totalorder %s36, %s39
      %p45 = scmp.eq.s32.totalorder %s26, 0
      %p46 = por %p44, %p45
      %p47 = scmp.ne.s32.totalorder %s36, %s39
      %p48 = scmp.eq.s32.totalorder %s31, 1
      %p49 = por %p47, %p48
      %p50 = scmp.ne.s32.totalorder %s39, %s40
      %p51 = scmp.eq.s32.totalorder %s31, 0
      %p52 = por %p50, %p51
      %p53 = scmp.ne.s32.totalorder %s39, %s40
      %p54 = scmp.eq.s32.totalorder %s32, 1
      %p55 = por %p53, %p54
      %p57 = scmp.ne.s32.totalorder %s40, %s56
      %p58 = scmp.eq.s32.totalorder %s32, 0
      %p59 = por %p57, %p58
      %s61 = sadd.s32 %s60, 1
      %p64 = scmp.eq.s32.totalorder %s26, 1
      %p65 = scmp.ne.s32.totalorder %s60, %s62
      %p66 = scmp.eq.s32.totalorder %s26, 0
      %p67 = por %p65, %p66
      %p68 = scmp.ne.s32.totalorder %s60, %s62
      %p69 = scmp.eq.s32.totalorder %s31, 1
      %p70 = por %p68, %p69
      %p71 = scmp.ne.s32.totalorder %s62, %s63
      %p72 = scmp.eq.s32.totalorder %s31, 0
      %p73 = por %p71, %p72
      %p74 = scmp.ne.s32.totalorder %s62, %s63
      %p75 = scmp.eq.s32.totalorder %s32, 1
      %p76 = por %p74, %p75
      %p78 = scmp.ne.s32.totalorder %s63, %s77
      %p79 = scmp.eq.s32.totalorder %s32, 0
      %p80 = por %p78, %p79
      %s82 = sadd.s32 %s81, 1
      %p85 = scmp.eq.s32.totalorder %s26, 1
      %p86 = scmp.ne.s32.totalorder %s81, %s83
      %p87 = scmp.eq.s32.totalorder %s26, 0
      %p88 = por %p86, %p87
      %p89 = scmp.ne.s32.totalorder %s81, %s83
      %p90 = scmp.eq.s32.totalorder %s31, 1
      %p91 = por %p89, %p90
      %p92 = scmp.ne.s32.totalorder %s83, %s84
      %p93 = scmp.eq.s32.totalorder %s31, 0
      %p94 = por %p92, %p93
      %p95 = scmp.ne.s32.totalorder %s83, %s84
      %p96 = scmp.eq.s32.totalorder %s32, 1
      %p97 = por %p95, %p96
      %p99 = scmp.ne.s32.totalorder %s84, %s98
      %p100 = scmp.eq.s32.totalorder %s32, 0
      %p101 = por %p99, %p100
      %s103 = sadd.s32 %s102, 1
      %p106 = scmp.eq.s32.totalorder %s26, 1
      %p107 = scmp.ne.s32.totalorder %s102, %s104
      %p108 = scmp.eq.s32.totalorder %s26, 0
      %p109 = por %p107, %p108
      %p110 = scmp.ne.s32.totalorder %s102, %s104
      %p111 = scmp.eq.s32.totalorder %s31, 1
      %p112 = por %p110, %p111
      %p113 = scmp.ne.s32.totalorder %s104, %s105
      %p114 = scmp.eq.s32.totalorder %s31, 0
      %p115 = por %p113, %p114
      %p116 = scmp.ne.s32.totalorder %s104, %s105
      %p117 = scmp.eq.s32.totalorder %s32, 1
      %p118 = por %p116, %p117
      %p120 = scmp.ne.s32.totalorder %s105, %s119
      %p121 = scmp.eq.s32.totalorder %s32, 0
      %p122 = por %p120, %p121
      %s124 = sadd.s32 %s123, 1
      %p127 = scmp.eq.s32.totalorder %s26, 1
      %p128 = scmp.ne.s32.totalorder %s123, %s125
      %p129 = scmp.eq.s32.totalorder %s26, 0
      %p130 = por %p128, %p129
      %p131 = scmp.ne.s32.totalorder %s123, %s125
      %p132 = scmp.eq.s32.totalorder %s31, 1
      %p133 = por %p131, %p132
      %p134 = scmp.ne.s32.totalorder %s125, %s126
      %p135 = scmp.eq.s32.totalorder %s31, 0
      %p136 = por %p134, %p135
      %p137 = scmp.ne.s32.totalorder %s125, %s126
      %p138 = scmp.eq.s32.totalorder %s32, 1
      %p139 = por %p137, %p138
      %p141 = scmp.ne.s32.totalorder %s126, %s140
      %p142 = scmp.eq.s32.totalorder %s32, 0
      %p143 = por %p141, %p142
      %s145 = sadd.s32 %s144, 1
      %p148 = scmp.eq.s32.totalorder %s26, 1
      %p149 = scmp.ne.s32.totalorder %s144, %s146
      %p150 = scmp.eq.s32.totalorder %s26, 0
      %p151 = por %p149, %p150
      %p152 = scmp.ne.s32.totalorder %s144, %s146
      %p153 = scmp.eq.s32.totalorder %s31, 1
      %p154 = por %p152, %p153
      %p155 = scmp.ne.s32.totalorder %s146, %s147
      %p156 = scmp.eq.s32.totalorder %s31, 0
      %p157 = por %p155, %p156
      %p158 = scmp.ne.s32.totalorder %s146, %s147
      %p159 = scmp.eq.s32.totalorder %s32, 1
      %p160 = por %p158, %p159
      %p162 = scmp.ne.s32.totalorder %s147, %s161
      %p163 = scmp.eq.s32.totalorder %s32, 0
      %p164 = por %p162, %p163
      %s166 = sadd.s32 %s165, 1
      %p169 = scmp.eq.s32.totalorder %s26, 1
      %p170 = scmp.ne.s32.totalorder %s165, %s167
      %p171 = scmp.eq.s32.totalorder %s26, 0
      %p172 = por %p170, %p171
      %p173 = scmp.ne.s32.totalorder %s165, %s167
      %p174 = scmp.eq.s32.totalorder %s31, 1
      %p175 = por %p173, %p174
      %p176 = scmp.ne.s32.totalorder %s167, %s168
      %p177 = scmp.eq.s32.totalorder %s31, 0
      %p178 = por %p176, %p177
      %p179 = scmp.ne.s32.totalorder %s167, %s168
      %p180 = scmp.eq.s32.totalorder %s32, 1
      %p181 = por %p179, %p180
      %p183 = scmp.ne.s32.totalorder %s168, %s182
      %p184 = scmp.eq.s32.totalorder %s32, 0
      %p185 = por %p183, %p184
      %s187 = sadd.s32 %s186, 1
      %p190 = scmp.eq.s32.totalorder %s26, 1
      %p191 = scmp.ne.s32.totalorder %s186, %s188
      %p192 = scmp.eq.s32.totalorder %s26, 0
      %p193 = por %p191, %p192
      %p194 = scmp.ne.s32.totalorder %s186, %s188
      %p195 = scmp.eq.s32.totalorder %s31, 1
      %p196 = por %p194, %p195
      %p197 = scmp.ne.s32.totalorder %s188, %s189
      %p198 = scmp.eq.s32.totalorder %s31, 0
      %p199 = por %p197, %p198
      %p200 = scmp.ne.s32.totalorder %s188, %s189
      %p201 = scmp.eq.s32.totalorder %s32, 1
      %p202 = por %p200, %p201
      %p204 = scmp.ne.s32.totalorder %s189, %s203
      %p205 = scmp.eq.s32.totalorder %s32, 0
      %p206 = por %p204, %p205
      %s208 = sadd.s32 %s207, 1
      %p211 = scmp.eq.s32.totalorder %s26, 1
      %p212 = scmp.ne.s32.totalorder %s207, %s209
      %p213 = scmp.eq.s32.totalorder %s26, 0
      %p214 = por %p212, %p213
      %p215 = scmp.ne.s32.totalorder %s207, %s209
      %p216 = scmp.eq.s32.totalorder %s31, 1
      %p217 = por %p215, %p216
      %p218 = scmp.ne.s32.totalorder %s209, %s210
      %p219 = scmp.eq.s32.totalorder %s31, 0
      %p220 = por %p218, %p219
      %p221 = scmp.ne.s32.totalorder %s209, %s210
      %p222 = scmp.eq.s32.totalorder %s32, 1
      %p223 = por %p221, %p222
      %p225 = scmp.ne.s32.totalorder %s210, %s224
      %p226 = scmp.eq.s32.totalorder %s32, 0
      %p227 = por %p225, %p226
      %s229 = sadd.s32 %s228, 1
      %p232 = scmp.eq.s32.totalorder %s26, 1
      %p233 = scmp.ne.s32.totalorder %s228, %s230
      %p234 = scmp.eq.s32.totalorder %s26, 0
      %p235 = por %p233, %p234
      %p236 = scmp.ne.s32.totalorder %s228, %s230
      %p237 = scmp.eq.s32.totalorder %s31, 1
      %p238 = por %p236, %p237
      %p239 = scmp.ne.s32.totalorder %s230, %s231
      %p240 = scmp.eq.s32.totalorder %s31, 0
      %p241 = por %p239, %p240
      %p242 = scmp.ne.s32.totalorder %s230, %s231
      %p243 = scmp.eq.s32.totalorder %s32, 1
      %p244 = por %p242, %p243
      %p246 = scmp.ne.s32.totalorder %s231, %s245
      %p247 = scmp.eq.s32.totalorder %s32, 0
      %p248 = por %p246, %p247
      %s250 = sadd.s32 %s249, 1
      %p253 = scmp.eq.s32.totalorder %s26, 1
      %p254 = scmp.ne.s32.totalorder %s249, %s251
      %p255 = scmp.eq.s32.totalorder %s26, 0
      %p256 = por %p254, %p255
      %p257 = scmp.ne.s32.totalorder %s249, %s251
      %p258 = scmp.eq.s32.totalorder %s31, 1
      %p259 = por %p257, %p258
      %p260 = scmp.ne.s32.totalorder %s251, %s252
      %p261 = scmp.eq.s32.totalorder %s31, 0
      %p262 = por %p260, %p261
      %p263 = scmp.ne.s32.totalorder %s251, %s252
      %p264 = scmp.eq.s32.totalorder %s32, 1
      %p265 = por %p263, %p264
      %p267 = scmp.ne.s32.totalorder %s252, %s266
      %p268 = scmp.eq.s32.totalorder %s32, 0
      %p269 = por %p267, %p268
      %s271 = sadd.s32 %s270, 1
      %p274 = scmp.eq.s32.totalorder %s26, 1
      %p275 = scmp.ne.s32.totalorder %s270, %s272
      %p276 = scmp.eq.s32.totalorder %s26, 0
      %p277 = por %p275, %p276
      %p278 = scmp.ne.s32.totalorder %s270, %s272
      %p279 = scmp.eq.s32.totalorder %s31, 1
      %p280 = por %p278, %p279
      %p281 = scmp.ne.s32.totalorder %s272, %s273
      %p282 = scmp.eq.s32.totalorder %s31, 0
      %p283 = por %p281, %p282
      %p284 = scmp.ne.s32.totalorder %s272, %s273
      %p285 = scmp.eq.s32.totalorder %s32, 1
      %p286 = por %p284, %p285
      %p288 = scmp.ne.s32.totalorder %s273, %s287
      %p289 = scmp.eq.s32.totalorder %s32, 0
      %p290 = por %p288, %p289
      %s292 = sadd.s32 %s291, 1
      %p295 = scmp.eq.s32.totalorder %s26, 1
      %p296 = scmp.ne.s32.totalorder %s291, %s293
      %p297 = scmp.eq.s32.totalorder %s26, 0
      %p298 = por %p296, %p297
      %p299 = scmp.ne.s32.totalorder %s291, %s293
      %p300 = scmp.eq.s32.totalorder %s31, 1
      %p301 = por %p299, %p300
      %p302 = scmp.ne.s32.totalorder %s293, %s294
      %p303 = scmp.eq.s32.totalorder %s31, 0
      %p304 = por %p302, %p303
      %p305 = scmp.ne.s32.totalorder %s293, %s294
      %p306 = scmp.eq.s32.totalorder %s32, 1
      %p307 = por %p305, %p306
      %p309 = scmp.ne.s32.totalorder %s294, %s308
      %p310 = scmp.eq.s32.totalorder %s32, 0
      %p311 = por %p309, %p310
      %s313 = sadd.s32 %s312, 1
      %p316 = scmp.eq.s32.totalorder %s26, 1
      %p317 = scmp.ne.s32.totalorder %s312, %s314
      %p318 = scmp.eq.s32.totalorder %s26, 0
      %p319 = por %p317, %p318
      %p320 = scmp.ne.s32.totalorder %s312, %s314
      %p321 = scmp.eq.s32.totalorder %s31, 1
      %p322 = por %p320, %p321
      %p323 = scmp.ne.s32.totalorder %s314, %s315
      %p324 = scmp.eq.s32.totalorder %s31, 0
      %p325 = por %p323, %p324
      %p326 = scmp.ne.s32.totalorder %s314, %s315
      %p327 = scmp.eq.s32.totalorder %s32, 1
      %p328 = por %p326, %p327
      %p330 = scmp.ne.s32.totalorder %s315, %s329
      %p331 = scmp.eq.s32.totalorder %s32, 0
      %p332 = por %p330, %p331
      %s334 = sadd.s32 %s333, 1
      %p337 = scmp.eq.s32.totalorder %s26, 1
      %p338 = scmp.ne.s32.totalorder %s333, %s335
      %p339 = scmp.eq.s32.totalorder %s26, 0
      %p340 = por %p338, %p339
      %p341 = scmp.ne.s32.totalorder %s333, %s335
      %p342 = scmp.eq.s32.totalorder %s31, 1
      %p343 = por %p341, %p342
      %p344 = scmp.ne.s32.totalorder %s335, %s336
      %p345 = scmp.eq.s32.totalorder %s31, 0
      %p346 = por %p344, %p345
      %p347 = scmp.ne.s32.totalorder %s335, %s336
      %p348 = scmp.eq.s32.totalorder %s32, 1
      %p349 = por %p347, %p348
      %p351 = scmp.ne.s32.totalorder %s336, %s350
      %p352 = scmp.eq.s32.totalorder %s32, 0
      %p353 = por %p351, %p352
      %s355 = sadd.s32 %s354, 1
      %p358 = scmp.eq.s32.totalorder %s26, 1
      %p359 = scmp.ne.s32.totalorder %s354, %s356
      %p360 = scmp.eq.s32.totalorder %s26, 0
      %p361 = por %p359, %p360
      %p362 = scmp.ne.s32.totalorder %s354, %s356
      %p363 = scmp.eq.s32.totalorder %s31, 1
      %p364 = por %p362, %p363
      %p365 = scmp.ne.s32.totalorder %s356, %s357
      %p366 = scmp.eq.s32.totalorder %s31, 0
      %p367 = por %p365, %p366
      %p368 = scmp.ne.s32.totalorder %s356, %s357
      %p369 = scmp.eq.s32.totalorder %s32, 1
      %p370 = por %p368, %p369
      %p372 = scmp.ne.s32.totalorder %s357, %s371
      %p373 = scmp.eq.s32.totalorder %s32, 0
      %p374 = por %p372, %p373
      %s376 = sadd.s32 %s375, 1
      %p379 = scmp.eq.s32.totalorder %s26, 1
      %p380 = scmp.ne.s32.totalorder %s375, %s377
      %p381 = scmp.eq.s32.totalorder %s26, 0
      %p382 = por %p380, %p381
      %p383 = scmp.ne.s32.totalorder %s375, %s377
      %p384 = scmp.eq.s32.totalorder %s31, 1
      %p385 = por %p383, %p384
      %p386 = scmp.ne.s32.totalorder %s377, %s378
      %p387 = scmp.eq.s32.totalorder %s31, 0
      %p388 = por %p386, %p387
      %p389 = scmp.ne.s32.totalorder %s377, %s378
      %p390 = scmp.eq.s32.totalorder %s32, 1
      %p391 = por %p389, %p390
      %p393 = scmp.ne.s32.totalorder %s378, %s392
      %p394 = scmp.eq.s32.totalorder %s32, 0
      %p395 = por %p393, %p394
      %s396 = ssub.s32 %s26, %s33
      %p397 = scmp.eq.s32.totalorder %s396, 0
      %s399 = sadd.s32 %s398, 1
      %s400 = scalar_select %p397, %s398, %s399
      %p403 = pneg %p397
      %p404 = scmp.eq.s32.totalorder %s26, 1
      %p405 = por %p403, %p404
      %p406 = scmp.ne.s32.totalorder %s398, %s401
      %p407 = scmp.eq.s32.totalorder %s26, 0
      %p408 = por %p406, %p407
      %p409 = scmp.ne.s32.totalorder %s398, %s401
      %p410 = scmp.eq.s32.totalorder %s31, 1
      %p411 = por %p409, %p410
      %p412 = scmp.ne.s32.totalorder %s401, %s402
      %p413 = scmp.eq.s32.totalorder %s31, 0
      %p414 = por %p412, %p413
      %p415 = scmp.ne.s32.totalorder %s401, %s402
      %p416 = scmp.eq.s32.totalorder %s32, 1
      %p417 = por %p415, %p416
      %p419 = scmp.ne.s32.totalorder %s402, %s418
      %p420 = scmp.eq.s32.totalorder %s32, 0
      %p421 = por %p419, %p420
      %p422 = scmp.le.s32.totalorder 1, %s26
      %p423 = scmp.lt.s32.totalorder %s26, 3
      %p424 = pnand %p422, %p423
      %p425 = pneg %p424
      // Predicated region
      $region9: #{transformer_encoder_2d_forward.3} parent=5 // pred_check
        _
      $region10: #{transformer_encoder_2d_forward.3} parent=5 // pred_check_branch
        %427 = sbr.rel (%p424) target = $region12
      $region11: #{transformer_encoder_2d_forward.3} parent=5 // pred_region
        %s428 = ssub.s32 %s26, 1
        // Predicated region
        $region13: #{transformer_encoder_2d_forward.3} parent=11 // pred_check
          %p429 = pneg %p73
        $region14: #{transformer_encoder_2d_forward.3} parent=11 // pred_check_branch
          %431 = sbr.rel (%p429) target = $region16
        $region15: #{transformer_encoder_2d_forward.3} parent=11 // pred_region
          _
        $region16: #{transformer_encoder_2d_forward.3} parent=11 // pred_fallthru
          _
        // Predicated region
        $region17: #{transformer_encoder_2d_forward.3} parent=11 // pred_check
          %p432 = pneg %p94
        $region18: #{transformer_encoder_2d_forward.3} parent=11 // pred_check_branch
          %434 = sbr.rel (%p432) target = $region20
        $region19: #{transformer_encoder_2d_forward.3} parent=11 // pred_region
          _
        $region20: #{transformer_encoder_2d_forward.3} parent=11 // pred_fallthru
          _
        // Predicated region
        $region21: #{transformer_encoder_2d_forward.3} parent=11 // pred_check
          %p435 = pneg %p115
        $region22: #{transformer_encoder_2d_forward.3} parent=11 // pred_check_branch
          %437 = sbr.rel (%p435) target = $region24
        $region23: #{transformer_encoder_2d_forward.3} parent=11 // pred_region
          _
        $region24: #{transformer_encoder_2d_forward.3} parent=11 // pred_fallthru
          _
        // Predicated region
        $region25: #{transformer_encoder_2d_forward.3} parent=11 // pred_check
          %p438 = pneg %p136
        $region26: #{transformer_encoder_2d_forward.3} parent=11 // pred_check_branch
          %440 = sbr.rel (%p438) target = $region28
        $region27: #{transformer_encoder_2d_forward.3} parent=11 // pred_region
          _
        $region28: #{transformer_encoder_2d_forward.3} parent=11 // pred_fallthru
          _
        // Predicated region
        $region29: #{transformer_encoder_2d_forward.3} parent=11 // pred_check
          %p441 = pneg %p157
        $region30: #{transformer_encoder_2d_forward.3} parent=11 // pred_check_branch
          %443 = sbr.rel (%p441) target = $region32
        $region31: #{transformer_encoder_2d_forward.3} parent=11 // pred_region
          _
        $region32: #{transformer_encoder_2d_forward.3} parent=11 // pred_fallthru
          _
        // Predicated region
        $region33: #{transformer_encoder_2d_forward.3} parent=11 // pred_check
          %p444 = pneg %p178
        $region34: #{transformer_encoder_2d_forward.3} parent=11 // pred_check_branch
          %446 = sbr.rel (%p444) target = $region36
        $region35: #{transformer_encoder_2d_forward.3} parent=11 // pred_region
          _
        $region36: #{transformer_encoder_2d_forward.3} parent=11 // pred_fallthru
          _
        // Predicated region
        $region37: #{transformer_encoder_2d_forward.3} parent=11 // pred_check
          %p447 = pneg %p199
        $region38: #{transformer_encoder_2d_forward.3} parent=11 // pred_check_branch
          %449 = sbr.rel (%p447) target = $region40
        $region39: #{transformer_encoder_2d_forward.3} parent=11 // pred_region
          _
        $region40: #{transformer_encoder_2d_forward.3} parent=11 // pred_fallthru
          _
        // Predicated region
        $region41: #{transformer_encoder_2d_forward.3} parent=11 // pred_check
          %p450 = pneg %p220
        $region42: #{transformer_encoder_2d_forward.3} parent=11 // pred_check_branch
          %452 = sbr.rel (%p450) target = $region44
        $region43: #{transformer_encoder_2d_forward.3} parent=11 // pred_region
          _
        $region44: #{transformer_encoder_2d_forward.3} parent=11 // pred_fallthru
          _
        // Predicated region
        $region45: #{transformer_encoder_2d_forward.3} parent=11 // pred_check
          %p453 = pneg %p241
        $region46: #{transformer_encoder_2d_forward.3} parent=11 // pred_check_branch
          %455 = sbr.rel (%p453) target = $region48
        $region47: #{transformer_encoder_2d_forward.3} parent=11 // pred_region
          _
        $region48: #{transformer_encoder_2d_forward.3} parent=11 // pred_fallthru
          _
        // Predicated region
        $region49: #{transformer_encoder_2d_forward.3} parent=11 // pred_check
          %p456 = pneg %p262
        $region50: #{transformer_encoder_2d_forward.3} parent=11 // pred_check_branch
          %458 = sbr.rel (%p456) target = $region52
        $region51: #{transformer_encoder_2d_forward.3} parent=11 // pred_region
          _
        $region52: #{transformer_encoder_2d_forward.3} parent=11 // pred_fallthru
          _
        // Predicated region
        $region53: #{transformer_encoder_2d_forward.3} parent=11 // pred_check
          %p459 = pneg %p283
        $region54: #{transformer_encoder_2d_forward.3} parent=11 // pred_check_branch
          %461 = sbr.rel (%p459) target = $region56
        $region55: #{transformer_encoder_2d_forward.3} parent=11 // pred_region
          _
        $region56: #{transformer_encoder_2d_forward.3} parent=11 // pred_fallthru
          _
        // Predicated region
        $region57: #{transformer_encoder_2d_forward.3} parent=11 // pred_check
          %p462 = pneg %p304
        $region58: #{transformer_encoder_2d_forward.3} parent=11 // pred_check_branch
          %464 = sbr.rel (%p462) target = $region60
        $region59: #{transformer_encoder_2d_forward.3} parent=11 // pred_region
          _
        $region60: #{transformer_encoder_2d_forward.3} parent=11 // pred_fallthru
          _
        // Predicated region
        $region61: #{transformer_encoder_2d_forward.3} parent=11 // pred_check
          %p465 = pneg %p325
        $region62: #{transformer_encoder_2d_forward.3} parent=11 // pred_check_branch
          %467 = sbr.rel (%p465) target = $region64
        $region63: #{transformer_encoder_2d_forward.3} parent=11 // pred_region
          _
        $region64: #{transformer_encoder_2d_forward.3} parent=11 // pred_fallthru
          _
        // Predicated region
        $region65: #{transformer_encoder_2d_forward.3} parent=11 // pred_check
          %p468 = pneg %p346
        $region66: #{transformer_encoder_2d_forward.3} parent=11 // pred_check_branch
          %470 = sbr.rel (%p468) target = $region68
        $region67: #{transformer_encoder_2d_forward.3} parent=11 // pred_region
          _
        $region68: #{transformer_encoder_2d_forward.3} parent=11 // pred_fallthru
          _
        // Predicated region
        $region69: #{transformer_encoder_2d_forward.3} parent=11 // pred_check
          %p471 = pneg %p367
        $region70: #{transformer_encoder_2d_forward.3} parent=11 // pred_check_branch
          %473 = sbr.rel (%p471) target = $region72
        $region71: #{transformer_encoder_2d_forward.3} parent=11 // pred_region
          _
        $region72: #{transformer_encoder_2d_forward.3} parent=11 // pred_fallthru
          _
        // Predicated region
        $region73: #{transformer_encoder_2d_forward.3} parent=11 // pred_check
          %p474 = pneg %p388
        $region74: #{transformer_encoder_2d_forward.3} parent=11 // pred_check_branch
          %476 = sbr.rel (%p474) target = $region76
        $region75: #{transformer_encoder_2d_forward.3} parent=11 // pred_region
          _
        $region76: #{transformer_encoder_2d_forward.3} parent=11 // pred_fallthru
          _
      $region12: #{transformer_encoder_2d_forward.3} parent=5 // pred_fallthru
        _
      %p477 = scmp.lt.s32.totalorder %s26, 2
      // Predicated region
      $region77: #{transformer_encoder_2d_forward.3} parent=5 // pred_check
        %p478 = pneg %p477
      $region78: #{transformer_encoder_2d_forward.3} parent=5 // pred_check_branch
        %480 = sbr.rel (%p478) target = $region80
      $region79: #{transformer_encoder_2d_forward.3} parent=5 // pred_region
        // Predicated region
        $region81: #{transformer_encoder_2d_forward.3} parent=79 // pred_check
          %p481 = pneg %p46
        $region82: #{transformer_encoder_2d_forward.3} parent=79 // pred_check_branch
          %483 = sbr.rel (%p481) target = $region84
        $region83: #{transformer_encoder_2d_forward.3} parent=79 // pred_region
          %p484 = scmp.lt.s32.totalorder %s26, 1
          %s485 = scalar_select %p484, %s26, 1
          %s486 = smul.addr %s485, 2
          %s487 = smul.addr %s486, 8
          %s488 = scalar_lea.vmem %s0, %s487
        $region84: #{transformer_encoder_2d_forward.3} parent=79 // pred_fallthru
          _
      $region80: #{transformer_encoder_2d_forward.3} parent=5 // pred_fallthru
        _
      %p489 = scmp.le.s32.totalorder 1, %s26
      %p490 = scmp.lt.s32.totalorder %s26, 3
      %p491 = pnand %p489, %p490
      %p492 = pneg %p491
      // Predicated region
      $region85: #{transformer_encoder_2d_forward.3} parent=5 // pred_check
        _
      $region86: #{transformer_encoder_2d_forward.3} parent=5 // pred_check_branch
        %494 = sbr.rel (%p491) target = $region88
      $region87: #{transformer_encoder_2d_forward.3} parent=5 // pred_region
        %s495 = ssub.s32 %s26, 1
        %p496 = scmp.lt.s32.totalorder %s31, 1
        %s497 = scalar_select %p496, %s31, 1
        %s498 = smul.addr %s497, 2
        %s499 = smul.addr %s498, 8
        %s500 = scalar_lea.vmem %s0, %s499
        %p501 = pneg %p52
        %p502 = pneg %p49
        %p503 = pneg %p73
        %p504 = pneg %p70
        %p505 = pneg %p94
        %p506 = pneg %p91
        %p507 = pneg %p115
        %p508 = pneg %p112
        %p509 = pneg %p136
        %p510 = pneg %p133
        %p511 = pneg %p157
        %p512 = pneg %p154
        %p513 = pneg %p178
        %p514 = pneg %p175
        %p515 = pneg %p199
        %p516 = pneg %p196
        %p517 = pneg %p220
        %p518 = pneg %p217
        %p519 = pneg %p241
        %p520 = pneg %p238
        %p521 = pneg %p262
        %p522 = pneg %p259
        %p523 = pneg %p283
        %p524 = pneg %p280
        %p525 = pneg %p304
        %p526 = pneg %p301
        %p527 = pneg %p325
        %p528 = pneg %p322
        %p529 = pneg %p346
        %p530 = pneg %p343
        %p531 = pneg %p367
        %p532 = pneg %p364
        %p533 = pneg %p388
        %p534 = pneg %p385
        %p535 = pneg %p414
        %p536 = pneg %p411
        %s537 = sand.u32 %s401, 1
        %s538 = scalar_lea.sflag [#allocation7], %s537
        %s539 = sand.u32 %s401, 1
        %s540 = smul.addr %s539, 16
        %s541 = scalar_lea.vmem [#allocation6], %s540
        %p542 = scmp.lt.s32.totalorder %s31, 1
        %s543 = scalar_select %p542, %s31, 1
        %s544 = smul.addr %s543, 2
        %s545 = smul.addr %s544, 8
        %s546 = scalar_lea.vmem %s0, %s545
        %v548 = vld [vmem:[%s546] sm:$0xff]
        %v549 = vld [vmem:[%s546 + $0x8] sm:$0xff]
        %v550 = vpack.c.bf16 %v549, %v548
        %v551 = vld [vmem:[%s1] sm:$0xf]
        %v552 = vld [vmem:[%s1 + $0x4] sm:$0xf]
        %v553 = vld [vmem:[%s1 + $0x8] sm:$0xf]
        %v554 = vld [vmem:[%s1 + $0xc] sm:$0xf]
        %v555 = vld [vmem:[%s2] sm:$0x1]
        %v557 = vlaneseq
        %v558 = vshrl.u32 %v557, 7
        %v559 = vsub.s32 0, %v558
        %v560 = vrot.slane %v555, %v559
        %v566 = vunpack.c.l.b16 %v551
        %v567 = vunpack.c.l.b16 %v552
        %v568 = vunpack.c.l.b16 %v553
        %v569 = vunpack.c.l.b16 %v554
        %v570 = vpack.c.b16 %v567, %v566
        %v571 = vpack.c.b16 %v569, %v568
        %vm574 = vcmask 261120
        %v576 = vsel %vm574, %v550, 0
        %578 = vmatprep.subr.bf16.mxu0 0
        %579 = vmatpush1.bf16.msra.mxu0 %v570
        %580 = vmatprep.subr.bf16.mxu0 0
        %581 = vmatpush1.bf16.msra.mxu0 %v571
        %582 = vmatprep.subr.bf16.mxu0 0
        %583 = vmatpush1.bf16.msra.mxu0 0
        %584 = vmatprep.subr.bf16.mxu0 0
        %585 = vmatpush1.bf16.msra.mxu0 0
        %586 = vmatprep.subr.bf16.mxu0 0
        %587 = vmatpush1.bf16.msra.mxu0 0
        %588 = vmatprep.subr.bf16.mxu0 0
        %589 = vmatpush1.bf16.msra.mxu0 0
        %590 = vmatprep.subr.bf16.mxu0 0
        %591 = vmatpush1.bf16.msra.mxu0 0
        %592 = vmatprep.subr.bf16.mxu0 0
        %593 = vmatpush1.bf16.msra.mxu0 0
        %594 = vmatprep.subr.bf16.mxu0 0
        %595 = vmatpush1.bf16.msra.mxu0 0
        %596 = vmatprep.subr.bf16.mxu0 0
        %597 = vmatpush1.bf16.msra.mxu0 0
        %598 = vmatprep.subr.bf16.mxu0 0
        %599 = vmatpush1.bf16.msra.mxu0 0
        %600 = vmatprep.subr.bf16.mxu0 0
        %601 = vmatpush1.bf16.msra.mxu0 0
        %602 = vmatprep.subr.bf16.mxu0 0
        %603 = vmatpush1.bf16.msra.mxu0 0
        %604 = vmatprep.subr.bf16.mxu0 0
        %605 = vmatpush1.bf16.msra.mxu0 0
        %606 = vmatprep.subr.bf16.mxu0 0
        %607 = vmatpush1.bf16.msra.mxu0 0
        %608 = vmatprep.subr.bf16.mxu0 0
        %609 = vmatpush1.bf16.msra.mxu0 0
        %610 = vmatprep.mubr.bf16.mxu0 0
        %611 = vmatmul.mubr.bf16.gmra.mrb[0].mxu0 %v576
        %v612 = vpop.f32.mrb[0].mxu0
        %v613 = vadd.f32 %v560, %v612
        %v614 = vpop.f32.mrb[0].mxu0
        %v615 = vpop.f32.mrb[0].mxu0
        %v616 = vadd.f32 %v560, %v615
        %v617 = vpop.f32.mrb[0].mxu0
        %618 = vdwg.mxu0
        %v619 = vpack.c.bf16 %v616, %v613
        %620 = vst.msk [vmem:[#allocation2] sm:$0xff] %vm574, %v619
        %v621 = vld [vmem:[%s3] sm:$0xf]
        %v622 = vld [vmem:[%s3 + $0x4] sm:$0xf]
        %v623 = vld [vmem:[%s3 + $0x8] sm:$0xf]
        %v624 = vld [vmem:[%s3 + $0xc] sm:$0xf]
        %v625 = vld [vmem:[%s4] sm:$0x1]
        %v627 = vlaneseq
        %v628 = vshrl.u32 %v627, 7
        %v629 = vsub.s32 0, %v628
        %v630 = vrot.slane %v625, %v629
        %v636 = vunpack.c.l.b16 %v621
        %v637 = vunpack.c.l.b16 %v622
        %v638 = vunpack.c.l.b16 %v623
        %v639 = vunpack.c.l.b16 %v624
        %v640 = vpack.c.b16 %v637, %v636
        %v641 = vpack.c.b16 %v639, %v638
        %644 = vmatprep.subr.bf16.mxu0 0
        %645 = vmatpush1.bf16.msra.mxu0 %v640
        %646 = vmatprep.subr.bf16.mxu0 0
        %647 = vmatpush1.bf16.msra.mxu0 %v641
        %648 = vmatprep.subr.bf16.mxu0 0
        %649 = vmatpush1.bf16.msra.mxu0 0
        %650 = vmatprep.subr.bf16.mxu0 0
        %651 = vmatpush1.bf16.msra.mxu0 0
        %652 = vmatprep.subr.bf16.mxu0 0
        %653 = vmatpush1.bf16.msra.mxu0 0
        %654 = vmatprep.subr.bf16.mxu0 0
        %655 = vmatpush1.bf16.msra.mxu0 0
        %656 = vmatprep.subr.bf16.mxu0 0
        %657 = vmatpush1.bf16.msra.mxu0 0
        %658 = vmatprep.subr.bf16.mxu0 0
        %659 = vmatpush1.bf16.msra.mxu0 0
        %660 = vmatprep.subr.bf16.mxu0 0
        %661 = vmatpush1.bf16.msra.mxu0 0
        %662 = vmatprep.subr.bf16.mxu0 0
        %663 = vmatpush1.bf16.msra.mxu0 0
        %664 = vmatprep.subr.bf16.mxu0 0
        %665 = vmatpush1.bf16.msra.mxu0 0
        %666 = vmatprep.subr.bf16.mxu0 0
        %667 = vmatpush1.bf16.msra.mxu0 0
        %668 = vmatprep.subr.bf16.mxu0 0
        %669 = vmatpush1.bf16.msra.mxu0 0
        %670 = vmatprep.subr.bf16.mxu0 0
        %671 = vmatpush1.bf16.msra.mxu0 0
        %672 = vmatprep.subr.bf16.mxu0 0
        %673 = vmatpush1.bf16.msra.mxu0 0
        %674 = vmatprep.subr.bf16.mxu0 0
        %675 = vmatpush1.bf16.msra.mxu0 0
        %676 = vmatprep.mubr.bf16.mxu0 0
        %677 = vmatmul.mubr.bf16.gmra.mrb[0].mxu0 %v576
        %v678 = vpop.f32.mrb[0].mxu0
        %v679 = vadd.f32 %v630, %v678
        %v680 = vpop.f32.mrb[0].mxu0
        %v681 = vpop.f32.mrb[0].mxu0
        %v682 = vadd.f32 %v630, %v681
        %v683 = vpop.f32.mrb[0].mxu0
        %684 = vdwg.mxu0
        %v685 = vpack.c.bf16 %v682, %v679
        %686 = vst.msk [vmem:[#allocation3] sm:$0xff] %vm574, %v685
        %v687 = vld [vmem:[%s5] sm:$0xf]
        %v688 = vld [vmem:[%s5 + $0x4] sm:$0xf]
        %v689 = vld [vmem:[%s5 + $0x8] sm:$0xf]
        %v690 = vld [vmem:[%s5 + $0xc] sm:$0xf]
        %v691 = vld [vmem:[%s6] sm:$0x1]
        %v693 = vlaneseq
        %v694 = vshrl.u32 %v693, 7
        %v695 = vsub.s32 0, %v694
        %v696 = vrot.slane %v691, %v695
        %v702 = vunpack.c.l.b16 %v687
        %v703 = vunpack.c.l.b16 %v688
        %v704 = vunpack.c.l.b16 %v689
        %v705 = vunpack.c.l.b16 %v690
        %v706 = vpack.c.b16 %v703, %v702
        %v707 = vpack.c.b16 %v705, %v704
        %710 = vmatprep.subr.bf16.mxu0 0
        %711 = vmatpush1.bf16.msra.mxu0 %v706
        %712 = vmatprep.subr.bf16.mxu0 0
        %713 = vmatpush1.bf16.msra.mxu0 %v707
        %714 = vmatprep.subr.bf16.mxu0 0
        %715 = vmatpush1.bf16.msra.mxu0 0
        %716 = vmatprep.subr.bf16.mxu0 0
        %717 = vmatpush1.bf16.msra.mxu0 0
        %718 = vmatprep.subr.bf16.mxu0 0
        %719 = vmatpush1.bf16.msra.mxu0 0
        %720 = vmatprep.subr.bf16.mxu0 0
        %721 = vmatpush1.bf16.msra.mxu0 0
        %722 = vmatprep.subr.bf16.mxu0 0
        %723 = vmatpush1.bf16.msra.mxu0 0
        %724 = vmatprep.subr.bf16.mxu0 0
        %725 = vmatpush1.bf16.msra.mxu0 0
        %726 = vmatprep.subr.bf16.mxu0 0
        %727 = vmatpush1.bf16.msra.mxu0 0
        %728 = vmatprep.subr.bf16.mxu0 0
        %729 = vmatpush1.bf16.msra.mxu0 0
        %730 = vmatprep.subr.bf16.mxu0 0
        %731 = vmatpush1.bf16.msra.mxu0 0
        %732 = vmatprep.subr.bf16.mxu0 0
        %733 = vmatpush1.bf16.msra.mxu0 0
        %734 = vmatprep.subr.bf16.mxu0 0
        %735 = vmatpush1.bf16.msra.mxu0 0
        %736 = vmatprep.subr.bf16.mxu0 0
        %737 = vmatpush1.bf16.msra.mxu0 0
        %738 = vmatprep.subr.bf16.mxu0 0
        %739 = vmatpush1.bf16.msra.mxu0 0
        %740 = vmatprep.subr.bf16.mxu0 0
        %741 = vmatpush1.bf16.msra.mxu0 0
        %742 = vmatprep.mubr.bf16.mxu0 0
        %743 = vmatmul.mubr.bf16.gmra.mrb[0].mxu0 %v576
        %v744 = vpop.f32.mrb[0].mxu0
        %v745 = vadd.f32 %v696, %v744
        %v746 = vpop.f32.mrb[0].mxu0
        %v747 = vpop.f32.mrb[0].mxu0
        %v748 = vadd.f32 %v696, %v747
        %v749 = vpop.f32.mrb[0].mxu0
        %750 = vdwg.mxu0
        %v751 = vpack.c.bf16 %v748, %v745
        %752 = vst.msk [vmem:[#allocation4] sm:$0xff] %vm574, %v751
        %v753 = vld [vmem:[#allocation2] sm:$0xff]
        %v754 = vld [vmem:[#allocation3] sm:$0xff]
        %v755 = vld [vmem:[#allocation4] sm:$0xff]
        %vm756 = vcmask 64512
        %v758 = vsel %vm756, %v753, 0
        %v761 = vsel %vm756, %v754, 0
        %763 = vmatprep.subr.bf16.mxu0 0
        %764 = vmatpush1.bf16.xpose.msra.mxu0 %v761
        %765 = vmatprep.subr.bf16.mxu0 0
        %766 = vmatpush1.bf16.xpose.msra.mxu0 0
        %767 = vmatprep.subr.bf16.mxu0 0
        %768 = vmatpush1.bf16.xpose.msra.mxu0 0
        %769 = vmatprep.subr.bf16.mxu0 0
        %770 = vmatpush1.bf16.xpose.msra.mxu0 0
        %771 = vmatprep.subr.bf16.mxu0 0
        %772 = vmatpush1.bf16.xpose.msra.mxu0 0
        %773 = vmatprep.subr.bf16.mxu0 0
        %774 = vmatpush1.bf16.xpose.msra.mxu0 0
        %775 = vmatprep.subr.bf16.mxu0 0
        %776 = vmatpush1.bf16.xpose.msra.mxu0 0
        %777 = vmatprep.subr.bf16.mxu0 0
        %778 = vmatpush1.bf16.xpose.msra.mxu0 0
        %779 = vmatprep.subr.bf16.mxu0 0
        %780 = vmatpush1.bf16.xpose.msra.mxu0 0
        %781 = vmatprep.subr.bf16.mxu0 0
        %782 = vmatpush1.bf16.xpose.msra.mxu0 0
        %783 = vmatprep.subr.bf16.mxu0 0
        %784 = vmatpush1.bf16.xpose.msra.mxu0 0
        %785 = vmatprep.subr.bf16.mxu0 0
        %786 = vmatpush1.bf16.xpose.msra.mxu0 0
        %787 = vmatprep.subr.bf16.mxu0 0
        %788 = vmatpush1.bf16.xpose.msra.mxu0 0
        %789 = vmatprep.subr.bf16.mxu0 0
        %790 = vmatpush1.bf16.xpose.msra.mxu0 0
        %791 = vmatprep.subr.bf16.mxu0 0
        %792 = vmatpush1.bf16.xpose.msra.mxu0 0
        %793 = vmatprep.subr.bf16.mxu0 0
        %794 = vmatpush1.bf16.xpose.msra.mxu0 0
        %795 = vmatprep.mubr.bf16.mxu0 0
        %796 = vmatmul.mubr.bf16.gmra.mrb[0].mxu0 %v758
        %v797 = vpop.f32.mrb[0].mxu0
        %v798 = vadd.f32 0.0, %v797
        %v799 = vpop.f32.mrb[0].mxu0
        %v800 = vpop.f32.mrb[0].mxu0
        %v801 = vadd.f32 0.0, %v800
        %v802 = vpop.f32.mrb[0].mxu0
        %803 = vdwg.mxu0
        %v804 = vmul.f32 %v798, 0.17677669
        %v805 = vmul.f32 %v801, 0.17677669
        %vm806 = vcmask 130048
        %v807 = vsel %vm806, %v804, -inf
        %808 = vmax.xlane.f32.xlu0 %v807
        %v809 = vpop.xlane.xlu0 %808
        %v810 = vsel %vm806, %v805, -inf
        %811 = vmax.xlane.f32.xlu0 %v810
        %v812 = vpop.xlane.xlu0 %811
        %v813 = vsub.f32 %v804, %v809
        %v814 = vsub.f32 %v805, %v812
        %v815 = vmul.f32 %v813, 1.442695
        %v816 = vpow.pop %v815
        %v817 = vmul.f32 %v814, 1.442695
        %v818 = vpow.pop %v817
        %v819 = vsel %vm806, %v816, 0.0
        %820 = vadd.xlane.f32.xlu0 %v819
        %v821 = vpop.xlane.xlu0 %820
        %v822 = vsel %vm806, %v818, 0.0
        %823 = vadd.xlane.f32.xlu0 %v822
        %v824 = vpop.xlane.xlu0 %823
        %v825 = vrcp.pop %v821
        %v826 = vrcp.pop %v824
        %v827 = vmul.f32 %v816, %v825
        %v828 = vmul.f32 %v818, %v826
        %v829 = vpack.c.bf16 %v828, %v827
        %v831 = vsel %vm806, %v829, 0
        %833 = vmatprep.subr.bf16.mxu0 0
        %834 = vmatpush1.bf16.msra.mxu0 %v755
        %835 = vmatprep.subr.bf16.mxu0 0
        %836 = vmatpush1.bf16.msra.mxu0 0
        %837 = vmatprep.subr.bf16.mxu0 0
        %838 = vmatpush1.bf16.msra.mxu0 0
        %839 = vmatprep.subr.bf16.mxu0 0
        %840 = vmatpush1.bf16.msra.mxu0 0
        %841 = vmatprep.subr.bf16.mxu0 0
        %842 = vmatpush1.bf16.msra.mxu0 0
        %843 = vmatprep.subr.bf16.mxu0 0
        %844 = vmatpush1.bf16.msra.mxu0 0
        %845 = vmatprep.subr.bf16.mxu0 0
        %846 = vmatpush1.bf16.msra.mxu0 0
        %847 = vmatprep.subr.bf16.mxu0 0
        %848 = vmatpush1.bf16.msra.mxu0 0
        %849 = vmatprep.subr.bf16.mxu0 0
        %850 = vmatpush1.bf16.msra.mxu0 0
        %851 = vmatprep.subr.bf16.mxu0 0
        %852 = vmatpush1.bf16.msra.mxu0 0
        %853 = vmatprep.subr.bf16.mxu0 0
        %854 = vmatpush1.bf16.msra.mxu0 0
        %855 = vmatprep.subr.bf16.mxu0 0
        %856 = vmatpush1.bf16.msra.mxu0 0
        %857 = vmatprep.subr.bf16.mxu0 0
        %858 = vmatpush1.bf16.msra.mxu0 0
        %859 = vmatprep.subr.bf16.mxu0 0
        %860 = vmatpush1.bf16.msra.mxu0 0
        %861 = vmatprep.subr.bf16.mxu0 0
        %862 = vmatpush1.bf16.msra.mxu0 0
        %863 = vmatprep.subr.bf16.mxu0 0
        %864 = vmatpush1.bf16.msra.mxu0 0
        %865 = vmatprep.mubr.bf16.mxu0 0
        %866 = vmatmul.mubr.bf16.gmra.mrb[0].mxu0 %v831
        %v867 = vpop.f32.mrb[0].mxu0
        %v868 = vadd.f32 0.0, %v867
        %v869 = vpop.f32.mrb[0].mxu0
        %v870 = vpop.f32.mrb[0].mxu0
        %v871 = vadd.f32 0.0, %v870
        %v872 = vpop.f32.mrb[0].mxu0
        %873 = vdwg.mxu0
        %874 = vst.msk [vmem:[#allocation5] sm:$0xff] %vm756, %v868
        %875 = vst.msk [vmem:[#allocation5 + $0x8] sm:$0xff] %vm756, %v871
        %v876 = vld [vmem:[#allocation2] sm:$0xff]
        %v877 = vld [vmem:[#allocation3] sm:$0xff]
        %v878 = vld [vmem:[#allocation4] sm:$0xff]
        %880 = vrot.lane.b32.xlu0 %v876, 120
        %v881 = vpop.permute.xlu0 %880
        %883 = vrot.lane.b32.xlu0 %v877, 120
        %v884 = vpop.permute.xlu0 %883
        %v886 = vsel %vm756, %v881, 0
        %v889 = vsel %vm756, %v884, 0
        %891 = vmatprep.subr.bf16.mxu0 0
        %892 = vmatpush1.bf16.xpose.msra.mxu0 %v889
        %893 = vmatprep.subr.bf16.mxu0 0
        %894 = vmatpush1.bf16.xpose.msra.mxu0 0
        %895 = vmatprep.subr.bf16.mxu0 0
        %896 = vmatpush1.bf16.xpose.msra.mxu0 0
        %897 = vmatprep.subr.bf16.mxu0 0
        %898 = vmatpush1.bf16.xpose.msra.mxu0 0
        %899 = vmatprep.subr.bf16.mxu0 0
        %900 = vmatpush1.bf16.xpose.msra.mxu0 0
        %901 = vmatprep.subr.bf16.mxu0 0
        %902 = vmatpush1.bf16.xpose.msra.mxu0 0
        %903 = vmatprep.subr.bf16.mxu0 0
        %904 = vmatpush1.bf16.xpose.msra.mxu0 0
        %905 = vmatprep.subr.bf16.mxu0 0
        %906 = vmatpush1.bf16.xpose.msra.mxu0 0
        %907 = vmatprep.subr.bf16.mxu0 0
        %908 = vmatpush1.bf16.xpose.msra.mxu0 0
        %909 = vmatprep.subr.bf16.mxu0 0
        %910 = vmatpush1.bf16.xpose.msra.mxu0 0
        %911 = vmatprep.subr.bf16.mxu0 0
        %912 = vmatpush1.bf16.xpose.msra.mxu0 0
        %913 = vmatprep.subr.bf16.mxu0 0
        %914 = vmatpush1.bf16.xpose.msra.mxu0 0
        %915 = vmatprep.subr.bf16.mxu0 0
        %916 = vmatpush1.bf16.xpose.msra.mxu0 0
        %917 = vmatprep.subr.bf16.mxu0 0
        %918 = vmatpush1.bf16.xpose.msra.mxu0 0
        %919 = vmatprep.subr.bf16.mxu0 0
        %920 = vmatpush1.bf16.xpose.msra.mxu0 0
        %921 = vmatprep.subr.bf16.mxu0 0
        %922 = vmatpush1.bf16.xpose.msra.mxu0 0
        %923 = vmatprep.mubr.bf16.mxu0 0
        %924 = vmatmul.mubr.bf16.gmra.mrb[0].mxu0 %v886
        %v925 = vpop.f32.mrb[0].mxu0
        %v926 = vadd.f32 0.0, %v925
        %v927 = vpop.f32.mrb[0].mxu0
        %v928 = vpop.f32.mrb[0].mxu0
        %v929 = vadd.f32 0.0, %v928
        %v930 = vpop.f32.mrb[0].mxu0
        %931 = vdwg.mxu0
        %v932 = vmul.f32 %v926, 0.17677669
        %v933 = vmul.f32 %v929, 0.17677669
        %v934 = vsel %vm806, %v932, -inf
        %935 = vmax.xlane.f32.xlu0 %v934
        %v936 = vpop.xlane.xlu0 %935
        %v937 = vsel %vm806, %v933, -inf
        %938 = vmax.xlane.f32.xlu0 %v937
        %v939 = vpop.xlane.xlu0 %938
        %v940 = vsub.f32 %v932, %v936
        %v941 = vsub.f32 %v933, %v939
        %v942 = vmul.f32 %v940, 1.442695
        %v943 = vpow.pop %v942
        %v944 = vmul.f32 %v941, 1.442695
        %v945 = vpow.pop %v944
        %v946 = vsel %vm806, %v943, 0.0
        %947 = vadd.xlane.f32.xlu0 %v946
        %v948 = vpop.xlane.xlu0 %947
        %v949 = vsel %vm806, %v945, 0.0
        %950 = vadd.xlane.f32.xlu0 %v949
        %v951 = vpop.xlane.xlu0 %950
        %v952 = vrcp.pop %v948
        %v953 = vrcp.pop %v951
        %v954 = vmul.f32 %v943, %v952
        %v955 = vmul.f32 %v945, %v953
        %v956 = vpack.c.bf16 %v955, %v954
        %958 = vrot.lane.b32.xlu0 %v878, 120
        %v959 = vpop.permute.xlu0 %958
        %v962 = vsel %vm806, %v956, 0
        %964 = vmatprep.subr.bf16.mxu0 0
        %965 = vmatpush1.bf16.msra.mxu0 %v959
        %966 = vmatprep.subr.bf16.mxu0 0
        %967 = vmatpush1.bf16.msra.mxu0 0
        %968 = vmatprep.subr.bf16.mxu0 0
        %969 = vmatpush1.bf16.msra.mxu0 0
        %970 = vmatprep.subr.bf16.mxu0 0
        %971 = vmatpush1.bf16.msra.mxu0 0
        %972 = vmatprep.subr.bf16.mxu0 0
        %973 = vmatpush1.bf16.msra.mxu0 0
        %974 = vmatprep.subr.bf16.mxu0 0
        %975 = vmatpush1.bf16.msra.mxu0 0
        %976 = vmatprep.subr.bf16.mxu0 0
        %977 = vmatpush1.bf16.msra.mxu0 0
        %978 = vmatprep.subr.bf16.mxu0 0
        %979 = vmatpush1.bf16.msra.mxu0 0
        %980 = vmatprep.subr.bf16.mxu0 0
        %981 = vmatpush1.bf16.msra.mxu0 0
        %982 = vmatprep.subr.bf16.mxu0 0
        %983 = vmatpush1.bf16.msra.mxu0 0
        %984 = vmatprep.subr.bf16.mxu0 0
        %985 = vmatpush1.bf16.msra.mxu0 0
        %986 = vmatprep.subr.bf16.mxu0 0
        %987 = vmatpush1.bf16.msra.mxu0 0
        %988 = vmatprep.subr.bf16.mxu0 0
        %989 = vmatpush1.bf16.msra.mxu0 0
        %990 = vmatprep.subr.bf16.mxu0 0
        %991 = vmatpush1.bf16.msra.mxu0 0
        %992 = vmatprep.subr.bf16.mxu0 0
        %993 = vmatpush1.bf16.msra.mxu0 0
        %994 = vmatprep.subr.bf16.mxu0 0
        %995 = vmatpush1.bf16.msra.mxu0 0
        %996 = vmatprep.mubr.bf16.mxu0 0
        %997 = vmatmul.mubr.bf16.gmra.mrb[0].mxu0 %v962
        %v998 = vpop.f32.mrb[0].mxu0
        %v999 = vadd.f32 0.0, %v998
        %v1000 = vpop.f32.mrb[0].mxu0
        %v1001 = vpop.f32.mrb[0].mxu0
        %v1002 = vadd.f32 0.0, %v1001
        %v1003 = vpop.f32.mrb[0].mxu0
        %1004 = vdwg.mxu0
        %1007 = vrot.lane.b32.xlu0 %v999, 8
        %v1008 = vpop.permute.xlu0 %1007
        %1009 = vrot.lane.b32.xlu0 %v1002, 8
        %v1010 = vpop.permute.xlu0 %1009
        %vm1013 = vcmask 130112
        %1014 = vst.msk [vmem:[#allocation5] sm:$0xff] %vm1013, %v1008
        %1015 = vst.msk [vmem:[#allocation5 + $0x8] sm:$0xff] %vm1013, %v1010
        %v1016 = vld [vmem:[#allocation2] sm:$0xff]
        %v1017 = vld [vmem:[#allocation3] sm:$0xff]
        %v1018 = vld [vmem:[#allocation4] sm:$0xff]
        %1020 = vrot.lane.b32.xlu0 %v1016, 112
        %v1021 = vpop.permute.xlu0 %1020
        %1023 = vrot.lane.b32.xlu0 %v1017, 112
        %v1024 = vpop.permute.xlu0 %1023
        %v1026 = vsel %vm756, %v1021, 0
        %v1029 = vsel %vm756, %v1024, 0
        %1031 = vmatprep.subr.bf16.mxu0 0
        %1032 = vmatpush1.bf16.xpose.msra.mxu0 %v1029
        %1033 = vmatprep.subr.bf16.mxu0 0
        %1034 = vmatpush1.bf16.xpose.msra.mxu0 0
        %1035 = vmatprep.subr.bf16.mxu0 0
        %1036 = vmatpush1.bf16.xpose.msra.mxu0 0
        %1037 = vmatprep.subr.bf16.mxu0 0
        %1038 = vmatpush1.bf16.xpose.msra.mxu0 0
        %1039 = vmatprep.subr.bf16.mxu0 0
        %1040 = vmatpush1.bf16.xpose.msra.mxu0 0
        %1041 = vmatprep.subr.bf16.mxu0 0
        %1042 = vmatpush1.bf16.xpose.msra.mxu0 0
        %1043 = vmatprep.subr.bf16.mxu0 0
        %1044 = vmatpush1.bf16.xpose.msra.mxu0 0
        %1045 = vmatprep.subr.bf16.mxu0 0
        %1046 = vmatpush1.bf16.xpose.msra.mxu0 0
        %1047 = vmatprep.subr.bf16.mxu0 0
        %1048 = vmatpush1.bf16.xpose.msra.mxu0 0
        %1049 = vmatprep.subr.bf16.mxu0 0
        %1050 = vmatpush1.bf16.xpose.msra.mxu0 0
        %1051 = vmatprep.subr.bf16.mxu0 0
        %1052 = vmatpush1.bf16.xpose.msra.mxu0 0
        %1053 = vmatprep.subr.bf16.mxu0 0
        %1054 = vmatpush1.bf16.xpose.msra.mxu0 0
        %1055 = vmatprep.subr.bf16.mxu0 0
        %1056 = vmatpush1.bf16.xpose.msra.mxu0 0
        %1057 = vmatprep.subr.bf16.mxu0 0
        %1058 = vmatpush1.bf16.xpose.msra.mxu0 0
        %1059 = vmatprep.subr.bf16.mxu0 0
        %1060 = vmatpush1.bf16.xpose.msra.mxu0 0
        %1061 = vmatprep.subr.bf16.mxu0 0
        %1062 = vmatpush1.bf16.xpose.msra.mxu0 0
        %1063 = vmatprep.mubr.bf16.mxu0 0
        %1064 = vmatmul.mubr.bf16.gmra.mrb[0].mxu0 %v1026
        %v1065 = vpop.f32.mrb[0].mxu0
        %v1066 = vadd.f32 0.0, %v1065
        %v1067 = vpop.f32.mrb[0].mxu0
        %v1068 = vpop.f32.mrb[0].mxu0
        %v1069 = vadd.f32 0.0, %v1068
        %v1070 = vpop.f32.mrb[0].mxu0
        %1071 = vdwg.mxu0
        %v1072 = vmul.f32 %v1066, 0.17677669
        %v1073 = vmul.f32 %v1069, 0.17677669
        %v1074 = vsel %vm806, %v1072, -inf
        %1075 = vmax.xlane.f32.xlu0 %v1074
        %v1076 = vpop.xlane.xlu0 %1075
        %v1077 = vsel %vm806, %v1073, -inf
        %1078 = vmax.xlane.f32.xlu0 %v1077
        %v1079 = vpop.xlane.xlu0 %1078
        %v1080 = vsub.f32 %v1072, %v1076
        %v1081 = vsub.f32 %v1073, %v1079
        %v1082 = vmul.f32 %v1080, 1.442695
        %v1083 = vpow.pop %v1082
        %v1084 = vmul.f32 %v1081, 1.442695
        %v1085 = vpow.pop %v1084
        %v1086 = vsel %vm806, %v1083, 0.0
        %1087 = vadd.xlane.f32.xlu0 %v1086
        %v1088 = vpop.xlane.xlu0 %1087
        %v1089 = vsel %vm806, %v1085, 0.0
        %1090 = vadd.xlane.f32.xlu0 %v1089
        %v1091 = vpop.xlane.xlu0 %1090
        %v1092 = vrcp.pop %v1088
        %v1093 = vrcp.pop %v1091
        %v1094 = vmul.f32 %v1083, %v1092
        %v1095 = vmul.f32 %v1085, %v1093
        %v1096 = vpack.c.bf16 %v1095, %v1094
        %1098 = vrot.lane.b32.xlu0 %v1018, 112
        %v1099 = vpop.permute.xlu0 %1098
        %v1102 = vsel %vm806, %v1096, 0
        %1104 = vmatprep.subr.bf16.mxu0 0
        %1105 = vmatpush1.bf16.msra.mxu0 %v1099
        %1106 = vmatprep.subr.bf16.mxu0 0
        %1107 = vmatpush1.bf16.msra.mxu0 0
        %1108 = vmatprep.subr.bf16.mxu0 0
        %1109 = vmatpush1.bf16.msra.mxu0 0
        %1110 = vmatprep.subr.bf16.mxu0 0
        %1111 = vmatpush1.bf16.msra.mxu0 0
        %1112 = vmatprep.subr.bf16.mxu0 0
        %1113 = vmatpush1.bf16.msra.mxu0 0
        %1114 = vmatprep.subr.bf16.mxu0 0
        %1115 = vmatpush1.bf16.msra.mxu0 0
        %1116 = vmatprep.subr.bf16.mxu0 0
        %1117 = vmatpush1.bf16.msra.mxu0 0
        %1118 = vmatprep.subr.bf16.mxu0 0
        %1119 = vmatpush1.bf16.msra.mxu0 0
        %1120 = vmatprep.subr.bf16.mxu0 0
        %1121 = vmatpush1.bf16.msra.mxu0 0
        %1122 = vmatprep.subr.bf16.mxu0 0
        %1123 = vmatpush1.bf16.msra.mxu0 0
        %1124 = vmatprep.subr.bf16.mxu0 0
        %1125 = vmatpush1.bf16.msra.mxu0 0
        %1126 = vmatprep.subr.bf16.mxu0 0
        %1127 = vmatpush1.bf16.msra.mxu0 0
        %1128 = vmatprep.subr.bf16.mxu0 0
        %1129 = vmatpush1.bf16.msra.mxu0 0
        %1130 = vmatprep.subr.bf16.mxu0 0
        %1131 = vmatpush1.bf16.msra.mxu0 0
        %1132 = vmatprep.subr.bf16.mxu0 0
        %1133 = vmatpush1.bf16.msra.mxu0 0
        %1134 = vmatprep.subr.bf16.mxu0 0
        %1135 = vmatpush1.bf16.msra.mxu0 0
        %1136 = vmatprep.mubr.bf16.mxu0 0
        %1137 = vmatmul.mubr.bf16.gmra.mrb[0].mxu0 %v1102
        %v1138 = vpop.f32.mrb[0].mxu0
        %v1139 = vadd.f32 0.0, %v1138
        %v1140 = vpop.f32.mrb[0].mxu0
        %v1141 = vpop.f32.mrb[0].mxu0
        %v1142 = vadd.f32 0.0, %v1141
        %v1143 = vpop.f32.mrb[0].mxu0
        %1144 = vdwg.mxu0
        %1147 = vrot.lane.b32.xlu0 %v1139, 16
        %v1148 = vpop.permute.xlu0 %1147
        %1149 = vrot.lane.b32.xlu0 %v1142, 16
        %v1150 = vpop.permute.xlu0 %1149
        %vm1153 = vcmask 195712
        %1154 = vst.msk [vmem:[#allocation5] sm:$0xff] %vm1153, %v1148
        %1155 = vst.msk [vmem:[#allocation5 + $0x8] sm:$0xff] %vm1153, %v1150
        %v1156 = vld [vmem:[#allocation2] sm:$0xff]
        %v1157 = vld [vmem:[#allocation3] sm:$0xff]
        %v1158 = vld [vmem:[#allocation4] sm:$0xff]
        %1160 = vrot.lane.b32.xlu0 %v1156, 104
        %v1161 = vpop.permute.xlu0 %1160
        %1163 = vrot.lane.b32.xlu0 %v1157, 104
        %v1164 = vpop.permute.xlu0 %1163
        %v1166 = vsel %vm756, %v1161, 0
        %v1169 = vsel %vm756, %v1164, 0
        %1171 = vmatprep.subr.bf16.mxu0 0
        %1172 = vmatpush1.bf16.xpose.msra.mxu0 %v1169
        %1173 = vmatprep.subr.bf16.mxu0 0
        %1174 = vmatpush1.bf16.xpose.msra.mxu0 0
        %1175 = vmatprep.subr.bf16.mxu0 0
        %1176 = vmatpush1.bf16.xpose.msra.mxu0 0
        %1177 = vmatprep.subr.bf16.mxu0 0
        %1178 = vmatpush1.bf16.xpose.msra.mxu0 0
        %1179 = vmatprep.subr.bf16.mxu0 0
        %1180 = vmatpush1.bf16.xpose.msra.mxu0 0
        %1181 = vmatprep.subr.bf16.mxu0 0
        %1182 = vmatpush1.bf16.xpose.msra.mxu0 0
        %1183 = vmatprep.subr.bf16.mxu0 0
        %1184 = vmatpush1.bf16.xpose.msra.mxu0 0
        %1185 = vmatprep.subr.bf16.mxu0 0
        %1186 = vmatpush1.bf16.xpose.msra.mxu0 0
        %1187 = vmatprep.subr.bf16.mxu0 0
        %1188 = vmatpush1.bf16.xpose.msra.mxu0 0
        %1189 = vmatprep.subr.bf16.mxu0 0
        %1190 = vmatpush1.bf16.xpose.msra.mxu0 0
        %1191 = vmatprep.subr.bf16.mxu0 0
        %1192 = vmatpush1.bf16.xpose.msra.mxu0 0
        %1193 = vmatprep.subr.bf16.mxu0 0
        %1194 = vmatpush1.bf16.xpose.msra.mxu0 0
        %1195 = vmatprep.subr.bf16.mxu0 0
        %1196 = vmatpush1.bf16.xpose.msra.mxu0 0
        %1197 = vmatprep.subr.bf16.mxu0 0
        %1198 = vmatpush1.bf16.xpose.msra.mxu0 0
        %1199 = vmatprep.subr.bf16.mxu0 0
        %1200 = vmatpush1.bf16.xpose.msra.mxu0 0
        %1201 = vmatprep.subr.bf16.mxu0 0
        %1202 = vmatpush1.bf16.xpose.msra.mxu0 0
        %1203 = vmatprep.mubr.bf16.mxu0 0
        %1204 = vmatmul.mubr.bf16.gmra.mrb[0].mxu0 %v1166
        %v1205 = vpop.f32.mrb[0].mxu0
        %v1206 = vadd.f32 0.0, %v1205
        %v1207 = vpop.f32.mrb[0].mxu0
        %v1208 = vpop.f32.mrb[0].mxu0
        %v1209 = vadd.f32 0.0, %v1208
        %v1210 = vpop.f32.mrb[0].mxu0
        %1211 = vdwg.mxu0
        %v1212 = vmul.f32 %v1206, 0.17677669
        %v1213 = vmul.f32 %v1209, 0.17677669
        %v1214 = vsel %vm806, %v1212, -inf
        %1215 = vmax.xlane.f32.xlu0 %v1214
        %v1216 = vpop.xlane.xlu0 %1215
        %v1217 = vsel %vm806, %v1213, -inf
        %1218 = vmax.xlane.f32.xlu0 %v1217
        %v1219 = vpop.xlane.xlu0 %1218
        %v1220 = vsub.f32 %v1212, %v1216
        %v1221 = vsub.f32 %v1213, %v1219
        %v1222 = vmul.f32 %v1220, 1.442695
        %v1223 = vpow.pop %v1222
        %v1224 = vmul.f32 %v1221, 1.442695
        %v1225 = vpow.pop %v1224
        %v1226 = vsel %vm806, %v1223, 0.0
        %1227 = vadd.xlane.f32.xlu0 %v1226
        %v1228 = vpop.xlane.xlu0 %1227
        %v1229 = vsel %vm806, %v1225, 0.0
        %1230 = vadd.xlane.f32.xlu0 %v1229
        %v1231 = vpop.xlane.xlu0 %1230
        %v1232 = vrcp.pop %v1228
        %v1233 = vrcp.pop %v1231
        %v1234 = vmul.f32 %v1223, %v1232
        %v1235 = vmul.f32 %v1225, %v1233
        %v1236 = vpack.c.bf16 %v1235, %v1234
        %1238 = vrot.lane.b32.xlu0 %v1158, 104
        %v1239 = vpop.permute.xlu0 %1238
        %v1242 = vsel %vm806, %v1236, 0
        %1244 = vmatprep.subr.bf16.mxu0 0
        %1245 = vmatpush1.bf16.msra.mxu0 %v1239
        %1246 = vmatprep.subr.bf16.mxu0 0
        %1247 = vmatpush1.bf16.msra.mxu0 0
        %1248 = vmatprep.subr.bf16.mxu0 0
        %1249 = vmatpush1.bf16.msra.mxu0 0
        %1250 = vmatprep.subr.bf16.mxu0 0
        %1251 = vmatpush1.bf16.msra.mxu0 0
        %1252 = vmatprep.subr.bf16.mxu0 0
        %1253 = vmatpush1.bf16.msra.mxu0 0
        %1254 = vmatprep.subr.bf16.mxu0 0
        %1255 = vmatpush1.bf16.msra.mxu0 0
        %1256 = vmatprep.subr.bf16.mxu0 0
        %1257 = vmatpush1.bf16.msra.mxu0 0
        %1258 = vmatprep.subr.bf16.mxu0 0
        %1259 = vmatpush1.bf16.msra.mxu0 0
        %1260 = vmatprep.subr.bf16.mxu0 0
        %1261 = vmatpush1.bf16.msra.mxu0 0
        %1262 = vmatprep.subr.bf16.mxu0 0
        %1263 = vmatpush1.bf16.msra.mxu0 0
        %1264 = vmatprep.subr.bf16.mxu0 0
        %1265 = vmatpush1.bf16.msra.mxu0 0
        %1266 = vmatprep.subr.bf16.mxu0 0
        %1267 = vmatpush1.bf16.msra.mxu0 0
        %1268 = vmatprep.subr.bf16.mxu0 0
        %1269 = vmatpush1.bf16.msra.mxu0 0
        %1270 = vmatprep.subr.bf16.mxu0 0
        %1271 = vmatpush1.bf16.msra.mxu0 0
        %1272 = vmatprep.subr.bf16.mxu0 0
        %1273 = vmatpush1.bf16.msra.mxu0 0
        %1274 = vmatprep.subr.bf16.mxu0 0
        %1275 = vmatpush1.bf16.msra.mxu0 0
        %1276 = vmatprep.mubr.bf16.mxu0 0
        %1277 = vmatmul.mubr.bf16.gmra.mrb[0].mxu0 %v1242
        %v1278 = vpop.f32.mrb[0].mxu0
        %v1279 = vadd.f32 0.0, %v1278
        %v1280 = vpop.f32.mrb[0].mxu0
        %v1281 = vpop.f32.mrb[0].mxu0
        %v1282 = vadd.f32 0.0, %v1281
        %v1283 = vpop.f32.mrb[0].mxu0
        %1284 = vdwg.mxu0
        %1287 = vrot.lane.b32.xlu0 %v1279, 24
        %v1288 = vpop.permute.xlu0 %1287
        %1289 = vrot.lane.b32.xlu0 %v1282, 24
        %v1290 = vpop.permute.xlu0 %1289
        %vm1293 = vcmask 261312
        %1294 = vst.msk [vmem:[#allocation5] sm:$0xff] %vm1293, %v1288
        %1295 = vst.msk [vmem:[#allocation5 + $0x8] sm:$0xff] %vm1293, %v1290
        %v1296 = vld [vmem:[#allocation5] sm:$0xff]
        %v1297 = vld [vmem:[#allocation5 + $0x8] sm:$0xff]
        %v1298 = vpack.c.bf16 %v1297, %v1296
        %v1299 = vld [vmem:[%s7] sm:$0xf]
        %v1300 = vld [vmem:[%s7 + $0x4] sm:$0xf]
        %v1301 = vld [vmem:[%s7 + $0x8] sm:$0xf]
        %v1302 = vld [vmem:[%s7 + $0xc] sm:$0xf]
        %v1303 = vld [vmem:[%s8] sm:$0x1]
        %v1305 = vlaneseq
        %v1306 = vshrl.u32 %v1305, 7
        %v1307 = vsub.s32 0, %v1306
        %v1308 = vrot.slane %v1303, %v1307
        %v1314 = vunpack.c.l.b16 %v1299
        %v1315 = vunpack.c.l.b16 %v1300
        %v1316 = vunpack.c.l.b16 %v1301
        %v1317 = vunpack.c.l.b16 %v1302
        %v1318 = vpack.c.b16 %v1315, %v1314
        %v1319 = vpack.c.b16 %v1317, %v1316
        %v1323 = vsel %vm574, %v1298, 0
        %1325 = vmatprep.subr.bf16.mxu0 0
        %1326 = vmatpush1.bf16.msra.mxu0 %v1318
        %1327 = vmatprep.subr.bf16.mxu0 0
        %1328 = vmatpush1.bf16.msra.mxu0 %v1319
        %1329 = vmatprep.subr.bf16.mxu0 0
        %1330 = vmatpush1.bf16.msra.mxu0 0
        %1331 = vmatprep.subr.bf16.mxu0 0
        %1332 = vmatpush1.bf16.msra.mxu0 0
        %1333 = vmatprep.subr.bf16.mxu0 0
        %1334 = vmatpush1.bf16.msra.mxu0 0
        %1335 = vmatprep.subr.bf16.mxu0 0
        %1336 = vmatpush1.bf16.msra.mxu0 0
        %1337 = vmatprep.subr.bf16.mxu0 0
        %1338 = vmatpush1.bf16.msra.mxu0 0
        %1339 = vmatprep.subr.bf16.mxu0 0
        %1340 = vmatpush1.bf16.msra.mxu0 0
        %1341 = vmatprep.subr.bf16.mxu0 0
        %1342 = vmatpush1.bf16.msra.mxu0 0
        %1343 = vmatprep.subr.bf16.mxu0 0
        %1344 = vmatpush1.bf16.msra.mxu0 0
        %1345 = vmatprep.subr.bf16.mxu0 0
        %1346 = vmatpush1.bf16.msra.mxu0 0
        %1347 = vmatprep.subr.bf16.mxu0 0
        %1348 = vmatpush1.bf16.msra.mxu0 0
        %1349 = vmatprep.subr.bf16.mxu0 0
        %1350 = vmatpush1.bf16.msra.mxu0 0
        %1351 = vmatprep.subr.bf16.mxu0 0
        %1352 = vmatpush1.bf16.msra.mxu0 0
        %1353 = vmatprep.subr.bf16.mxu0 0
        %1354 = vmatpush1.bf16.msra.mxu0 0
        %1355 = vmatprep.subr.bf16.mxu0 0
        %1356 = vmatpush1.bf16.msra.mxu0 0
        %1357 = vmatprep.mubr.bf16.mxu0 0
        %1358 = vmatmul.mubr.bf16.gmra.mrb[0].mxu0 %v1323
        %v1359 = vpop.f32.mrb[0].mxu0
        %v1360 = vadd.f32 %v1308, %v1359
        %v1361 = vpop.f32.mrb[0].mxu0
        %v1362 = vpop.f32.mrb[0].mxu0
        %v1363 = vadd.f32 %v1308, %v1362
        %v1364 = vpop.f32.mrb[0].mxu0
        %1365 = vdwg.mxu0
        %v1366 = vadd.f32 %v1360, %v548
        %v1367 = vadd.f32 %v1363, %v549
        %v1368 = vsel %vm574, %v1366, 0.0
        %1369 = vadd.xlane.f32.xlu0 %v1368
        %v1370 = vpop.xlane.xlu0 %1369
        %v1371 = vsel %vm574, %v1367, 0.0
        %1372 = vadd.xlane.f32.xlu0 %v1371
        %v1373 = vpop.xlane.xlu0 %1372
        %v1374 = vrcp.pop 32.0
        %v1375 = vmul.f32 %v1370, %v1374
        %v1376 = vmul.f32 %v1373, %v1374
        %v1377 = vsub.f32 %v1366, %v1375
        %v1378 = vsub.f32 %v1367, %v1376
        %v1379 = vmul.f32 %v1377, %v1377
        %v1380 = vmul.f32 %v1378, %v1378
        %v1381 = vsel %vm574, %v1379, 0.0
        %1382 = vadd.xlane.f32.xlu0 %v1381
        %v1383 = vpop.xlane.xlu0 %1382
        %v1384 = vsel %vm574, %v1380, 0.0
        %1385 = vadd.xlane.f32.xlu0 %v1384
        %v1386 = vpop.xlane.xlu0 %1385
        %v1387 = vmul.f32 %v1383, %v1374
        %v1388 = vmul.f32 %v1386, %v1374
        %v1389 = vadd.f32 %v1387, 1e-05
        %v1390 = vadd.f32 %v1388, 1e-05
        %v1391 = vrsqrt.pop %v1389
        %v1392 = vrsqrt.pop %v1390
        %v1393 = vmul.f32 %v1377, %v1391
        %v1394 = vmul.f32 %v1378, %v1392
        %v1395 = vld [vmem:[%s9] sm:$0x1]
        %v1397 = vlaneseq
        %v1398 = vshrl.u32 %v1397, 7
        %v1399 = vsub.s32 0, %v1398
        %v1400 = vrot.slane %v1395, %v1399
        %v1402 = vmul.f32 %v1393, %v1400
        %v1403 = vmul.f32 %v1394, %v1400
        %v1404 = vld [vmem:[%s10] sm:$0x1]
        %v1406 = vlaneseq
        %v1407 = vshrl.u32 %v1406, 7
        %v1408 = vsub.s32 0, %v1407
        %v1409 = vrot.slane %v1404, %v1408
        %v1411 = vadd.f32 %v1402, %v1409
        %v1412 = vadd.f32 %v1403, %v1409
        %v1413 = vpack.c.bf16 %v1412, %v1411
        %v1414 = vld [vmem:[%s11] sm:$0xf]
        %v1415 = vld [vmem:[%s11 + $0x4] sm:$0xf]
        %v1416 = vld [vmem:[%s11 + $0x8] sm:$0xf]
        %v1417 = vld [vmem:[%s11 + $0xc] sm:$0xf]
        %v1418 = vld [vmem:[%s12] sm:$0x1]
        %v1420 = vlaneseq
        %v1421 = vshrl.u32 %v1420, 7
        %v1422 = vsub.s32 0, %v1421
        %v1423 = vrot.slane %v1418, %v1422
        %v1429 = vunpack.c.l.b16 %v1414
        %v1430 = vunpack.c.l.b16 %v1415
        %v1431 = vunpack.c.l.b16 %v1416
        %v1432 = vunpack.c.l.b16 %v1417
        %v1433 = vpack.c.b16 %v1430, %v1429
        %v1434 = vpack.c.b16 %v1432, %v1431
        %v1438 = vsel %vm574, %v1413, 0
        %1440 = vmatprep.subr.bf16.mxu0 0
        %1441 = vmatpush1.bf16.msra.mxu0 %v1433
        %1442 = vmatprep.subr.bf16.mxu0 0
        %1443 = vmatpush1.bf16.msra.mxu0 %v1434
        %1444 = vmatprep.subr.bf16.mxu0 0
        %1445 = vmatpush1.bf16.msra.mxu0 0
        %1446 = vmatprep.subr.bf16.mxu0 0
        %1447 = vmatpush1.bf16.msra.mxu0 0
        %1448 = vmatprep.subr.bf16.mxu0 0
        %1449 = vmatpush1.bf16.msra.mxu0 0
        %1450 = vmatprep.subr.bf16.mxu0 0
        %1451 = vmatpush1.bf16.msra.mxu0 0
        %1452 = vmatprep.subr.bf16.mxu0 0
        %1453 = vmatpush1.bf16.msra.mxu0 0
        %1454 = vmatprep.subr.bf16.mxu0 0
        %1455 = vmatpush1.bf16.msra.mxu0 0
        %1456 = vmatprep.subr.bf16.mxu0 0
        %1457 = vmatpush1.bf16.msra.mxu0 0
        %1458 = vmatprep.subr.bf16.mxu0 0
        %1459 = vmatpush1.bf16.msra.mxu0 0
        %1460 = vmatprep.subr.bf16.mxu0 0
        %1461 = vmatpush1.bf16.msra.mxu0 0
        %1462 = vmatprep.subr.bf16.mxu0 0
        %1463 = vmatpush1.bf16.msra.mxu0 0
        %1464 = vmatprep.subr.bf16.mxu0 0
        %1465 = vmatpush1.bf16.msra.mxu0 0
        %1466 = vmatprep.subr.bf16.mxu0 0
        %1467 = vmatpush1.bf16.msra.mxu0 0
        %1468 = vmatprep.subr.bf16.mxu0 0
        %1469 = vmatpush1.bf16.msra.mxu0 0
        %1470 = vmatprep.subr.bf16.mxu0 0
        %1471 = vmatpush1.bf16.msra.mxu0 0
        %1472 = vmatprep.mubr.bf16.mxu0 0
        %1473 = vmatmul.mubr.bf16.gmra.mrb[0].mxu0 %v1438
        %v1474 = vpop.f32.mrb[0].mxu0
        %v1475 = vadd.f32 %v1423, %v1474
        %v1476 = vpop.f32.mrb[0].mxu0
        %v1477 = vpop.f32.mrb[0].mxu0
        %v1478 = vadd.f32 %v1423, %v1477
        %v1479 = vpop.f32.mrb[0].mxu0
        %1480 = vdwg.mxu0
        %v1481 = vmax.f32 %v1475, 0.0
        %v1482 = vmax.f32 %v1478, 0.0
        %v1483 = vpack.c.bf16 %v1482, %v1481
        %v1484 = vld [vmem:[%s13] sm:$0xf]
        %v1485 = vld [vmem:[%s13 + $0x4] sm:$0xf]
        %v1486 = vld [vmem:[%s13 + $0x8] sm:$0xf]
        %v1487 = vld [vmem:[%s13 + $0xc] sm:$0xf]
        %v1488 = vld [vmem:[%s13 + $0x10] sm:$0xf]
        %v1489 = vld [vmem:[%s13 + $0x14] sm:$0xf]
        %v1490 = vld [vmem:[%s13 + $0x18] sm:$0xf]
        %v1491 = vld [vmem:[%s13 + $0x1c] sm:$0xf]
        %v1492 = vld [vmem:[%s14] sm:$0x1]
        %v1494 = vlaneseq
        %v1495 = vshrl.u32 %v1494, 7
        %v1496 = vsub.s32 0, %v1495
        %v1497 = vrot.slane %v1492, %v1496
        %v1507 = vunpack.c.l.b16 %v1484
        %v1508 = vunpack.c.l.b16 %v1485
        %v1509 = vunpack.c.l.b16 %v1486
        %v1510 = vunpack.c.l.b16 %v1487
        %v1511 = vunpack.c.l.b16 %v1488
        %v1512 = vunpack.c.l.b16 %v1489
        %v1513 = vunpack.c.l.b16 %v1490
        %v1514 = vunpack.c.l.b16 %v1491
        %v1515 = vpack.c.b16 %v1508, %v1507
        %v1516 = vpack.c.b16 %v1510, %v1509
        %v1517 = vpack.c.b16 %v1512, %v1511
        %v1518 = vpack.c.b16 %v1514, %v1513
        %vm1523 = vcmask 523264
        %v1525 = vsel %vm1523, %v1483, 0
        %1527 = vmatprep.subr.bf16.mxu0 0
        %1528 = vmatpush1.bf16.msra.mxu0 %v1515
        %1529 = vmatprep.subr.bf16.mxu0 0
        %1530 = vmatpush1.bf16.msra.mxu0 %v1516
        %1531 = vmatprep.subr.bf16.mxu0 0
        %1532 = vmatpush1.bf16.msra.mxu0 %v1517
        %1533 = vmatprep.subr.bf16.mxu0 0
        %1534 = vmatpush1.bf16.msra.mxu0 %v1518
        %1535 = vmatprep.subr.bf16.mxu0 0
        %1536 = vmatpush1.bf16.msra.mxu0 0
        %1537 = vmatprep.subr.bf16.mxu0 0
        %1538 = vmatpush1.bf16.msra.mxu0 0
        %1539 = vmatprep.subr.bf16.mxu0 0
        %1540 = vmatpush1.bf16.msra.mxu0 0
        %1541 = vmatprep.subr.bf16.mxu0 0
        %1542 = vmatpush1.bf16.msra.mxu0 0
        %1543 = vmatprep.subr.bf16.mxu0 0
        %1544 = vmatpush1.bf16.msra.mxu0 0
        %1545 = vmatprep.subr.bf16.mxu0 0
        %1546 = vmatpush1.bf16.msra.mxu0 0
        %1547 = vmatprep.subr.bf16.mxu0 0
        %1548 = vmatpush1.bf16.msra.mxu0 0
        %1549 = vmatprep.subr.bf16.mxu0 0
        %1550 = vmatpush1.bf16.msra.mxu0 0
        %1551 = vmatprep.subr.bf16.mxu0 0
        %1552 = vmatpush1.bf16.msra.mxu0 0
        %1553 = vmatprep.subr.bf16.mxu0 0
        %1554 = vmatpush1.bf16.msra.mxu0 0
        %1555 = vmatprep.subr.bf16.mxu0 0
        %1556 = vmatpush1.bf16.msra.mxu0 0
        %1557 = vmatprep.subr.bf16.mxu0 0
        %1558 = vmatpush1.bf16.msra.mxu0 0
        %1559 = vmatprep.mubr.bf16.mxu0 0
        %1560 = vmatmul.mubr.bf16.gmra.mrb[0].mxu0 %v1525
        %v1561 = vpop.f32.mrb[0].mxu0
        %v1562 = vadd.f32 %v1497, %v1561
        %v1563 = vpop.f32.mrb[0].mxu0
        %v1564 = vpop.f32.mrb[0].mxu0
        %v1565 = vadd.f32 %v1497, %v1564
        %v1566 = vpop.f32.mrb[0].mxu0
        %1567 = vdwg.mxu0
        %v1568 = vmax.f32 %v1562, 0.0
        %v1569 = vmax.f32 %v1565, 0.0
        %v1570 = vadd.f32 %v1568, %v1411
        %v1571 = vadd.f32 %v1569, %v1412
        %v1572 = vsel %vm574, %v1570, 0.0
        %1573 = vadd.xlane.f32.xlu0 %v1572
        %v1574 = vpop.xlane.xlu0 %1573
        %v1575 = vsel %vm574, %v1571, 0.0
        %1576 = vadd.xlane.f32.xlu0 %v1575
        %v1577 = vpop.xlane.xlu0 %1576
        %v1578 = vmul.f32 %v1574, %v1374
        %v1579 = vmul.f32 %v1577, %v1374
        %v1580 = vsub.f32 %v1570, %v1578
        %v1581 = vsub.f32 %v1571, %v1579
        %v1582 = vmul.f32 %v1580, %v1580
        %v1583 = vmul.f32 %v1581, %v1581
        %v1584 = vsel %vm574, %v1582, 0.0
        %1585 = vadd.xlane.f32.xlu0 %v1584
        %v1586 = vpop.xlane.xlu0 %1585
        %v1587 = vsel %vm574, %v1583, 0.0
        %1588 = vadd.xlane.f32.xlu0 %v1587
        %v1589 = vpop.xlane.xlu0 %1588
        %v1590 = vmul.f32 %v1586, %v1374
        %v1591 = vmul.f32 %v1589, %v1374
        %v1592 = vadd.f32 %v1590, 1e-05
        %v1593 = vadd.f32 %v1591, 1e-05
        %v1594 = vrsqrt.pop %v1592
        %v1595 = vrsqrt.pop %v1593
        %v1596 = vmul.f32 %v1580, %v1594
        %v1597 = vmul.f32 %v1581, %v1595
        %v1598 = vld [vmem:[%s15] sm:$0x1]
        %v1600 = vlaneseq
        %v1601 = vshrl.u32 %v1600, 7
        %v1602 = vsub.s32 0, %v1601
        %v1603 = vrot.slane %v1598, %v1602
        %v1605 = vmul.f32 %v1596, %v1603
        %v1606 = vmul.f32 %v1597, %v1603
        %v1607 = vld [vmem:[%s16] sm:$0x1]
        %v1609 = vlaneseq
        %v1610 = vshrl.u32 %v1609, 7
        %v1611 = vsub.s32 0, %v1610
        %v1612 = vrot.slane %v1607, %v1611
        %v1614 = vadd.f32 %v1605, %v1612
        %v1615 = vadd.f32 %v1606, %v1612
        %1616 = vst.msk [vmem:[%s541] sm:$0xff] %vm574, %v1614
        %1617 = vst.msk [vmem:[%s541 + $0x8] sm:$0xff] %vm574, %v1615
        %s1618 = sand.u32 %s401, 1
        %s1619 = scalar_lea.sflag [#allocation7], %s1618
        %s1620 = sand.u32 %s401, 1
        %s1621 = smul.addr %s1620, 16
        %s1622 = scalar_lea.vmem [#allocation6], %s1621
        // Predicated region
        $region89: #{transformer_encoder_2d_forward.3} parent=87 // pred_check
          %p1623 = pneg %p411
        $region90: #{transformer_encoder_2d_forward.3} parent=87 // pred_check_branch
          %1625 = sbr.rel (%p1623) target = $region92
        $region91: #{transformer_encoder_2d_forward.3} parent=87 // pred_region
          %s1627 = ssub.s32 256, 256
          %1628 = vsyncadd %s1619, %s1627
          %s1629 = smul.addr %s31, 2
          %s1630 = smul.addr %s1629, 128
          %s1631 = scalar_lea.hbm %s17, %s1630
          %s1632 = sshll.u32 %s1622, 4
          %s1633 = int_to_ptr.vmem [resolvable:$true] %s1632
          %1638 = dma.vmem_to_hbm [thread:$0]  %s1633, 256, %s1631, %s1619, 128, 128, 8
        $region92: #{transformer_encoder_2d_forward.3} parent=87 // pred_fallthru
          _
      $region88: #{transformer_encoder_2d_forward.3} parent=5 // pred_fallthru
        _
      %p1639 = scmp.le.s32.totalorder 2, %s26
      // Predicated region
      $region93: #{transformer_encoder_2d_forward.3} parent=5 // pred_check
        %p1640 = pneg %p1639
      $region94: #{transformer_encoder_2d_forward.3} parent=5 // pred_check_branch
        %1642 = sbr.rel (%p1640) target = $region96
      $region95: #{transformer_encoder_2d_forward.3} parent=5 // pred_region
        %s1643 = ssub.s32 %s26, 2
        // Predicated region
        $region97: #{transformer_encoder_2d_forward.3} parent=95 // pred_check
          %p1644 = pneg %p417
        $region98: #{transformer_encoder_2d_forward.3} parent=95 // pred_check_branch
          %1646 = sbr.rel (%p1644) target = $region100
        $region99: #{transformer_encoder_2d_forward.3} parent=95 // pred_region
          %s1647 = sand.u32 %s402, 1
          %s1648 = scalar_lea.sflag [#allocation7], %s1647
          %s1649 = sand.u32 %s402, 1
          %s1650 = smul.addr %s1649, 16
          %s1651 = scalar_lea.vmem [#allocation6], %s1650
          %1652 = dma.done %s1648, 256
        $region100: #{transformer_encoder_2d_forward.3} parent=95 // pred_fallthru
          _
      $region96: #{transformer_encoder_2d_forward.3} parent=5 // pred_fallthru
        _
    $region6: #{transformer_encoder_2d_forward.3} parent=1 // loop_footer
      %s30 = sadd.s32 1, %s26
    $region7: #{transformer_encoder_2d_forward.3} parent=1 // loop_footer_branch
      %25 = sbr.rel target = $region3
    $region8: #{transformer_encoder_2d_forward.3} parent=1 // loop_exit
      _
    %1653 = vsyncpa [#allocation7], 1
    %s1654 = scalar_lea.sflag [#allocation7], 1
    %1655 = vsyncpa %s1654, 1

</llo_original>
